<compile_context>
chip_gen: v6e
topology: v6e:2x2x1
jax: 0.10.0
libtpu: 0.0.40
codegen_flags: <defaults>
</compile_context>

<pallas_src>
import jax
import jax.numpy as jnp
from jax import lax
from jax.experimental import pallas as pl
from jax.experimental.pallas import tpu as pltpu  # noqa: F401  (not required at these sizes)

# Module hyper-parameters (from __init__ defaults).
KERNEL = 5
STRIDE = 2
C1 = 32           # out_channels_1
C2 = 16           # out_channels_2
BN_EPS = 1e-5
LRELU_SLOPE = 0.05


def _conv_len(n):
    return (n - KERNEL) // STRIDE + 1


def _make_drgn_kernel(B, C_in, Q, n_e, n_o, L1, L2):
    """Build the fused kernel, specialized to static shapes.

    Kernel refs:
      xp_ref : (4, B, C_in, Q)   4-phase split of x: xp[r, b, c, q] = x[b, c, 4q + r]
      w1_ref : (K, C1, C_in)     conv1 weight, per-tap matrices
      w2_ref : (K, C2, C1)       conv2 weight, per-tap matrices
      bn1_ref: (2, C1, 1)        [gamma1; beta1]
      bn2_ref: (2, C2, 1)        [gamma2; beta2]
      o_ref  : (B, C2, L2)       block-2 output (pre-flatten, NCL order)
    """
    # Stride-2 conv taps expressed on the 4-phase input:
    #   even outputs l1 = 2j   read x[4j + k]     -> phase  k % 4,      offset  k // 4
    #   odd  outputs l1 = 2j+1 read x[4j + 2 + k] -> phase (k+2) % 4,   offset (k+2) // 4
    even_tap = [(k % 4, k // 4) for k in range(KERNEL)]
    odd_tap = [((k + 2) % 4, (k + 2) // 4) for k in range(KERNEL)]

    def _reduce_bn(y):
        # per-channel sum over (batch, position): (B, C, n) -> (1, C, 1)
        return jnp.sum(jnp.sum(y, axis=2, keepdims=True), axis=0, keepdims=True)

    def _bn_lrelu(y, scale, shift):
        z = y * scale + shift
        return jnp.where(z > 0, z, LRELU_SLOPE * z)

    def kernel(xp_ref, w1_ref, w2_ref, bn1_ref, bn2_ref, o_ref):
        xp = xp_ref[...]     # (4, B, C_in, Q)
        w1 = w1_ref[...]     # (K, C1, C_in)
        w2 = w2_ref[...]     # (K, C2, C1)
        bn1 = bn1_ref[...]   # (2, C1, 1)
        bn2 = bn2_ref[...]   # (2, C2, 1)

        # ---- block 1: Conv1d(C_in -> C1, k=5, s=2) as K shifted matmuls ----
        def conv1_branch(taps, n):
            acc = jnp.zeros((B, C1, n), jnp.float32)
            for k in range(KERNEL):
                r, off = taps[k]
                xs = xp[r, :, :, off:off + n]                       # (B, C_in, n)
                wk = jnp.broadcast_to(w1[k], (B, C1, C_in))         # (B, C1, C_in)
                acc = acc + jnp.einsum('boc,bcn->bon', wk, xs,
                                       preferred_element_type=jnp.float32)
            return acc

        y_e = conv1_branch(even_tap, n_e)        # even l1 positions  (B, C1, n_e)
        y_o = conv1_branch(odd_tap, n_o)         # odd  l1 positions  (B, C1, n_o)

        # ---- BatchNorm1d(C1), train mode, folded into one scale/shift ------
        # (conv bias cancels exactly under batch-stat BN, so it was dropped)
        cnt1 = float(B * L1)
        s1 = _reduce_bn(y_e) + _reduce_bn(y_o)                      # (1, C1, 1)
        q1 = _reduce_bn(y_e * y_e) + _reduce_bn(y_o * y_o)
        mean1 = s1 / cnt1
        var1 = q1 / cnt1 - mean1 * mean1                            # biased var
        scale1 = bn1[0] * lax.rsqrt(var1 + BN_EPS)
        shift1 = bn1[1] - mean1 * scale1

        h_e = _bn_lrelu(y_e, scale1, shift1)                        # (B, C1, n_e)
        h_o = _bn_lrelu(y_o, scale1, shift1)                        # (B, C1, n_o)

        # ---- block 2: Conv1d(C1 -> C2, k=5, s=2) over even/odd h1 phases ---
        acc2 = jnp.zeros((B, C2, L2), jnp.float32)
        for k in range(KERNEL):
            wk = jnp.broadcast_to(w2[k], (B, C2, C1))
            if k % 2 == 0:
                hs = h_e[:, :, k // 2:k // 2 + L2]                  # (B, C1, L2)
            else:
                hs = h_o[:, :, (k - 1) // 2:(k - 1) // 2 + L2]
            acc2 = acc2 + jnp.einsum('boc,bcn->bon', wk, hs,
                                     preferred_element_type=jnp.float32)

        # ---- BatchNorm1d(C2) + LeakyReLU ------------------------------------
        cnt2 = float(B * L2)
        s2 = _reduce_bn(acc2)
        q2 = _reduce_bn(acc2 * acc2)
        mean2 = s2 / cnt2
        var2 = q2 / cnt2 - mean2 * mean2
        scale2 = bn2[0] * lax.rsqrt(var2 + BN_EPS)
        shift2 = bn2[1] - mean2 * scale2

        o_ref[...] = _bn_lrelu(acc2, scale2, shift2)

    return kernel


def drgn_encoder(x, params):
    """x: (B, C_in, L) float32, PyTorch NCL layout.  Returns (B, C2 * L2)."""
    w1, b1, g1, bt1, w2, b2, g2, bt2 = params
    del b1, b2   # conv bias cancels exactly under train-mode (batch-stat) BN

    B, C_in, L = x.shape
    L1 = _conv_len(L)
    L2 = _conv_len(L1)
    n_e = (L1 + 1) // 2          # number of even conv1 output positions
    n_o = L1 // 2                # number of odd  conv1 output positions
    Q = n_e + 1                  # per-phase length needed by the in-kernel taps
    Lp = max(4 * Q, L)

    # 4-phase split of the input (1x-size relayout, done once in XLA):
    # xp[r, b, c, q] = x[b, c, 4q + r]  (zero-padded tail, never read for valid outputs)
    x32 = x.astype(jnp.float32)
    xpad = jnp.pad(x32, ((0, 0), (0, 0), (0, Lp - L)))
    xp = jnp.transpose(xpad[:, :, :4 * Q].reshape(B, C_in, Q, 4), (3, 0, 1, 2))

    w1s = jnp.transpose(w1, (2, 0, 1)).astype(jnp.float32)          # (K, C1, C_in)
    w2s = jnp.transpose(w2, (2, 0, 1)).astype(jnp.float32)          # (K, C2, C1)
    bn1 = jnp.stack([g1, bt1]).reshape(2, C1, 1).astype(jnp.float32)
    bn2 = jnp.stack([g2, bt2]).reshape(2, C2, 1).astype(jnp.float32)

    kernel = _make_drgn_kernel(B, C_in, Q, n_e, n_o, L1, L2)

    y2 = pl.pallas_call(
        kernel,
        out_shape=jax.ShapeDtypeStruct((B, C2, L2), jnp.float32),
        in_specs=[
            pl.BlockSpec((4, B, C_in, Q), lambda: (0, 0, 0, 0)),
            pl.BlockSpec((KERNEL, C1, C_in), lambda: (0, 0, 0)),
            pl.BlockSpec((KERNEL, C2, C1), lambda: (0, 0, 0)),
            pl.BlockSpec((2, C1, 1), lambda: (0, 0, 0)),
            pl.BlockSpec((2, C2, 1), lambda: (0, 0, 0)),
        ],
        out_specs=pl.BlockSpec((B, C2, L2), lambda: (0, 0, 0)),
    )(xp, w1s, w2s, bn1, bn2)

    # nn.Flatten(start_dim=1) on the NCL tensor
    return y2.reshape(B, C2 * L2)


def _reference(x, params):
    """Pure-JAX (non-Pallas) reference of the PyTorch forward, for validation."""
    w1, b1, g1, bt1, w2, b2, g2, bt2 = params

    def conv1d(x, w, b):
        _, _, L = x.shape
        K = w.shape[2]
        Lout = (L - K) // STRIDE + 1
        idx = STRIDE * jnp.arange(Lout)[:, None] + jnp.arange(K)[None, :]
        patches = x[:, :, idx]                                    # (B, Cin, Lout, K)
        y = jnp.einsum('bclk,ock->bol', patches, w,
                       precision=lax.Precision.HIGHEST)
        return y + b[None, :, None]

    def bn(y, g, bt):
        mean = jnp.mean(y, axis=(0, 2), keepdims=True)
        var = jnp.mean((y - mean) ** 2, axis=(0, 2), keepdims=True)
        return g[None, :, None] * (y - mean) * lax.rsqrt(var + BN_EPS) + bt[None, :, None]

    def lrelu(z):
        return jnp.where(z > 0, z, LRELU_SLOPE * z)

    h1 = lrelu(bn(conv1d(x, w1, b1), g1, bt1))
    h2 = lrelu(bn(conv1d(h1, w2, b2), g2, bt2))
    return h2.reshape(x.shape[0], -1)


if __name__ == "__main__":
    # Small deterministic example consistent with the module:
    # in_channels=4, seq length 64 (so both stride-2 convs have valid outputs).
    B, C_in, L = 2, 4, 64

    key = jax.random.PRNGKey(0)
    ks = jax.random.split(key, 9)
    x = jax.random.normal(ks[0], (B, C_in, L), jnp.float32)

    # Deterministic synthetic parameters (PyTorch shapes).
    w1 = 0.1 * jax.random.normal(ks[1], (C1, C_in, KERNEL), jnp.float32)   # Conv1d.weight
    b1 = 0.1 * jax.random.normal(ks[2], (C1,), jnp.float32)                # Conv1d.bias
    w2 = 0.1 * jax.random.normal(ks[3], (C2, C1, KERNEL), jnp.float32)
    b2 = 0.1 * jax.random.normal(ks[4], (C2,), jnp.float32)
    g1 = 1.0 + 0.1 * jax.random.normal(ks[5], (C1,), jnp.float32)          # BN gamma
    bt1 = 0.1 * jax.random.normal(ks[6], (C1,), jnp.float32)               # BN beta
    g2 = 1.0 + 0.1 * jax.random.normal(ks[7], (C2,), jnp.float32)
    bt2 = 0.1 * jax.random.normal(ks[8], (C2,), jnp.float32)

    params = (w1, b1, g1, bt1, w2, b2, g2, bt2)

    out = jax.jit(drgn_encoder)(x, params)
    out = jax.block_until_ready(out)

    # Shape check: L1 = (64-5)//2+1 = 30, L2 = (30-5)//2+1 = 13.
    L1 = _conv_len(L)
    L2 = _conv_len(L1)
    assert out.shape == (B, C2 * L2), out.shape
    assert bool(jnp.all(jnp.isfinite(out)))

    # Numerical check against a pure-JAX reference of the PyTorch forward.
    ref = _reference(x, params)
    max_err = float(jnp.max(jnp.abs(out - ref)))
    assert max_err < 2e-2, f"max abs err vs reference: {max_err}"

    print("KERNEL_OK")
</pallas_src>

<mosaic_0001>
module attributes {stable_mosaic.version = 11 : i64} {
  func.func @kernel(%arg0: memref<4x2x4x16xf32, #tpu.memory_space<vmem>>, %arg1: memref<5x32x4xf32, #tpu.memory_space<vmem>>, %arg2: memref<5x16x32xf32, #tpu.memory_space<vmem>>, %arg3: memref<2x32x1xf32, #tpu.memory_space<vmem>>, %arg4: memref<2x16x1xf32, #tpu.memory_space<vmem>>, %arg5: memref<2x16x13xf32, #tpu.memory_space<vmem>>) attributes {dimension_semantics = [], scalar_prefetch = 0 : i64, scratch_operands = 0 : i64, tpu.core_type = #tpu.core_type<tc>} {
    %c0 = arith.constant 0 : index
    %c0_0 = arith.constant 0 : index
    %c0_1 = arith.constant 0 : index
    %c0_2 = arith.constant 0 : index
    %0 = vector.load %arg0[%c0, %c0_0, %c0_1, %c0_2] : memref<4x2x4x16xf32, #tpu.memory_space<vmem>>, vector<4x2x4x16xf32>
    %c0_3 = arith.constant 0 : index
    %c0_4 = arith.constant 0 : index
    %c0_5 = arith.constant 0 : index
    %1 = vector.load %arg1[%c0_3, %c0_4, %c0_5] : memref<5x32x4xf32, #tpu.memory_space<vmem>>, vector<5x32x4xf32>
    %c0_6 = arith.constant 0 : index
    %c0_7 = arith.constant 0 : index
    %c0_8 = arith.constant 0 : index
    %2 = vector.load %arg2[%c0_6, %c0_7, %c0_8] : memref<5x16x32xf32, #tpu.memory_space<vmem>>, vector<5x16x32xf32>
    %c0_9 = arith.constant 0 : index
    %c0_10 = arith.constant 0 : index
    %c0_11 = arith.constant 0 : index
    %3 = vector.load %arg3[%c0_9, %c0_10, %c0_11] : memref<2x32x1xf32, #tpu.memory_space<vmem>>, vector<2x32x1xf32>
    %c0_12 = arith.constant 0 : index
    %c0_13 = arith.constant 0 : index
    %c0_14 = arith.constant 0 : index
    %4 = vector.load %arg4[%c0_12, %c0_13, %c0_14] : memref<2x16x1xf32, #tpu.memory_space<vmem>>, vector<2x16x1xf32>
    %cst = arith.constant 0.000000e+00 : f32
    %5 = vector.broadcast %cst : f32 to vector<2x32x15xf32>
    %6 = vector.extract_strided_slice %0 {offsets = [0, 0, 0, 0], sizes = [1, 2, 4, 15], strides = [1, 1, 1, 1]} : vector<4x2x4x16xf32> to vector<1x2x4x15xf32>
    %7 = vector.shape_cast %6 : vector<1x2x4x15xf32> to vector<2x4x15xf32>
    %8 = vector.extract_strided_slice %1 {offsets = [0, 0, 0], sizes = [1, 32, 4], strides = [1, 1, 1]} : vector<5x32x4xf32> to vector<1x32x4xf32>
    %9 = vector.shape_cast %8 : vector<1x32x4xf32> to vector<32x4xf32>
    %10 = vector.shape_cast %9 : vector<32x4xf32> to vector<1x32x4xf32>
    %11 = vector.broadcast %10 : vector<1x32x4xf32> to vector<2x32x4xf32>
    "tpu.trace_start"() <{level = 10 : i32, message = "boc,bcn->bon"}> : () -> ()
    %cst_15 = arith.constant dense<0.000000e+00> : vector<2x32x15xf32>
    %12 = tpu.matmul %11, %7, %cst_15 {dimension_numbers = #tpu.dot_dimension_numbers<[2], [1], [1], [2], [0, 0, 0, 1, 1, 2], [0], [0]>} : vector<2x32x4xf32>, vector<2x4x15xf32>, vector<2x32x15xf32> -> vector<2x32x15xf32>
    "tpu.trace_stop"() : () -> ()
    %13 = arith.addf %5, %12 : vector<2x32x15xf32>
    %14 = vector.extract_strided_slice %0 {offsets = [1, 0, 0, 0], sizes = [1, 2, 4, 15], strides = [1, 1, 1, 1]} : vector<4x2x4x16xf32> to vector<1x2x4x15xf32>
    %15 = vector.shape_cast %14 : vector<1x2x4x15xf32> to vector<2x4x15xf32>
    %16 = vector.extract_strided_slice %1 {offsets = [1, 0, 0], sizes = [1, 32, 4], strides = [1, 1, 1]} : vector<5x32x4xf32> to vector<1x32x4xf32>
    %17 = vector.shape_cast %16 : vector<1x32x4xf32> to vector<32x4xf32>
    %18 = vector.shape_cast %17 : vector<32x4xf32> to vector<1x32x4xf32>
    %19 = vector.broadcast %18 : vector<1x32x4xf32> to vector<2x32x4xf32>
    "tpu.trace_start"() <{level = 10 : i32, message = "boc,bcn->bon"}> : () -> ()
    %cst_16 = arith.constant dense<0.000000e+00> : vector<2x32x15xf32>
    %20 = tpu.matmul %19, %15, %cst_16 {dimension_numbers = #tpu.dot_dimension_numbers<[2], [1], [1], [2], [0, 0, 0, 1, 1, 2], [0], [0]>} : vector<2x32x4xf32>, vector<2x4x15xf32>, vector<2x32x15xf32> -> vector<2x32x15xf32>
    "tpu.trace_stop"() : () -> ()
    %21 = arith.addf %13, %20 : vector<2x32x15xf32>
    %22 = vector.extract_strided_slice %0 {offsets = [2, 0, 0, 0], sizes = [1, 2, 4, 15], strides = [1, 1, 1, 1]} : vector<4x2x4x16xf32> to vector<1x2x4x15xf32>
    %23 = vector.shape_cast %22 : vector<1x2x4x15xf32> to vector<2x4x15xf32>
    %24 = vector.extract_strided_slice %1 {offsets = [2, 0, 0], sizes = [1, 32, 4], strides = [1, 1, 1]} : vector<5x32x4xf32> to vector<1x32x4xf32>
    %25 = vector.shape_cast %24 : vector<1x32x4xf32> to vector<32x4xf32>
    %26 = vector.shape_cast %25 : vector<32x4xf32> to vector<1x32x4xf32>
    %27 = vector.broadcast %26 : vector<1x32x4xf32> to vector<2x32x4xf32>
    "tpu.trace_start"() <{level = 10 : i32, message = "boc,bcn->bon"}> : () -> ()
    %cst_17 = arith.constant dense<0.000000e+00> : vector<2x32x15xf32>
    %28 = tpu.matmul %27, %23, %cst_17 {dimension_numbers = #tpu.dot_dimension_numbers<[2], [1], [1], [2], [0, 0, 0, 1, 1, 2], [0], [0]>} : vector<2x32x4xf32>, vector<2x4x15xf32>, vector<2x32x15xf32> -> vector<2x32x15xf32>
    "tpu.trace_stop"() : () -> ()
    %29 = arith.addf %21, %28 : vector<2x32x15xf32>
    %30 = vector.extract_strided_slice %0 {offsets = [3, 0, 0, 0], sizes = [1, 2, 4, 15], strides = [1, 1, 1, 1]} : vector<4x2x4x16xf32> to vector<1x2x4x15xf32>
    %31 = vector.shape_cast %30 : vector<1x2x4x15xf32> to vector<2x4x15xf32>
    %32 = vector.extract_strided_slice %1 {offsets = [3, 0, 0], sizes = [1, 32, 4], strides = [1, 1, 1]} : vector<5x32x4xf32> to vector<1x32x4xf32>
    %33 = vector.shape_cast %32 : vector<1x32x4xf32> to vector<32x4xf32>
    %34 = vector.shape_cast %33 : vector<32x4xf32> to vector<1x32x4xf32>
    %35 = vector.broadcast %34 : vector<1x32x4xf32> to vector<2x32x4xf32>
    "tpu.trace_start"() <{level = 10 : i32, message = "boc,bcn->bon"}> : () -> ()
    %cst_18 = arith.constant dense<0.000000e+00> : vector<2x32x15xf32>
    %36 = tpu.matmul %35, %31, %cst_18 {dimension_numbers = #tpu.dot_dimension_numbers<[2], [1], [1], [2], [0, 0, 0, 1, 1, 2], [0], [0]>} : vector<2x32x4xf32>, vector<2x4x15xf32>, vector<2x32x15xf32> -> vector<2x32x15xf32>
    "tpu.trace_stop"() : () -> ()
    %37 = arith.addf %29, %36 : vector<2x32x15xf32>
    %38 = vector.extract_strided_slice %0 {offsets = [0, 0, 0, 1], sizes = [1, 2, 4, 15], strides = [1, 1, 1, 1]} : vector<4x2x4x16xf32> to vector<1x2x4x15xf32>
    %39 = vector.shape_cast %38 : vector<1x2x4x15xf32> to vector<2x4x15xf32>
    %40 = vector.extract_strided_slice %1 {offsets = [4, 0, 0], sizes = [1, 32, 4], strides = [1, 1, 1]} : vector<5x32x4xf32> to vector<1x32x4xf32>
    %41 = vector.shape_cast %40 : vector<1x32x4xf32> to vector<32x4xf32>
    %42 = vector.shape_cast %41 : vector<32x4xf32> to vector<1x32x4xf32>
    %43 = vector.broadcast %42 : vector<1x32x4xf32> to vector<2x32x4xf32>
    "tpu.trace_start"() <{level = 10 : i32, message = "boc,bcn->bon"}> : () -> ()
    %cst_19 = arith.constant dense<0.000000e+00> : vector<2x32x15xf32>
    %44 = tpu.matmul %43, %39, %cst_19 {dimension_numbers = #tpu.dot_dimension_numbers<[2], [1], [1], [2], [0, 0, 0, 1, 1, 2], [0], [0]>} : vector<2x32x4xf32>, vector<2x4x15xf32>, vector<2x32x15xf32> -> vector<2x32x15xf32>
    "tpu.trace_stop"() : () -> ()
    %45 = arith.addf %37, %44 : vector<2x32x15xf32>
    %cst_20 = arith.constant 0.000000e+00 : f32
    %46 = vector.broadcast %cst_20 : f32 to vector<2x32x15xf32>
    %47 = vector.extract_strided_slice %0 {offsets = [2, 0, 0, 0], sizes = [1, 2, 4, 15], strides = [1, 1, 1, 1]} : vector<4x2x4x16xf32> to vector<1x2x4x15xf32>
    %48 = vector.shape_cast %47 : vector<1x2x4x15xf32> to vector<2x4x15xf32>
    %49 = vector.extract_strided_slice %1 {offsets = [0, 0, 0], sizes = [1, 32, 4], strides = [1, 1, 1]} : vector<5x32x4xf32> to vector<1x32x4xf32>
    %50 = vector.shape_cast %49 : vector<1x32x4xf32> to vector<32x4xf32>
    %51 = vector.shape_cast %50 : vector<32x4xf32> to vector<1x32x4xf32>
    %52 = vector.broadcast %51 : vector<1x32x4xf32> to vector<2x32x4xf32>
    "tpu.trace_start"() <{level = 10 : i32, message = "boc,bcn->bon"}> : () -> ()
    %cst_21 = arith.constant dense<0.000000e+00> : vector<2x32x15xf32>
    %53 = tpu.matmul %52, %48, %cst_21 {dimension_numbers = #tpu.dot_dimension_numbers<[2], [1], [1], [2], [0, 0, 0, 1, 1, 2], [0], [0]>} : vector<2x32x4xf32>, vector<2x4x15xf32>, vector<2x32x15xf32> -> vector<2x32x15xf32>
    "tpu.trace_stop"() : () -> ()
    %54 = arith.addf %46, %53 : vector<2x32x15xf32>
    %55 = vector.extract_strided_slice %0 {offsets = [3, 0, 0, 0], sizes = [1, 2, 4, 15], strides = [1, 1, 1, 1]} : vector<4x2x4x16xf32> to vector<1x2x4x15xf32>
    %56 = vector.shape_cast %55 : vector<1x2x4x15xf32> to vector<2x4x15xf32>
    %57 = vector.extract_strided_slice %1 {offsets = [1, 0, 0], sizes = [1, 32, 4], strides = [1, 1, 1]} : vector<5x32x4xf32> to vector<1x32x4xf32>
    %58 = vector.shape_cast %57 : vector<1x32x4xf32> to vector<32x4xf32>
    %59 = vector.shape_cast %58 : vector<32x4xf32> to vector<1x32x4xf32>
    %60 = vector.broadcast %59 : vector<1x32x4xf32> to vector<2x32x4xf32>
    "tpu.trace_start"() <{level = 10 : i32, message = "boc,bcn->bon"}> : () -> ()
    %cst_22 = arith.constant dense<0.000000e+00> : vector<2x32x15xf32>
    %61 = tpu.matmul %60, %56, %cst_22 {dimension_numbers = #tpu.dot_dimension_numbers<[2], [1], [1], [2], [0, 0, 0, 1, 1, 2], [0], [0]>} : vector<2x32x4xf32>, vector<2x4x15xf32>, vector<2x32x15xf32> -> vector<2x32x15xf32>
    "tpu.trace_stop"() : () -> ()
    %62 = arith.addf %54, %61 : vector<2x32x15xf32>
    %63 = vector.extract_strided_slice %0 {offsets = [0, 0, 0, 1], sizes = [1, 2, 4, 15], strides = [1, 1, 1, 1]} : vector<4x2x4x16xf32> to vector<1x2x4x15xf32>
    %64 = vector.shape_cast %63 : vector<1x2x4x15xf32> to vector<2x4x15xf32>
    %65 = vector.extract_strided_slice %1 {offsets = [2, 0, 0], sizes = [1, 32, 4], strides = [1, 1, 1]} : vector<5x32x4xf32> to vector<1x32x4xf32>
    %66 = vector.shape_cast %65 : vector<1x32x4xf32> to vector<32x4xf32>
    %67 = vector.shape_cast %66 : vector<32x4xf32> to vector<1x32x4xf32>
    %68 = vector.broadcast %67 : vector<1x32x4xf32> to vector<2x32x4xf32>
    "tpu.trace_start"() <{level = 10 : i32, message = "boc,bcn->bon"}> : () -> ()
    %cst_23 = arith.constant dense<0.000000e+00> : vector<2x32x15xf32>
    %69 = tpu.matmul %68, %64, %cst_23 {dimension_numbers = #tpu.dot_dimension_numbers<[2], [1], [1], [2], [0, 0, 0, 1, 1, 2], [0], [0]>} : vector<2x32x4xf32>, vector<2x4x15xf32>, vector<2x32x15xf32> -> vector<2x32x15xf32>
    "tpu.trace_stop"() : () -> ()
    %70 = arith.addf %62, %69 : vector<2x32x15xf32>
    %71 = vector.extract_strided_slice %0 {offsets = [1, 0, 0, 1], sizes = [1, 2, 4, 15], strides = [1, 1, 1, 1]} : vector<4x2x4x16xf32> to vector<1x2x4x15xf32>
    %72 = vector.shape_cast %71 : vector<1x2x4x15xf32> to vector<2x4x15xf32>
    %73 = vector.extract_strided_slice %1 {offsets = [3, 0, 0], sizes = [1, 32, 4], strides = [1, 1, 1]} : vector<5x32x4xf32> to vector<1x32x4xf32>
    %74 = vector.shape_cast %73 : vector<1x32x4xf32> to vector<32x4xf32>
    %75 = vector.shape_cast %74 : vector<32x4xf32> to vector<1x32x4xf32>
    %76 = vector.broadcast %75 : vector<1x32x4xf32> to vector<2x32x4xf32>
    "tpu.trace_start"() <{level = 10 : i32, message = "boc,bcn->bon"}> : () -> ()
    %cst_24 = arith.constant dense<0.000000e+00> : vector<2x32x15xf32>
    %77 = tpu.matmul %76, %72, %cst_24 {dimension_numbers = #tpu.dot_dimension_numbers<[2], [1], [1], [2], [0, 0, 0, 1, 1, 2], [0], [0]>} : vector<2x32x4xf32>, vector<2x4x15xf32>, vector<2x32x15xf32> -> vector<2x32x15xf32>
    "tpu.trace_stop"() : () -> ()
    %78 = arith.addf %70, %77 : vector<2x32x15xf32>
    %79 = vector.extract_strided_slice %0 {offsets = [2, 0, 0, 1], sizes = [1, 2, 4, 15], strides = [1, 1, 1, 1]} : vector<4x2x4x16xf32> to vector<1x2x4x15xf32>
    %80 = vector.shape_cast %79 : vector<1x2x4x15xf32> to vector<2x4x15xf32>
    %81 = vector.extract_strided_slice %1 {offsets = [4, 0, 0], sizes = [1, 32, 4], strides = [1, 1, 1]} : vector<5x32x4xf32> to vector<1x32x4xf32>
    %82 = vector.shape_cast %81 : vector<1x32x4xf32> to vector<32x4xf32>
    %83 = vector.shape_cast %82 : vector<32x4xf32> to vector<1x32x4xf32>
    %84 = vector.broadcast %83 : vector<1x32x4xf32> to vector<2x32x4xf32>
    "tpu.trace_start"() <{level = 10 : i32, message = "boc,bcn->bon"}> : () -> ()
    %cst_25 = arith.constant dense<0.000000e+00> : vector<2x32x15xf32>
    %85 = tpu.matmul %84, %80, %cst_25 {dimension_numbers = #tpu.dot_dimension_numbers<[2], [1], [1], [2], [0, 0, 0, 1, 1, 2], [0], [0]>} : vector<2x32x4xf32>, vector<2x4x15xf32>, vector<2x32x15xf32> -> vector<2x32x15xf32>
    "tpu.trace_stop"() : () -> ()
    %86 = arith.addf %78, %85 : vector<2x32x15xf32>
    %cst_26 = arith.constant dense<0.000000e+00> : vector<2x32xf32>
    %87 = vector.multi_reduction <add>, %45, %cst_26 [2] : vector<2x32x15xf32> to vector<2x32xf32>
    %88 = vector.shape_cast %87 : vector<2x32xf32> to vector<2x32x1xf32>
    %cst_27 = arith.constant dense<0.000000e+00> : vector<32x1xf32>
    %89 = vector.multi_reduction <add>, %88, %cst_27 [0] : vector<2x32x1xf32> to vector<32x1xf32>
    %90 = vector.shape_cast %89 : vector<32x1xf32> to vector<1x32x1xf32>
    %cst_28 = arith.constant dense<0.000000e+00> : vector<2x32xf32>
    %91 = vector.multi_reduction <add>, %86, %cst_28 [2] : vector<2x32x15xf32> to vector<2x32xf32>
    %92 = vector.shape_cast %91 : vector<2x32xf32> to vector<2x32x1xf32>
    %cst_29 = arith.constant dense<0.000000e+00> : vector<32x1xf32>
    %93 = vector.multi_reduction <add>, %92, %cst_29 [0] : vector<2x32x1xf32> to vector<32x1xf32>
    %94 = vector.shape_cast %93 : vector<32x1xf32> to vector<1x32x1xf32>
    %95 = arith.addf %90, %94 : vector<1x32x1xf32>
    %96 = arith.mulf %45, %45 : vector<2x32x15xf32>
    %cst_30 = arith.constant dense<0.000000e+00> : vector<2x32xf32>
    %97 = vector.multi_reduction <add>, %96, %cst_30 [2] : vector<2x32x15xf32> to vector<2x32xf32>
    %98 = vector.shape_cast %97 : vector<2x32xf32> to vector<2x32x1xf32>
    %cst_31 = arith.constant dense<0.000000e+00> : vector<32x1xf32>
    %99 = vector.multi_reduction <add>, %98, %cst_31 [0] : vector<2x32x1xf32> to vector<32x1xf32>
    %100 = vector.shape_cast %99 : vector<32x1xf32> to vector<1x32x1xf32>
    %101 = arith.mulf %86, %86 : vector<2x32x15xf32>
    %cst_32 = arith.constant dense<0.000000e+00> : vector<2x32xf32>
    %102 = vector.multi_reduction <add>, %101, %cst_32 [2] : vector<2x32x15xf32> to vector<2x32xf32>
    %103 = vector.shape_cast %102 : vector<2x32xf32> to vector<2x32x1xf32>
    %cst_33 = arith.constant dense<0.000000e+00> : vector<32x1xf32>
    %104 = vector.multi_reduction <add>, %103, %cst_33 [0] : vector<2x32x1xf32> to vector<32x1xf32>
    %105 = vector.shape_cast %104 : vector<32x1xf32> to vector<1x32x1xf32>
    %106 = arith.addf %100, %105 : vector<1x32x1xf32>
    %cst_34 = arith.constant 6.000000e+01 : f32
    %107 = vector.broadcast %cst_34 : f32 to vector<1x32x1xf32>
    %108 = arith.divf %95, %107 : vector<1x32x1xf32>
    %cst_35 = arith.constant 6.000000e+01 : f32
    %109 = vector.broadcast %cst_35 : f32 to vector<1x32x1xf32>
    %110 = arith.divf %106, %109 : vector<1x32x1xf32>
    %111 = arith.mulf %108, %108 : vector<1x32x1xf32>
    %112 = arith.subf %110, %111 : vector<1x32x1xf32>
    %113 = vector.extract_strided_slice %3 {offsets = [0, 0, 0], sizes = [1, 32, 1], strides = [1, 1, 1]} : vector<2x32x1xf32> to vector<1x32x1xf32>
    %114 = vector.shape_cast %113 : vector<1x32x1xf32> to vector<32x1xf32>
    %cst_36 = arith.constant 9.99999974E-6 : f32
    %115 = vector.broadcast %cst_36 : f32 to vector<1x32x1xf32>
    %116 = arith.addf %112, %115 : vector<1x32x1xf32>
    %117 = math.rsqrt %116 : vector<1x32x1xf32>
    %118 = vector.shape_cast %114 : vector<32x1xf32> to vector<1x32x1xf32>
    %119 = arith.mulf %118, %117 : vector<1x32x1xf32>
    %120 = vector.extract_strided_slice %3 {offsets = [1, 0, 0], sizes = [1, 32, 1], strides = [1, 1, 1]} : vector<2x32x1xf32> to vector<1x32x1xf32>
    %121 = vector.shape_cast %120 : vector<1x32x1xf32> to vector<32x1xf32>
    %122 = arith.mulf %108, %119 : vector<1x32x1xf32>
    %123 = vector.shape_cast %121 : vector<32x1xf32> to vector<1x32x1xf32>
    %124 = arith.subf %123, %122 : vector<1x32x1xf32>
    %125 = vector.broadcast %119 : vector<1x32x1xf32> to vector<2x32x15xf32>
    %126 = arith.mulf %45, %125 : vector<2x32x15xf32>
    %127 = vector.broadcast %124 : vector<1x32x1xf32> to vector<2x32x15xf32>
    %128 = arith.addf %126, %127 : vector<2x32x15xf32>
    %cst_37 = arith.constant 0.000000e+00 : f32
    %129 = vector.broadcast %cst_37 : f32 to vector<2x32x15xf32>
    %130 = arith.cmpf ogt, %128, %129 : vector<2x32x15xf32>
    %cst_38 = arith.constant 5.000000e-02 : f32
    %131 = vector.broadcast %cst_38 : f32 to vector<2x32x15xf32>
    %132 = arith.mulf %131, %128 : vector<2x32x15xf32>
    %133 = arith.select %130, %128, %132 : vector<2x32x15xi1>, vector<2x32x15xf32>
    %134 = vector.broadcast %119 : vector<1x32x1xf32> to vector<2x32x15xf32>
    %135 = arith.mulf %86, %134 : vector<2x32x15xf32>
    %136 = vector.broadcast %124 : vector<1x32x1xf32> to vector<2x32x15xf32>
    %137 = arith.addf %135, %136 : vector<2x32x15xf32>
    %cst_39 = arith.constant 0.000000e+00 : f32
    %138 = vector.broadcast %cst_39 : f32 to vector<2x32x15xf32>
    %139 = arith.cmpf ogt, %137, %138 : vector<2x32x15xf32>
    %cst_40 = arith.constant 5.000000e-02 : f32
    %140 = vector.broadcast %cst_40 : f32 to vector<2x32x15xf32>
    %141 = arith.mulf %140, %137 : vector<2x32x15xf32>
    %142 = arith.select %139, %137, %141 : vector<2x32x15xi1>, vector<2x32x15xf32>
    %cst_41 = arith.constant 0.000000e+00 : f32
    %143 = vector.broadcast %cst_41 : f32 to vector<2x16x13xf32>
    %144 = vector.extract_strided_slice %2 {offsets = [0, 0, 0], sizes = [1, 16, 32], strides = [1, 1, 1]} : vector<5x16x32xf32> to vector<1x16x32xf32>
    %145 = vector.shape_cast %144 : vector<1x16x32xf32> to vector<16x32xf32>
    %146 = vector.shape_cast %145 : vector<16x32xf32> to vector<1x16x32xf32>
    %147 = vector.broadcast %146 : vector<1x16x32xf32> to vector<2x16x32xf32>
    %148 = vector.extract_strided_slice %133 {offsets = [0, 0, 0], sizes = [2, 32, 13], strides = [1, 1, 1]} : vector<2x32x15xf32> to vector<2x32x13xf32>
    "tpu.trace_start"() <{level = 10 : i32, message = "boc,bcn->bon"}> : () -> ()
    %cst_42 = arith.constant dense<0.000000e+00> : vector<2x16x13xf32>
    %149 = tpu.matmul %147, %148, %cst_42 {dimension_numbers = #tpu.dot_dimension_numbers<[2], [1], [1], [2], [0, 0, 0, 1, 1, 2], [0], [0]>} : vector<2x16x32xf32>, vector<2x32x13xf32>, vector<2x16x13xf32> -> vector<2x16x13xf32>
    "tpu.trace_stop"() : () -> ()
    %150 = arith.addf %143, %149 : vector<2x16x13xf32>
    %151 = vector.extract_strided_slice %2 {offsets = [1, 0, 0], sizes = [1, 16, 32], strides = [1, 1, 1]} : vector<5x16x32xf32> to vector<1x16x32xf32>
    %152 = vector.shape_cast %151 : vector<1x16x32xf32> to vector<16x32xf32>
    %153 = vector.shape_cast %152 : vector<16x32xf32> to vector<1x16x32xf32>
    %154 = vector.broadcast %153 : vector<1x16x32xf32> to vector<2x16x32xf32>
    %155 = vector.extract_strided_slice %142 {offsets = [0, 0, 0], sizes = [2, 32, 13], strides = [1, 1, 1]} : vector<2x32x15xf32> to vector<2x32x13xf32>
    "tpu.trace_start"() <{level = 10 : i32, message = "boc,bcn->bon"}> : () -> ()
    %cst_43 = arith.constant dense<0.000000e+00> : vector<2x16x13xf32>
    %156 = tpu.matmul %154, %155, %cst_43 {dimension_numbers = #tpu.dot_dimension_numbers<[2], [1], [1], [2], [0, 0, 0, 1, 1, 2], [0], [0]>} : vector<2x16x32xf32>, vector<2x32x13xf32>, vector<2x16x13xf32> -> vector<2x16x13xf32>
    "tpu.trace_stop"() : () -> ()
    %157 = arith.addf %150, %156 : vector<2x16x13xf32>
    %158 = vector.extract_strided_slice %2 {offsets = [2, 0, 0], sizes = [1, 16, 32], strides = [1, 1, 1]} : vector<5x16x32xf32> to vector<1x16x32xf32>
    %159 = vector.shape_cast %158 : vector<1x16x32xf32> to vector<16x32xf32>
    %160 = vector.shape_cast %159 : vector<16x32xf32> to vector<1x16x32xf32>
    %161 = vector.broadcast %160 : vector<1x16x32xf32> to vector<2x16x32xf32>
    %162 = vector.extract_strided_slice %133 {offsets = [0, 0, 1], sizes = [2, 32, 13], strides = [1, 1, 1]} : vector<2x32x15xf32> to vector<2x32x13xf32>
    "tpu.trace_start"() <{level = 10 : i32, message = "boc,bcn->bon"}> : () -> ()
    %cst_44 = arith.constant dense<0.000000e+00> : vector<2x16x13xf32>
    %163 = tpu.matmul %161, %162, %cst_44 {dimension_numbers = #tpu.dot_dimension_numbers<[2], [1], [1], [2], [0, 0, 0, 1, 1, 2], [0], [0]>} : vector<2x16x32xf32>, vector<2x32x13xf32>, vector<2x16x13xf32> -> vector<2x16x13xf32>
    "tpu.trace_stop"() : () -> ()
    %164 = arith.addf %157, %163 : vector<2x16x13xf32>
    %165 = vector.extract_strided_slice %2 {offsets = [3, 0, 0], sizes = [1, 16, 32], strides = [1, 1, 1]} : vector<5x16x32xf32> to vector<1x16x32xf32>
    %166 = vector.shape_cast %165 : vector<1x16x32xf32> to vector<16x32xf32>
    %167 = vector.shape_cast %166 : vector<16x32xf32> to vector<1x16x32xf32>
    %168 = vector.broadcast %167 : vector<1x16x32xf32> to vector<2x16x32xf32>
    %169 = vector.extract_strided_slice %142 {offsets = [0, 0, 1], sizes = [2, 32, 13], strides = [1, 1, 1]} : vector<2x32x15xf32> to vector<2x32x13xf32>
    "tpu.trace_start"() <{level = 10 : i32, message = "boc,bcn->bon"}> : () -> ()
    %cst_45 = arith.constant dense<0.000000e+00> : vector<2x16x13xf32>
    %170 = tpu.matmul %168, %169, %cst_45 {dimension_numbers = #tpu.dot_dimension_numbers<[2], [1], [1], [2], [0, 0, 0, 1, 1, 2], [0], [0]>} : vector<2x16x32xf32>, vector<2x32x13xf32>, vector<2x16x13xf32> -> vector<2x16x13xf32>
    "tpu.trace_stop"() : () -> ()
    %171 = arith.addf %164, %170 : vector<2x16x13xf32>
    %172 = vector.extract_strided_slice %2 {offsets = [4, 0, 0], sizes = [1, 16, 32], strides = [1, 1, 1]} : vector<5x16x32xf32> to vector<1x16x32xf32>
    %173 = vector.shape_cast %172 : vector<1x16x32xf32> to vector<16x32xf32>
    %174 = vector.shape_cast %173 : vector<16x32xf32> to vector<1x16x32xf32>
    %175 = vector.broadcast %174 : vector<1x16x32xf32> to vector<2x16x32xf32>
    %176 = vector.extract_strided_slice %133 {offsets = [0, 0, 2], sizes = [2, 32, 13], strides = [1, 1, 1]} : vector<2x32x15xf32> to vector<2x32x13xf32>
    "tpu.trace_start"() <{level = 10 : i32, message = "boc,bcn->bon"}> : () -> ()
    %cst_46 = arith.constant dense<0.000000e+00> : vector<2x16x13xf32>
    %177 = tpu.matmul %175, %176, %cst_46 {dimension_numbers = #tpu.dot_dimension_numbers<[2], [1], [1], [2], [0, 0, 0, 1, 1, 2], [0], [0]>} : vector<2x16x32xf32>, vector<2x32x13xf32>, vector<2x16x13xf32> -> vector<2x16x13xf32>
    "tpu.trace_stop"() : () -> ()
    %178 = arith.addf %171, %177 : vector<2x16x13xf32>
    %cst_47 = arith.constant dense<0.000000e+00> : vector<2x16xf32>
    %179 = vector.multi_reduction <add>, %178, %cst_47 [2] : vector<2x16x13xf32> to vector<2x16xf32>
    %180 = vector.shape_cast %179 : vector<2x16xf32> to vector<2x16x1xf32>
    %cst_48 = arith.constant dense<0.000000e+00> : vector<16x1xf32>
    %181 = vector.multi_reduction <add>, %180, %cst_48 [0] : vector<2x16x1xf32> to vector<16x1xf32>
    %182 = vector.shape_cast %181 : vector<16x1xf32> to vector<1x16x1xf32>
    %183 = arith.mulf %178, %178 : vector<2x16x13xf32>
    %cst_49 = arith.constant dense<0.000000e+00> : vector<2x16xf32>
    %184 = vector.multi_reduction <add>, %183, %cst_49 [2] : vector<2x16x13xf32> to vector<2x16xf32>
    %185 = vector.shape_cast %184 : vector<2x16xf32> to vector<2x16x1xf32>
    %cst_50 = arith.constant dense<0.000000e+00> : vector<16x1xf32>
    %186 = vector.multi_reduction <add>, %185, %cst_50 [0] : vector<2x16x1xf32> to vector<16x1xf32>
    %187 = vector.shape_cast %186 : vector<16x1xf32> to vector<1x16x1xf32>
    %cst_51 = arith.constant 2.600000e+01 : f32
    %188 = vector.broadcast %cst_51 : f32 to vector<1x16x1xf32>
    %189 = arith.divf %182, %188 : vector<1x16x1xf32>
    %cst_52 = arith.constant 2.600000e+01 : f32
    %190 = vector.broadcast %cst_52 : f32 to vector<1x16x1xf32>
    %191 = arith.divf %187, %190 : vector<1x16x1xf32>
    %192 = arith.mulf %189, %189 : vector<1x16x1xf32>
    %193 = arith.subf %191, %192 : vector<1x16x1xf32>
    %194 = vector.extract_strided_slice %4 {offsets = [0, 0, 0], sizes = [1, 16, 1], strides = [1, 1, 1]} : vector<2x16x1xf32> to vector<1x16x1xf32>
    %195 = vector.shape_cast %194 : vector<1x16x1xf32> to vector<16x1xf32>
    %cst_53 = arith.constant 9.99999974E-6 : f32
    %196 = vector.broadcast %cst_53 : f32 to vector<1x16x1xf32>
    %197 = arith.addf %193, %196 : vector<1x16x1xf32>
    %198 = math.rsqrt %197 : vector<1x16x1xf32>
    %199 = vector.shape_cast %195 : vector<16x1xf32> to vector<1x16x1xf32>
    %200 = arith.mulf %199, %198 : vector<1x16x1xf32>
    %201 = vector.extract_strided_slice %4 {offsets = [1, 0, 0], sizes = [1, 16, 1], strides = [1, 1, 1]} : vector<2x16x1xf32> to vector<1x16x1xf32>
    %202 = vector.shape_cast %201 : vector<1x16x1xf32> to vector<16x1xf32>
    %203 = arith.mulf %189, %200 : vector<1x16x1xf32>
    %204 = vector.shape_cast %202 : vector<16x1xf32> to vector<1x16x1xf32>
    %205 = arith.subf %204, %203 : vector<1x16x1xf32>
    %206 = vector.broadcast %200 : vector<1x16x1xf32> to vector<2x16x13xf32>
    %207 = arith.mulf %178, %206 : vector<2x16x13xf32>
    %208 = vector.broadcast %205 : vector<1x16x1xf32> to vector<2x16x13xf32>
    %209 = arith.addf %207, %208 : vector<2x16x13xf32>
    %cst_54 = arith.constant 0.000000e+00 : f32
    %210 = vector.broadcast %cst_54 : f32 to vector<2x16x13xf32>
    %211 = arith.cmpf ogt, %209, %210 : vector<2x16x13xf32>
    %cst_55 = arith.constant 5.000000e-02 : f32
    %212 = vector.broadcast %cst_55 : f32 to vector<2x16x13xf32>
    %213 = arith.mulf %212, %209 : vector<2x16x13xf32>
    %214 = arith.select %211, %209, %213 : vector<2x16x13xi1>, vector<2x16x13xf32>
    %c0_56 = arith.constant 0 : index
    %c0_57 = arith.constant 0 : index
    %c0_58 = arith.constant 0 : index
    %215 = vector.load %arg5[%c0_56, %c0_57, %c0_58] : memref<2x16x13xf32, #tpu.memory_space<vmem>>, vector<2x16x13xf32>
    tpu.vector_store %arg5[%c0_56, %c0_57, %c0_58], %214 {strides = array<i32>} : memref<2x16x13xf32, #tpu.memory_space<vmem>>, vector<2x16x13xf32>,
    return
  }
}

</mosaic_0001>

<llo_original>
// kernel: drgn_encoder.1
$region0: #{drgn_encoder.1}
  #allocation0 [shape = 'u32[]', space=smem, size = 0x4, offset = 0x4, fixed_abs, tag = 'smem constant byte address 0x4 - core index']
  #allocation1 [shape = 'u32[144,128]{1,0:T(1,128)}', space=vmem, size = 0x12000, scoped, tag = 'internal scratch']
  %s0 = inlined_call_operand.vmem [shape: f32[4,2,4,16], index: 0, kind: input, shape index: {}]
  %s1 = inlined_call_operand.vmem [shape: f32[5,32,4], index: 1, kind: input, shape index: {}]
  %s2 = inlined_call_operand.vmem [shape: f32[5,16,32], index: 2, kind: input, shape index: {}]
  %s3 = inlined_call_operand.vmem [shape: f32[2,32,1], index: 3, kind: input, shape index: {}]
  %s4 = inlined_call_operand.vmem [shape: f32[2,16,1], index: 4, kind: input, shape index: {}]
  %s5 = inlined_call_operand.vmem [shape: f32[2,16,13], index: 5, kind: output, shape index: {}]
  %s6 = sld [smem:[#allocation0]]
  $region30: #{drgn_encoder.1} parent=0
    _
  %s8 = ssub.s32 1, %s6
  %s9 = scalar_select 0, %s8, %s6
  // Predicated region
  $region2: #{drgn_encoder.1} parent=0 // pred_check
    _
  $region3: #{drgn_encoder.1} parent=0 // pred_check_branch
    %11 = sbr.rel (0) target = $region5
  $region4: #{drgn_encoder.1} parent=0 // pred_region
    _
  $region5: #{drgn_encoder.1} parent=0 // pred_fallthru
    _
  // Predicated region
  $region6: #{drgn_encoder.1} parent=0 // pred_check
    _
  $region7: #{drgn_encoder.1} parent=0 // pred_check_branch
    %13 = sbr.rel (0) target = $region9
  $region8: #{drgn_encoder.1} parent=0 // pred_region
    _
  $region9: #{drgn_encoder.1} parent=0 // pred_fallthru
    _
  // Predicated region
  $region10: #{drgn_encoder.1} parent=0 // pred_check
    _
  $region11: #{drgn_encoder.1} parent=0 // pred_check_branch
    %15 = sbr.rel (0) target = $region13
  $region12: #{drgn_encoder.1} parent=0 // pred_region
    _
  $region13: #{drgn_encoder.1} parent=0 // pred_fallthru
    _
  // Predicated region
  $region14: #{drgn_encoder.1} parent=0 // pred_check
    _
  $region15: #{drgn_encoder.1} parent=0 // pred_check_branch
    %17 = sbr.rel (0) target = $region17
  $region16: #{drgn_encoder.1} parent=0 // pred_region
    _
  $region17: #{drgn_encoder.1} parent=0 // pred_fallthru
    _
  // Predicated region
  $region18: #{drgn_encoder.1} parent=0 // pred_check
    _
  $region19: #{drgn_encoder.1} parent=0 // pred_check_branch
    %19 = sbr.rel (0) target = $region21
  $region20: #{drgn_encoder.1} parent=0 // pred_region
    _
  $region21: #{drgn_encoder.1} parent=0 // pred_fallthru
    _
  %v20 = vld [vmem:[%s0] sm:$0xf]
  %v21 = vld [vmem:[%s0 + $0x4] sm:$0xf]
  %v22 = vld [vmem:[%s0 + $0x8] sm:$0xf]
  %v23 = vld [vmem:[%s0 + $0xc] sm:$0xf]
  %v24 = vld [vmem:[%s0 + $0x10] sm:$0xf]
  %v25 = vld [vmem:[%s0 + $0x14] sm:$0xf]
  %v26 = vld [vmem:[%s0 + $0x18] sm:$0xf]
  %v27 = vld [vmem:[%s0 + $0x1c] sm:$0xf]
  %v28 = vld [vmem:[%s1] sm:$0xff]
  %v29 = vld [vmem:[%s1 + $0x8] sm:$0xff]
  %v30 = vld [vmem:[%s1 + $0x10] sm:$0xff]
  %v31 = vld [vmem:[%s1 + $0x18] sm:$0xff]
  %v32 = vld [vmem:[%s1 + $0x20] sm:$0xff]
  %v33 = vld [vmem:[%s1 + $0x28] sm:$0xff]
  %v34 = vld [vmem:[%s1 + $0x30] sm:$0xff]
  %v35 = vld [vmem:[%s1 + $0x38] sm:$0xff]
  %v36 = vld [vmem:[%s1 + $0x40] sm:$0xff]
  %v37 = vld [vmem:[%s1 + $0x48] sm:$0xff]
  %v38 = vld [vmem:[%s1 + $0x50] sm:$0xff]
  %v39 = vld [vmem:[%s1 + $0x58] sm:$0xff]
  %v40 = vld [vmem:[%s1 + $0x60] sm:$0xff]
  %v41 = vld [vmem:[%s1 + $0x68] sm:$0xff]
  %v42 = vld [vmem:[%s1 + $0x70] sm:$0xff]
  %v43 = vld [vmem:[%s1 + $0x78] sm:$0xff]
  %v44 = vld [vmem:[%s1 + $0x80] sm:$0xff]
  %v45 = vld [vmem:[%s1 + $0x88] sm:$0xff]
  %v46 = vld [vmem:[%s1 + $0x90] sm:$0xff]
  %v47 = vld [vmem:[%s1 + $0x98] sm:$0xff]
  %v48 = vld [vmem:[%s2] sm:$0xff]
  %v49 = vld [vmem:[%s2 + $0x8] sm:$0xff]
  %v50 = vld [vmem:[%s2 + $0x10] sm:$0xff]
  %v51 = vld [vmem:[%s2 + $0x18] sm:$0xff]
  %v52 = vld [vmem:[%s2 + $0x20] sm:$0xff]
  %v53 = vld [vmem:[%s2 + $0x28] sm:$0xff]
  %v54 = vld [vmem:[%s2 + $0x30] sm:$0xff]
  %v55 = vld [vmem:[%s2 + $0x38] sm:$0xff]
  %v56 = vld [vmem:[%s2 + $0x40] sm:$0xff]
  %v57 = vld [vmem:[%s2 + $0x48] sm:$0xff]
  %v58 = vld [vmem:[%s3] sm:$0xff]
  %v59 = vld [vmem:[%s3 + $0x8] sm:$0xff]
  %v60 = vld [vmem:[%s3 + $0x10] sm:$0xff]
  %v61 = vld [vmem:[%s3 + $0x18] sm:$0xff]
  %v62 = vld [vmem:[%s3 + $0x20] sm:$0xff]
  %v63 = vld [vmem:[%s3 + $0x28] sm:$0xff]
  %v64 = vld [vmem:[%s3 + $0x30] sm:$0xff]
  %v65 = vld [vmem:[%s3 + $0x38] sm:$0xff]
  %v66 = vld [vmem:[%s4] sm:$0xff]
  %v67 = vld [vmem:[%s4 + $0x8] sm:$0xff]
  %v68 = vld [vmem:[%s4 + $0x10] sm:$0xff]
  %v69 = vld [vmem:[%s4 + $0x18] sm:$0xff]
  %vm70 = vcmask 31744
  %v72 = vsel %vm70, %v32, 0
  %v75 = vsel %vm70, %v33, 0
  %v78 = vsel %vm70, %v34, 0
  %v81 = vsel %vm70, %v35, 0
  %vm83 = vcmask 1043456
  %v85 = vsel %vm83, %v22, 0
  %87 = vmatprep.subr.mxu0 0.0
  %88 = vmatpush1.msra.mxu0 0.0
  %89 = vmatprep.subr.mxu0 0.0
  %90 = vmatpush1.msra.mxu0 0.0
  %91 = vmatprep.subr.mxu0 0.0
  %92 = vmatpush1.msra.mxu0 0.0
  %93 = vmatprep.subr.mxu0 0.0
  %94 = vmatpush1.msra.mxu0 0.0
  %95 = vmatprep.subr.mxu0 0.0
  %96 = vmatpush1.msra.mxu0 0.0
  %97 = vmatprep.subr.mxu0 0.0
  %98 = vmatpush1.msra.mxu0 0.0
  %99 = vmatprep.subr.mxu0 0.0
  %100 = vmatpush1.msra.mxu0 0.0
  %101 = vmatprep.subr.mxu0 0.0
  %102 = vmatpush1.msra.mxu0 0.0
  %103 = vmatprep.subr.mxu0 0.0
  %104 = vmatpush1.msra.mxu0 0.0
  %105 = vmatprep.subr.mxu0 0.0
  %106 = vmatpush1.msra.mxu0 0.0
  %107 = vmatprep.subr.mxu0 0.0
  %108 = vmatpush1.msra.mxu0 0.0
  %109 = vmatprep.subr.mxu0 0.0
  %110 = vmatpush1.msra.mxu0 0.0
  %111 = vmatprep.subr.mxu0 0.0
  %112 = vmatpush1.msra.mxu0 0.0
  %113 = vmatprep.subr.mxu0 0.0
  %114 = vmatpush1.msra.mxu0 0.0
  %115 = vmatprep.subr.mxu0 0.0
  %116 = vmatpush1.msra.mxu0 0.0
  %117 = vmatprep.subr.mxu0 0.0
  %118 = vmatpush1.msra.mxu0 %v85
  %119 = vmatprep.subr.mxu0 0.0
  %120 = vmatpush2.msra.mxu0 0.0
  %121 = vmatprep.subr.mxu0 0.0
  %122 = vmatpush2.msra.mxu0 0.0
  %123 = vmatprep.subr.mxu0 0.0
  %124 = vmatpush2.msra.mxu0 0.0
  %125 = vmatprep.subr.mxu0 0.0
  %126 = vmatpush2.msra.mxu0 0.0
  %127 = vmatprep.subr.mxu0 0.0
  %128 = vmatpush2.msra.mxu0 0.0
  %129 = vmatprep.subr.mxu0 0.0
  %130 = vmatpush2.msra.mxu0 0.0
  %131 = vmatprep.subr.mxu0 0.0
  %132 = vmatpush2.msra.mxu0 0.0
  %133 = vmatprep.subr.mxu0 0.0
  %134 = vmatpush2.msra.mxu0 0.0
  %135 = vmatprep.subr.mxu0 0.0
  %136 = vmatpush2.msra.mxu0 0.0
  %137 = vmatprep.subr.mxu0 0.0
  %138 = vmatpush2.msra.mxu0 0.0
  %139 = vmatprep.subr.mxu0 0.0
  %140 = vmatpush2.msra.mxu0 0.0
  %141 = vmatprep.subr.mxu0 0.0
  %142 = vmatpush2.msra.mxu0 0.0
  %143 = vmatprep.subr.mxu0 0.0
  %144 = vmatpush2.msra.mxu0 0.0
  %145 = vmatprep.subr.mxu0 0.0
  %146 = vmatpush2.msra.mxu0 0.0
  %147 = vmatprep.subr.mxu0 0.0
  %148 = vmatpush2.msra.mxu0 0.0
  %149 = vmatprep.subr.mxu0 0.0
  %150 = vmatpush2.msra.mxu0 0.0
  %151 = vmatprep.mubr.f32.mxu0 0.0
  %152 = vmatmul.mubr.f32.gmra.mxu0 %v72
  %v153 = vpop.f32.mrf.mxu0
  %v154 = vadd.f32 0.0, %v153
  %v155 = vpop.f32.mrf.mxu0
  %156 = vmatprep.mubr.f32.mxu0 0.0
  %157 = vmatmul.mubr.f32.gmra.mxu0 %v75
  %v158 = vpop.f32.mrf.mxu0
  %v159 = vadd.f32 0.0, %v158
  %v160 = vpop.f32.mrf.mxu0
  %161 = vmatprep.mubr.f32.mxu0 0.0
  %162 = vmatmul.mubr.f32.gmra.mxu0 %v78
  %v163 = vpop.f32.mrf.mxu0
  %v164 = vadd.f32 0.0, %v163
  %v165 = vpop.f32.mrf.mxu0
  %166 = vmatprep.mubr.f32.mxu0 0.0
  %167 = vmatmul.mubr.f32.gmra.mxu0 %v81
  %v168 = vpop.f32.mrf.mxu0
  %v169 = vadd.f32 0.0, %v168
  %v170 = vpop.f32.mrf.mxu0
  %171 = vdwg.mxu0
  %v173 = vsel %vm83, %v23, 0
  %175 = vmatprep.subr.mxu0 0.0
  %176 = vmatpush1.msra.mxu0 0.0
  %177 = vmatprep.subr.mxu0 0.0
  %178 = vmatpush1.msra.mxu0 0.0
  %179 = vmatprep.subr.mxu0 0.0
  %180 = vmatpush1.msra.mxu0 0.0
  %181 = vmatprep.subr.mxu0 0.0
  %182 = vmatpush1.msra.mxu0 0.0
  %183 = vmatprep.subr.mxu0 0.0
  %184 = vmatpush1.msra.mxu0 0.0
  %185 = vmatprep.subr.mxu0 0.0
  %186 = vmatpush1.msra.mxu0 0.0
  %187 = vmatprep.subr.mxu0 0.0
  %188 = vmatpush1.msra.mxu0 0.0
  %189 = vmatprep.subr.mxu0 0.0
  %190 = vmatpush1.msra.mxu0 0.0
  %191 = vmatprep.subr.mxu0 0.0
  %192 = vmatpush1.msra.mxu0 0.0
  %193 = vmatprep.subr.mxu0 0.0
  %194 = vmatpush1.msra.mxu0 0.0
  %195 = vmatprep.subr.mxu0 0.0
  %196 = vmatpush1.msra.mxu0 0.0
  %197 = vmatprep.subr.mxu0 0.0
  %198 = vmatpush1.msra.mxu0 0.0
  %199 = vmatprep.subr.mxu0 0.0
  %200 = vmatpush1.msra.mxu0 0.0
  %201 = vmatprep.subr.mxu0 0.0
  %202 = vmatpush1.msra.mxu0 0.0
  %203 = vmatprep.subr.mxu0 0.0
  %204 = vmatpush1.msra.mxu0 0.0
  %205 = vmatprep.subr.mxu0 0.0
  %206 = vmatpush1.msra.mxu0 %v173
  %207 = vmatprep.subr.mxu0 0.0
  %208 = vmatpush2.msra.mxu0 0.0
  %209 = vmatprep.subr.mxu0 0.0
  %210 = vmatpush2.msra.mxu0 0.0
  %211 = vmatprep.subr.mxu0 0.0
  %212 = vmatpush2.msra.mxu0 0.0
  %213 = vmatprep.subr.mxu0 0.0
  %214 = vmatpush2.msra.mxu0 0.0
  %215 = vmatprep.subr.mxu0 0.0
  %216 = vmatpush2.msra.mxu0 0.0
  %217 = vmatprep.subr.mxu0 0.0
  %218 = vmatpush2.msra.mxu0 0.0
  %219 = vmatprep.subr.mxu0 0.0
  %220 = vmatpush2.msra.mxu0 0.0
  %221 = vmatprep.subr.mxu0 0.0
  %222 = vmatpush2.msra.mxu0 0.0
  %223 = vmatprep.subr.mxu0 0.0
  %224 = vmatpush2.msra.mxu0 0.0
  %225 = vmatprep.subr.mxu0 0.0
  %226 = vmatpush2.msra.mxu0 0.0
  %227 = vmatprep.subr.mxu0 0.0
  %228 = vmatpush2.msra.mxu0 0.0
  %229 = vmatprep.subr.mxu0 0.0
  %230 = vmatpush2.msra.mxu0 0.0
  %231 = vmatprep.subr.mxu0 0.0
  %232 = vmatpush2.msra.mxu0 0.0
  %233 = vmatprep.subr.mxu0 0.0
  %234 = vmatpush2.msra.mxu0 0.0
  %235 = vmatprep.subr.mxu0 0.0
  %236 = vmatpush2.msra.mxu0 0.0
  %237 = vmatprep.subr.mxu0 0.0
  %238 = vmatpush2.msra.mxu0 0.0
  %239 = vmatprep.mubr.f32.mxu0 0.0
  %240 = vmatmul.mubr.f32.gmra.mxu0 %v72
  %v241 = vpop.f32.mrf.mxu0
  %v242 = vadd.f32 0.0, %v241
  %v243 = vpop.f32.mrf.mxu0
  %244 = vmatprep.mubr.f32.mxu0 0.0
  %245 = vmatmul.mubr.f32.gmra.mxu0 %v75
  %v246 = vpop.f32.mrf.mxu0
  %v247 = vadd.f32 0.0, %v246
  %v248 = vpop.f32.mrf.mxu0
  %249 = vmatprep.mubr.f32.mxu0 0.0
  %250 = vmatmul.mubr.f32.gmra.mxu0 %v78
  %v251 = vpop.f32.mrf.mxu0
  %v252 = vadd.f32 0.0, %v251
  %v253 = vpop.f32.mrf.mxu0
  %254 = vmatprep.mubr.f32.mxu0 0.0
  %255 = vmatmul.mubr.f32.gmra.mxu0 %v81
  %v256 = vpop.f32.mrf.mxu0
  %v257 = vadd.f32 0.0, %v256
  %v258 = vpop.f32.mrf.mxu0
  %259 = vdwg.mxu0
  %v261 = vsel %vm70, %v28, 0
  %v264 = vsel %vm70, %v29, 0
  %v267 = vsel %vm70, %v30, 0
  %v270 = vsel %vm70, %v31, 0
  %v273 = vsel %vm83, %v20, 0
  %275 = vmatprep.subr.mxu0 0.0
  %276 = vmatpush1.msra.mxu0 0.0
  %277 = vmatprep.subr.mxu0 0.0
  %278 = vmatpush1.msra.mxu0 0.0
  %279 = vmatprep.subr.mxu0 0.0
  %280 = vmatpush1.msra.mxu0 0.0
  %281 = vmatprep.subr.mxu0 0.0
  %282 = vmatpush1.msra.mxu0 0.0
  %283 = vmatprep.subr.mxu0 0.0
  %284 = vmatpush1.msra.mxu0 0.0
  %285 = vmatprep.subr.mxu0 0.0
  %286 = vmatpush1.msra.mxu0 0.0
  %287 = vmatprep.subr.mxu0 0.0
  %288 = vmatpush1.msra.mxu0 0.0
  %289 = vmatprep.subr.mxu0 0.0
  %290 = vmatpush1.msra.mxu0 0.0
  %291 = vmatprep.subr.mxu0 0.0
  %292 = vmatpush1.msra.mxu0 0.0
  %293 = vmatprep.subr.mxu0 0.0
  %294 = vmatpush1.msra.mxu0 0.0
  %295 = vmatprep.subr.mxu0 0.0
  %296 = vmatpush1.msra.mxu0 0.0
  %297 = vmatprep.subr.mxu0 0.0
  %298 = vmatpush1.msra.mxu0 0.0
  %299 = vmatprep.subr.mxu0 0.0
  %300 = vmatpush1.msra.mxu0 0.0
  %301 = vmatprep.subr.mxu0 0.0
  %302 = vmatpush1.msra.mxu0 0.0
  %303 = vmatprep.subr.mxu0 0.0
  %304 = vmatpush1.msra.mxu0 0.0
  %305 = vmatprep.subr.mxu0 0.0
  %306 = vmatpush1.msra.mxu0 %v273
  %307 = vmatprep.subr.mxu0 0.0
  %308 = vmatpush2.msra.mxu0 0.0
  %309 = vmatprep.subr.mxu0 0.0
  %310 = vmatpush2.msra.mxu0 0.0
  %311 = vmatprep.subr.mxu0 0.0
  %312 = vmatpush2.msra.mxu0 0.0
  %313 = vmatprep.subr.mxu0 0.0
  %314 = vmatpush2.msra.mxu0 0.0
  %315 = vmatprep.subr.mxu0 0.0
  %316 = vmatpush2.msra.mxu0 0.0
  %317 = vmatprep.subr.mxu0 0.0
  %318 = vmatpush2.msra.mxu0 0.0
  %319 = vmatprep.subr.mxu0 0.0
  %320 = vmatpush2.msra.mxu0 0.0
  %321 = vmatprep.subr.mxu0 0.0
  %322 = vmatpush2.msra.mxu0 0.0
  %323 = vmatprep.subr.mxu0 0.0
  %324 = vmatpush2.msra.mxu0 0.0
  %325 = vmatprep.subr.mxu0 0.0
  %326 = vmatpush2.msra.mxu0 0.0
  %327 = vmatprep.subr.mxu0 0.0
  %328 = vmatpush2.msra.mxu0 0.0
  %329 = vmatprep.subr.mxu0 0.0
  %330 = vmatpush2.msra.mxu0 0.0
  %331 = vmatprep.subr.mxu0 0.0
  %332 = vmatpush2.msra.mxu0 0.0
  %333 = vmatprep.subr.mxu0 0.0
  %334 = vmatpush2.msra.mxu0 0.0
  %335 = vmatprep.subr.mxu0 0.0
  %336 = vmatpush2.msra.mxu0 0.0
  %337 = vmatprep.subr.mxu0 0.0
  %338 = vmatpush2.msra.mxu0 0.0
  %339 = vmatprep.mubr.f32.mxu0 0.0
  %340 = vmatmul.mubr.f32.gmra.mxu0 %v261
  %v341 = vpop.f32.mrf.mxu0
  %v342 = vadd.f32 %v154, %v341
  %v343 = vpop.f32.mrf.mxu0
  %344 = vmatprep.mubr.f32.mxu0 0.0
  %345 = vmatmul.mubr.f32.gmra.mxu0 %v264
  %v346 = vpop.f32.mrf.mxu0
  %v347 = vadd.f32 %v159, %v346
  %v348 = vpop.f32.mrf.mxu0
  %349 = vmatprep.mubr.f32.mxu0 0.0
  %350 = vmatmul.mubr.f32.gmra.mxu0 %v267
  %v351 = vpop.f32.mrf.mxu0
  %v352 = vadd.f32 %v164, %v351
  %v353 = vpop.f32.mrf.mxu0
  %354 = vmatprep.mubr.f32.mxu0 0.0
  %355 = vmatmul.mubr.f32.gmra.mxu0 %v270
  %v356 = vpop.f32.mrf.mxu0
  %v357 = vadd.f32 %v169, %v356
  %v358 = vpop.f32.mrf.mxu0
  %359 = vdwg.mxu0
  %v361 = vsel %vm83, %v21, 0
  %363 = vmatprep.subr.mxu0 0.0
  %364 = vmatpush1.msra.mxu0 0.0
  %365 = vmatprep.subr.mxu0 0.0
  %366 = vmatpush1.msra.mxu0 0.0
  %367 = vmatprep.subr.mxu0 0.0
  %368 = vmatpush1.msra.mxu0 0.0
  %369 = vmatprep.subr.mxu0 0.0
  %370 = vmatpush1.msra.mxu0 0.0
  %371 = vmatprep.subr.mxu0 0.0
  %372 = vmatpush1.msra.mxu0 0.0
  %373 = vmatprep.subr.mxu0 0.0
  %374 = vmatpush1.msra.mxu0 0.0
  %375 = vmatprep.subr.mxu0 0.0
  %376 = vmatpush1.msra.mxu0 0.0
  %377 = vmatprep.subr.mxu0 0.0
  %378 = vmatpush1.msra.mxu0 0.0
  %379 = vmatprep.subr.mxu0 0.0
  %380 = vmatpush1.msra.mxu0 0.0
  %381 = vmatprep.subr.mxu0 0.0
  %382 = vmatpush1.msra.mxu0 0.0
  %383 = vmatprep.subr.mxu0 0.0
  %384 = vmatpush1.msra.mxu0 0.0
  %385 = vmatprep.subr.mxu0 0.0
  %386 = vmatpush1.msra.mxu0 0.0
  %387 = vmatprep.subr.mxu0 0.0
  %388 = vmatpush1.msra.mxu0 0.0
  %389 = vmatprep.subr.mxu0 0.0
  %390 = vmatpush1.msra.mxu0 0.0
  %391 = vmatprep.subr.mxu0 0.0
  %392 = vmatpush1.msra.mxu0 0.0
  %393 = vmatprep.subr.mxu0 0.0
  %394 = vmatpush1.msra.mxu0 %v361
  %395 = vmatprep.subr.mxu0 0.0
  %396 = vmatpush2.msra.mxu0 0.0
  %397 = vmatprep.subr.mxu0 0.0
  %398 = vmatpush2.msra.mxu0 0.0
  %399 = vmatprep.subr.mxu0 0.0
  %400 = vmatpush2.msra.mxu0 0.0
  %401 = vmatprep.subr.mxu0 0.0
  %402 = vmatpush2.msra.mxu0 0.0
  %403 = vmatprep.subr.mxu0 0.0
  %404 = vmatpush2.msra.mxu0 0.0
  %405 = vmatprep.subr.mxu0 0.0
  %406 = vmatpush2.msra.mxu0 0.0
  %407 = vmatprep.subr.mxu0 0.0
  %408 = vmatpush2.msra.mxu0 0.0
  %409 = vmatprep.subr.mxu0 0.0
  %410 = vmatpush2.msra.mxu0 0.0
  %411 = vmatprep.subr.mxu0 0.0
  %412 = vmatpush2.msra.mxu0 0.0
  %413 = vmatprep.subr.mxu0 0.0
  %414 = vmatpush2.msra.mxu0 0.0
  %415 = vmatprep.subr.mxu0 0.0
  %416 = vmatpush2.msra.mxu0 0.0
  %417 = vmatprep.subr.mxu0 0.0
  %418 = vmatpush2.msra.mxu0 0.0
  %419 = vmatprep.subr.mxu0 0.0
  %420 = vmatpush2.msra.mxu0 0.0
  %421 = vmatprep.subr.mxu0 0.0
  %422 = vmatpush2.msra.mxu0 0.0
  %423 = vmatprep.subr.mxu0 0.0
  %424 = vmatpush2.msra.mxu0 0.0
  %425 = vmatprep.subr.mxu0 0.0
  %426 = vmatpush2.msra.mxu0 0.0
  %427 = vmatprep.mubr.f32.mxu0 0.0
  %428 = vmatmul.mubr.f32.gmra.mxu0 %v261
  %v429 = vpop.f32.mrf.mxu0
  %v430 = vadd.f32 %v242, %v429
  %v431 = vpop.f32.mrf.mxu0
  %432 = vmatprep.mubr.f32.mxu0 0.0
  %433 = vmatmul.mubr.f32.gmra.mxu0 %v264
  %v434 = vpop.f32.mrf.mxu0
  %v435 = vadd.f32 %v247, %v434
  %v436 = vpop.f32.mrf.mxu0
  %437 = vmatprep.mubr.f32.mxu0 0.0
  %438 = vmatmul.mubr.f32.gmra.mxu0 %v267
  %v439 = vpop.f32.mrf.mxu0
  %v440 = vadd.f32 %v252, %v439
  %v441 = vpop.f32.mrf.mxu0
  %442 = vmatprep.mubr.f32.mxu0 0.0
  %443 = vmatmul.mubr.f32.gmra.mxu0 %v270
  %v444 = vpop.f32.mrf.mxu0
  %v445 = vadd.f32 %v257, %v444
  %v446 = vpop.f32.mrf.mxu0
  %447 = vdwg.mxu0
  %v449 = vsel %vm70, %v36, 0
  %v452 = vsel %vm70, %v37, 0
  %v455 = vsel %vm70, %v38, 0
  %v458 = vsel %vm70, %v39, 0
  %v461 = vsel %vm83, %v24, 0
  %463 = vmatprep.subr.mxu0 0.0
  %464 = vmatpush1.msra.mxu0 0.0
  %465 = vmatprep.subr.mxu0 0.0
  %466 = vmatpush1.msra.mxu0 0.0
  %467 = vmatprep.subr.mxu0 0.0
  %468 = vmatpush1.msra.mxu0 0.0
  %469 = vmatprep.subr.mxu0 0.0
  %470 = vmatpush1.msra.mxu0 0.0
  %471 = vmatprep.subr.mxu0 0.0
  %472 = vmatpush1.msra.mxu0 0.0
  %473 = vmatprep.subr.mxu0 0.0
  %474 = vmatpush1.msra.mxu0 0.0
  %475 = vmatprep.subr.mxu0 0.0
  %476 = vmatpush1.msra.mxu0 0.0
  %477 = vmatprep.subr.mxu0 0.0
  %478 = vmatpush1.msra.mxu0 0.0
  %479 = vmatprep.subr.mxu0 0.0
  %480 = vmatpush1.msra.mxu0 0.0
  %481 = vmatprep.subr.mxu0 0.0
  %482 = vmatpush1.msra.mxu0 0.0
  %483 = vmatprep.subr.mxu0 0.0
  %484 = vmatpush1.msra.mxu0 0.0
  %485 = vmatprep.subr.mxu0 0.0
  %486 = vmatpush1.msra.mxu0 0.0
  %487 = vmatprep.subr.mxu0 0.0
  %488 = vmatpush1.msra.mxu0 0.0
  %489 = vmatprep.subr.mxu0 0.0
  %490 = vmatpush1.msra.mxu0 0.0
  %491 = vmatprep.subr.mxu0 0.0
  %492 = vmatpush1.msra.mxu0 0.0
  %493 = vmatprep.subr.mxu0 0.0
  %494 = vmatpush1.msra.mxu0 %v461
  %495 = vmatprep.subr.mxu0 0.0
  %496 = vmatpush2.msra.mxu0 0.0
  %497 = vmatprep.subr.mxu0 0.0
  %498 = vmatpush2.msra.mxu0 0.0
  %499 = vmatprep.subr.mxu0 0.0
  %500 = vmatpush2.msra.mxu0 0.0
  %501 = vmatprep.subr.mxu0 0.0
  %502 = vmatpush2.msra.mxu0 0.0
  %503 = vmatprep.subr.mxu0 0.0
  %504 = vmatpush2.msra.mxu0 0.0
  %505 = vmatprep.subr.mxu0 0.0
  %506 = vmatpush2.msra.mxu0 0.0
  %507 = vmatprep.subr.mxu0 0.0
  %508 = vmatpush2.msra.mxu0 0.0
  %509 = vmatprep.subr.mxu0 0.0
  %510 = vmatpush2.msra.mxu0 0.0
  %511 = vmatprep.subr.mxu0 0.0
  %512 = vmatpush2.msra.mxu0 0.0
  %513 = vmatprep.subr.mxu0 0.0
  %514 = vmatpush2.msra.mxu0 0.0
  %515 = vmatprep.subr.mxu0 0.0
  %516 = vmatpush2.msra.mxu0 0.0
  %517 = vmatprep.subr.mxu0 0.0
  %518 = vmatpush2.msra.mxu0 0.0
  %519 = vmatprep.subr.mxu0 0.0
  %520 = vmatpush2.msra.mxu0 0.0
  %521 = vmatprep.subr.mxu0 0.0
  %522 = vmatpush2.msra.mxu0 0.0
  %523 = vmatprep.subr.mxu0 0.0
  %524 = vmatpush2.msra.mxu0 0.0
  %525 = vmatprep.subr.mxu0 0.0
  %526 = vmatpush2.msra.mxu0 0.0
  %527 = vmatprep.mubr.f32.mxu0 0.0
  %528 = vmatmul.mubr.f32.gmra.mxu0 %v449
  %v529 = vpop.f32.mrf.mxu0
  %v530 = vadd.f32 0.0, %v529
  %v531 = vpop.f32.mrf.mxu0
  %532 = vmatprep.mubr.f32.mxu0 0.0
  %533 = vmatmul.mubr.f32.gmra.mxu0 %v452
  %v534 = vpop.f32.mrf.mxu0
  %v535 = vadd.f32 0.0, %v534
  %v536 = vpop.f32.mrf.mxu0
  %537 = vmatprep.mubr.f32.mxu0 0.0
  %538 = vmatmul.mubr.f32.gmra.mxu0 %v455
  %v539 = vpop.f32.mrf.mxu0
  %v540 = vadd.f32 0.0, %v539
  %v541 = vpop.f32.mrf.mxu0
  %542 = vmatprep.mubr.f32.mxu0 0.0
  %543 = vmatmul.mubr.f32.gmra.mxu0 %v458
  %v544 = vpop.f32.mrf.mxu0
  %v545 = vadd.f32 0.0, %v544
  %v546 = vpop.f32.mrf.mxu0
  %547 = vdwg.mxu0
  %v549 = vsel %vm83, %v25, 0
  %551 = vmatprep.subr.mxu0 0.0
  %552 = vmatpush1.msra.mxu0 0.0
  %553 = vmatprep.subr.mxu0 0.0
  %554 = vmatpush1.msra.mxu0 0.0
  %555 = vmatprep.subr.mxu0 0.0
  %556 = vmatpush1.msra.mxu0 0.0
  %557 = vmatprep.subr.mxu0 0.0
  %558 = vmatpush1.msra.mxu0 0.0
  %559 = vmatprep.subr.mxu0 0.0
  %560 = vmatpush1.msra.mxu0 0.0
  %561 = vmatprep.subr.mxu0 0.0
  %562 = vmatpush1.msra.mxu0 0.0
  %563 = vmatprep.subr.mxu0 0.0
  %564 = vmatpush1.msra.mxu0 0.0
  %565 = vmatprep.subr.mxu0 0.0
  %566 = vmatpush1.msra.mxu0 0.0
  %567 = vmatprep.subr.mxu0 0.0
  %568 = vmatpush1.msra.mxu0 0.0
  %569 = vmatprep.subr.mxu0 0.0
  %570 = vmatpush1.msra.mxu0 0.0
  %571 = vmatprep.subr.mxu0 0.0
  %572 = vmatpush1.msra.mxu0 0.0
  %573 = vmatprep.subr.mxu0 0.0
  %574 = vmatpush1.msra.mxu0 0.0
  %575 = vmatprep.subr.mxu0 0.0
  %576 = vmatpush1.msra.mxu0 0.0
  %577 = vmatprep.subr.mxu0 0.0
  %578 = vmatpush1.msra.mxu0 0.0
  %579 = vmatprep.subr.mxu0 0.0
  %580 = vmatpush1.msra.mxu0 0.0
  %581 = vmatprep.subr.mxu0 0.0
  %582 = vmatpush1.msra.mxu0 %v549
  %583 = vmatprep.subr.mxu0 0.0
  %584 = vmatpush2.msra.mxu0 0.0
  %585 = vmatprep.subr.mxu0 0.0
  %586 = vmatpush2.msra.mxu0 0.0
  %587 = vmatprep.subr.mxu0 0.0
  %588 = vmatpush2.msra.mxu0 0.0
  %589 = vmatprep.subr.mxu0 0.0
  %590 = vmatpush2.msra.mxu0 0.0
  %591 = vmatprep.subr.mxu0 0.0
  %592 = vmatpush2.msra.mxu0 0.0
  %593 = vmatprep.subr.mxu0 0.0
  %594 = vmatpush2.msra.mxu0 0.0
  %595 = vmatprep.subr.mxu0 0.0
  %596 = vmatpush2.msra.mxu0 0.0
  %597 = vmatprep.subr.mxu0 0.0
  %598 = vmatpush2.msra.mxu0 0.0
  %599 = vmatprep.subr.mxu0 0.0
  %600 = vmatpush2.msra.mxu0 0.0
  %601 = vmatprep.subr.mxu0 0.0
  %602 = vmatpush2.msra.mxu0 0.0
  %603 = vmatprep.subr.mxu0 0.0
  %604 = vmatpush2.msra.mxu0 0.0
  %605 = vmatprep.subr.mxu0 0.0
  %606 = vmatpush2.msra.mxu0 0.0
  %607 = vmatprep.subr.mxu0 0.0
  %608 = vmatpush2.msra.mxu0 0.0
  %609 = vmatprep.subr.mxu0 0.0
  %610 = vmatpush2.msra.mxu0 0.0
  %611 = vmatprep.subr.mxu0 0.0
  %612 = vmatpush2.msra.mxu0 0.0
  %613 = vmatprep.subr.mxu0 0.0
  %614 = vmatpush2.msra.mxu0 0.0
  %615 = vmatprep.mubr.f32.mxu0 0.0
  %616 = vmatmul.mubr.f32.gmra.mxu0 %v449
  %v617 = vpop.f32.mrf.mxu0
  %v618 = vadd.f32 0.0, %v617
  %v619 = vpop.f32.mrf.mxu0
  %620 = vmatprep.mubr.f32.mxu0 0.0
  %621 = vmatmul.mubr.f32.gmra.mxu0 %v452
  %v622 = vpop.f32.mrf.mxu0
  %v623 = vadd.f32 0.0, %v622
  %v624 = vpop.f32.mrf.mxu0
  %625 = vmatprep.mubr.f32.mxu0 0.0
  %626 = vmatmul.mubr.f32.gmra.mxu0 %v455
  %v627 = vpop.f32.mrf.mxu0
  %v628 = vadd.f32 0.0, %v627
  %v629 = vpop.f32.mrf.mxu0
  %630 = vmatprep.mubr.f32.mxu0 0.0
  %631 = vmatmul.mubr.f32.gmra.mxu0 %v458
  %v632 = vpop.f32.mrf.mxu0
  %v633 = vadd.f32 0.0, %v632
  %v634 = vpop.f32.mrf.mxu0
  %635 = vdwg.mxu0
  %v636 = vadd.f32 %v342, %v530
  %v637 = vadd.f32 %v347, %v535
  %v638 = vadd.f32 %v352, %v540
  %v639 = vadd.f32 %v357, %v545
  %v640 = vadd.f32 %v430, %v618
  %v641 = vadd.f32 %v435, %v623
  %v642 = vadd.f32 %v440, %v628
  %v643 = vadd.f32 %v445, %v633
  %v645 = vsel %vm70, %v40, 0
  %v648 = vsel %vm70, %v41, 0
  %v651 = vsel %vm70, %v42, 0
  %v654 = vsel %vm70, %v43, 0
  %v657 = vsel %vm83, %v26, 0
  %659 = vmatprep.subr.mxu0 0.0
  %660 = vmatpush1.msra.mxu0 0.0
  %661 = vmatprep.subr.mxu0 0.0
  %662 = vmatpush1.msra.mxu0 0.0
  %663 = vmatprep.subr.mxu0 0.0
  %664 = vmatpush1.msra.mxu0 0.0
  %665 = vmatprep.subr.mxu0 0.0
  %666 = vmatpush1.msra.mxu0 0.0
  %667 = vmatprep.subr.mxu0 0.0
  %668 = vmatpush1.msra.mxu0 0.0
  %669 = vmatprep.subr.mxu0 0.0
  %670 = vmatpush1.msra.mxu0 0.0
  %671 = vmatprep.subr.mxu0 0.0
  %672 = vmatpush1.msra.mxu0 0.0
  %673 = vmatprep.subr.mxu0 0.0
  %674 = vmatpush1.msra.mxu0 0.0
  %675 = vmatprep.subr.mxu0 0.0
  %676 = vmatpush1.msra.mxu0 0.0
  %677 = vmatprep.subr.mxu0 0.0
  %678 = vmatpush1.msra.mxu0 0.0
  %679 = vmatprep.subr.mxu0 0.0
  %680 = vmatpush1.msra.mxu0 0.0
  %681 = vmatprep.subr.mxu0 0.0
  %682 = vmatpush1.msra.mxu0 0.0
  %683 = vmatprep.subr.mxu0 0.0
  %684 = vmatpush1.msra.mxu0 0.0
  %685 = vmatprep.subr.mxu0 0.0
  %686 = vmatpush1.msra.mxu0 0.0
  %687 = vmatprep.subr.mxu0 0.0
  %688 = vmatpush1.msra.mxu0 0.0
  %689 = vmatprep.subr.mxu0 0.0
  %690 = vmatpush1.msra.mxu0 %v657
  %691 = vmatprep.subr.mxu0 0.0
  %692 = vmatpush2.msra.mxu0 0.0
  %693 = vmatprep.subr.mxu0 0.0
  %694 = vmatpush2.msra.mxu0 0.0
  %695 = vmatprep.subr.mxu0 0.0
  %696 = vmatpush2.msra.mxu0 0.0
  %697 = vmatprep.subr.mxu0 0.0
  %698 = vmatpush2.msra.mxu0 0.0
  %699 = vmatprep.subr.mxu0 0.0
  %700 = vmatpush2.msra.mxu0 0.0
  %701 = vmatprep.subr.mxu0 0.0
  %702 = vmatpush2.msra.mxu0 0.0
  %703 = vmatprep.subr.mxu0 0.0
  %704 = vmatpush2.msra.mxu0 0.0
  %705 = vmatprep.subr.mxu0 0.0
  %706 = vmatpush2.msra.mxu0 0.0
  %707 = vmatprep.subr.mxu0 0.0
  %708 = vmatpush2.msra.mxu0 0.0
  %709 = vmatprep.subr.mxu0 0.0
  %710 = vmatpush2.msra.mxu0 0.0
  %711 = vmatprep.subr.mxu0 0.0
  %712 = vmatpush2.msra.mxu0 0.0
  %713 = vmatprep.subr.mxu0 0.0
  %714 = vmatpush2.msra.mxu0 0.0
  %715 = vmatprep.subr.mxu0 0.0
  %716 = vmatpush2.msra.mxu0 0.0
  %717 = vmatprep.subr.mxu0 0.0
  %718 = vmatpush2.msra.mxu0 0.0
  %719 = vmatprep.subr.mxu0 0.0
  %720 = vmatpush2.msra.mxu0 0.0
  %721 = vmatprep.subr.mxu0 0.0
  %722 = vmatpush2.msra.mxu0 0.0
  %723 = vmatprep.mubr.f32.mxu0 0.0
  %724 = vmatmul.mubr.f32.gmra.mxu0 %v645
  %v725 = vpop.f32.mrf.mxu0
  %v726 = vadd.f32 0.0, %v725
  %v727 = vpop.f32.mrf.mxu0
  %728 = vmatprep.mubr.f32.mxu0 0.0
  %729 = vmatmul.mubr.f32.gmra.mxu0 %v648
  %v730 = vpop.f32.mrf.mxu0
  %v731 = vadd.f32 0.0, %v730
  %v732 = vpop.f32.mrf.mxu0
  %733 = vmatprep.mubr.f32.mxu0 0.0
  %734 = vmatmul.mubr.f32.gmra.mxu0 %v651
  %v735 = vpop.f32.mrf.mxu0
  %v736 = vadd.f32 0.0, %v735
  %v737 = vpop.f32.mrf.mxu0
  %738 = vmatprep.mubr.f32.mxu0 0.0
  %739 = vmatmul.mubr.f32.gmra.mxu0 %v654
  %v740 = vpop.f32.mrf.mxu0
  %v741 = vadd.f32 0.0, %v740
  %v742 = vpop.f32.mrf.mxu0
  %743 = vdwg.mxu0
  %v745 = vsel %vm83, %v27, 0
  %747 = vmatprep.subr.mxu0 0.0
  %748 = vmatpush1.msra.mxu0 0.0
  %749 = vmatprep.subr.mxu0 0.0
  %750 = vmatpush1.msra.mxu0 0.0
  %751 = vmatprep.subr.mxu0 0.0
  %752 = vmatpush1.msra.mxu0 0.0
  %753 = vmatprep.subr.mxu0 0.0
  %754 = vmatpush1.msra.mxu0 0.0
  %755 = vmatprep.subr.mxu0 0.0
  %756 = vmatpush1.msra.mxu0 0.0
  %757 = vmatprep.subr.mxu0 0.0
  %758 = vmatpush1.msra.mxu0 0.0
  %759 = vmatprep.subr.mxu0 0.0
  %760 = vmatpush1.msra.mxu0 0.0
  %761 = vmatprep.subr.mxu0 0.0
  %762 = vmatpush1.msra.mxu0 0.0
  %763 = vmatprep.subr.mxu0 0.0
  %764 = vmatpush1.msra.mxu0 0.0
  %765 = vmatprep.subr.mxu0 0.0
  %766 = vmatpush1.msra.mxu0 0.0
  %767 = vmatprep.subr.mxu0 0.0
  %768 = vmatpush1.msra.mxu0 0.0
  %769 = vmatprep.subr.mxu0 0.0
  %770 = vmatpush1.msra.mxu0 0.0
  %771 = vmatprep.subr.mxu0 0.0
  %772 = vmatpush1.msra.mxu0 0.0
  %773 = vmatprep.subr.mxu0 0.0
  %774 = vmatpush1.msra.mxu0 0.0
  %775 = vmatprep.subr.mxu0 0.0
  %776 = vmatpush1.msra.mxu0 0.0
  %777 = vmatprep.subr.mxu0 0.0
  %778 = vmatpush1.msra.mxu0 %v745
  %779 = vmatprep.subr.mxu0 0.0
  %780 = vmatpush2.msra.mxu0 0.0
  %781 = vmatprep.subr.mxu0 0.0
  %782 = vmatpush2.msra.mxu0 0.0
  %783 = vmatprep.subr.mxu0 0.0
  %784 = vmatpush2.msra.mxu0 0.0
  %785 = vmatprep.subr.mxu0 0.0
  %786 = vmatpush2.msra.mxu0 0.0
  %787 = vmatprep.subr.mxu0 0.0
  %788 = vmatpush2.msra.mxu0 0.0
  %789 = vmatprep.subr.mxu0 0.0
  %790 = vmatpush2.msra.mxu0 0.0
  %791 = vmatprep.subr.mxu0 0.0
  %792 = vmatpush2.msra.mxu0 0.0
  %793 = vmatprep.subr.mxu0 0.0
  %794 = vmatpush2.msra.mxu0 0.0
  %795 = vmatprep.subr.mxu0 0.0
  %796 = vmatpush2.msra.mxu0 0.0
  %797 = vmatprep.subr.mxu0 0.0
  %798 = vmatpush2.msra.mxu0 0.0
  %799 = vmatprep.subr.mxu0 0.0
  %800 = vmatpush2.msra.mxu0 0.0
  %801 = vmatprep.subr.mxu0 0.0
  %802 = vmatpush2.msra.mxu0 0.0
  %803 = vmatprep.subr.mxu0 0.0
  %804 = vmatpush2.msra.mxu0 0.0
  %805 = vmatprep.subr.mxu0 0.0
  %806 = vmatpush2.msra.mxu0 0.0
  %807 = vmatprep.subr.mxu0 0.0
  %808 = vmatpush2.msra.mxu0 0.0
  %809 = vmatprep.subr.mxu0 0.0
  %810 = vmatpush2.msra.mxu0 0.0
  %811 = vmatprep.mubr.f32.mxu0 0.0
  %812 = vmatmul.mubr.f32.gmra.mxu0 %v645
  %v813 = vpop.f32.mrf.mxu0
  %v814 = vadd.f32 0.0, %v813
  %v815 = vpop.f32.mrf.mxu0
  %816 = vmatprep.mubr.f32.mxu0 0.0
  %817 = vmatmul.mubr.f32.gmra.mxu0 %v648
  %v818 = vpop.f32.mrf.mxu0
  %v819 = vadd.f32 0.0, %v818
  %v820 = vpop.f32.mrf.mxu0
  %821 = vmatprep.mubr.f32.mxu0 0.0
  %822 = vmatmul.mubr.f32.gmra.mxu0 %v651
  %v823 = vpop.f32.mrf.mxu0
  %v824 = vadd.f32 0.0, %v823
  %v825 = vpop.f32.mrf.mxu0
  %826 = vmatprep.mubr.f32.mxu0 0.0
  %827 = vmatmul.mubr.f32.gmra.mxu0 %v654
  %v828 = vpop.f32.mrf.mxu0
  %v829 = vadd.f32 0.0, %v828
  %v830 = vpop.f32.mrf.mxu0
  %831 = vdwg.mxu0
  %v832 = vadd.f32 %v636, %v726
  %v833 = vadd.f32 %v637, %v731
  %v834 = vadd.f32 %v638, %v736
  %v835 = vadd.f32 %v639, %v741
  %v836 = vadd.f32 %v640, %v814
  %v837 = vadd.f32 %v641, %v819
  %v838 = vadd.f32 %v642, %v824
  %v839 = vadd.f32 %v643, %v829
  %840 = vrot.lane.b32.xlu0 %v20, 127
  %v841 = vpop.permute.xlu0 %840
  %v843 = vsel %vm70, %v44, 0
  %v846 = vsel %vm70, %v45, 0
  %v849 = vsel %vm70, %v46, 0
  %v852 = vsel %vm70, %v47, 0
  %v854 = vsel %vm83, %v841, 0
  %856 = vmatprep.subr.mxu0 0.0
  %857 = vmatpush1.msra.mxu0 0.0
  %858 = vmatprep.subr.mxu0 0.0
  %859 = vmatpush1.msra.mxu0 0.0
  %860 = vmatprep.subr.mxu0 0.0
  %861 = vmatpush1.msra.mxu0 0.0
  %862 = vmatprep.subr.mxu0 0.0
  %863 = vmatpush1.msra.mxu0 0.0
  %864 = vmatprep.subr.mxu0 0.0
  %865 = vmatpush1.msra.mxu0 0.0
  %866 = vmatprep.subr.mxu0 0.0
  %867 = vmatpush1.msra.mxu0 0.0
  %868 = vmatprep.subr.mxu0 0.0
  %869 = vmatpush1.msra.mxu0 0.0
  %870 = vmatprep.subr.mxu0 0.0
  %871 = vmatpush1.msra.mxu0 0.0
  %872 = vmatprep.subr.mxu0 0.0
  %873 = vmatpush1.msra.mxu0 0.0
  %874 = vmatprep.subr.mxu0 0.0
  %875 = vmatpush1.msra.mxu0 0.0
  %876 = vmatprep.subr.mxu0 0.0
  %877 = vmatpush1.msra.mxu0 0.0
  %878 = vmatprep.subr.mxu0 0.0
  %879 = vmatpush1.msra.mxu0 0.0
  %880 = vmatprep.subr.mxu0 0.0
  %881 = vmatpush1.msra.mxu0 0.0
  %882 = vmatprep.subr.mxu0 0.0
  %883 = vmatpush1.msra.mxu0 0.0
  %884 = vmatprep.subr.mxu0 0.0
  %885 = vmatpush1.msra.mxu0 0.0
  %886 = vmatprep.subr.mxu0 0.0
  %887 = vmatpush1.msra.mxu0 %v854
  %888 = vmatprep.subr.mxu0 0.0
  %889 = vmatpush2.msra.mxu0 0.0
  %890 = vmatprep.subr.mxu0 0.0
  %891 = vmatpush2.msra.mxu0 0.0
  %892 = vmatprep.subr.mxu0 0.0
  %893 = vmatpush2.msra.mxu0 0.0
  %894 = vmatprep.subr.mxu0 0.0
  %895 = vmatpush2.msra.mxu0 0.0
  %896 = vmatprep.subr.mxu0 0.0
  %897 = vmatpush2.msra.mxu0 0.0
  %898 = vmatprep.subr.mxu0 0.0
  %899 = vmatpush2.msra.mxu0 0.0
  %900 = vmatprep.subr.mxu0 0.0
  %901 = vmatpush2.msra.mxu0 0.0
  %902 = vmatprep.subr.mxu0 0.0
  %903 = vmatpush2.msra.mxu0 0.0
  %904 = vmatprep.subr.mxu0 0.0
  %905 = vmatpush2.msra.mxu0 0.0
  %906 = vmatprep.subr.mxu0 0.0
  %907 = vmatpush2.msra.mxu0 0.0
  %908 = vmatprep.subr.mxu0 0.0
  %909 = vmatpush2.msra.mxu0 0.0
  %910 = vmatprep.subr.mxu0 0.0
  %911 = vmatpush2.msra.mxu0 0.0
  %912 = vmatprep.subr.mxu0 0.0
  %913 = vmatpush2.msra.mxu0 0.0
  %914 = vmatprep.subr.mxu0 0.0
  %915 = vmatpush2.msra.mxu0 0.0
  %916 = vmatprep.subr.mxu0 0.0
  %917 = vmatpush2.msra.mxu0 0.0
  %918 = vmatprep.subr.mxu0 0.0
  %919 = vmatpush2.msra.mxu0 0.0
  %920 = vmatprep.mubr.f32.mxu0 0.0
  %921 = vmatmul.mubr.f32.gmra.mxu0 %v843
  %v922 = vpop.f32.mrf.mxu0
  %v923 = vadd.f32 0.0, %v922
  %v924 = vpop.f32.mrf.mxu0
  %925 = vmatprep.mubr.f32.mxu0 0.0
  %926 = vmatmul.mubr.f32.gmra.mxu0 %v846
  %v927 = vpop.f32.mrf.mxu0
  %v928 = vadd.f32 0.0, %v927
  %v929 = vpop.f32.mrf.mxu0
  %930 = vmatprep.mubr.f32.mxu0 0.0
  %931 = vmatmul.mubr.f32.gmra.mxu0 %v849
  %v932 = vpop.f32.mrf.mxu0
  %v933 = vadd.f32 0.0, %v932
  %v934 = vpop.f32.mrf.mxu0
  %935 = vmatprep.mubr.f32.mxu0 0.0
  %936 = vmatmul.mubr.f32.gmra.mxu0 %v852
  %v937 = vpop.f32.mrf.mxu0
  %v938 = vadd.f32 0.0, %v937
  %v939 = vpop.f32.mrf.mxu0
  %940 = vdwg.mxu0
  %941 = vrot.lane.b32.xlu0 %v21, 127
  %v942 = vpop.permute.xlu0 %941
  %v943 = vsel %vm83, %v942, 0
  %945 = vmatprep.subr.mxu0 0.0
  %946 = vmatpush1.msra.mxu0 0.0
  %947 = vmatprep.subr.mxu0 0.0
  %948 = vmatpush1.msra.mxu0 0.0
  %949 = vmatprep.subr.mxu0 0.0
  %950 = vmatpush1.msra.mxu0 0.0
  %951 = vmatprep.subr.mxu0 0.0
  %952 = vmatpush1.msra.mxu0 0.0
  %953 = vmatprep.subr.mxu0 0.0
  %954 = vmatpush1.msra.mxu0 0.0
  %955 = vmatprep.subr.mxu0 0.0
  %956 = vmatpush1.msra.mxu0 0.0
  %957 = vmatprep.subr.mxu0 0.0
  %958 = vmatpush1.msra.mxu0 0.0
  %959 = vmatprep.subr.mxu0 0.0
  %960 = vmatpush1.msra.mxu0 0.0
  %961 = vmatprep.subr.mxu0 0.0
  %962 = vmatpush1.msra.mxu0 0.0
  %963 = vmatprep.subr.mxu0 0.0
  %964 = vmatpush1.msra.mxu0 0.0
  %965 = vmatprep.subr.mxu0 0.0
  %966 = vmatpush1.msra.mxu0 0.0
  %967 = vmatprep.subr.mxu0 0.0
  %968 = vmatpush1.msra.mxu0 0.0
  %969 = vmatprep.subr.mxu0 0.0
  %970 = vmatpush1.msra.mxu0 0.0
  %971 = vmatprep.subr.mxu0 0.0
  %972 = vmatpush1.msra.mxu0 0.0
  %973 = vmatprep.subr.mxu0 0.0
  %974 = vmatpush1.msra.mxu0 0.0
  %975 = vmatprep.subr.mxu0 0.0
  %976 = vmatpush1.msra.mxu0 %v943
  %977 = vmatprep.subr.mxu0 0.0
  %978 = vmatpush2.msra.mxu0 0.0
  %979 = vmatprep.subr.mxu0 0.0
  %980 = vmatpush2.msra.mxu0 0.0
  %981 = vmatprep.subr.mxu0 0.0
  %982 = vmatpush2.msra.mxu0 0.0
  %983 = vmatprep.subr.mxu0 0.0
  %984 = vmatpush2.msra.mxu0 0.0
  %985 = vmatprep.subr.mxu0 0.0
  %986 = vmatpush2.msra.mxu0 0.0
  %987 = vmatprep.subr.mxu0 0.0
  %988 = vmatpush2.msra.mxu0 0.0
  %989 = vmatprep.subr.mxu0 0.0
  %990 = vmatpush2.msra.mxu0 0.0
  %991 = vmatprep.subr.mxu0 0.0
  %992 = vmatpush2.msra.mxu0 0.0
  %993 = vmatprep.subr.mxu0 0.0
  %994 = vmatpush2.msra.mxu0 0.0
  %995 = vmatprep.subr.mxu0 0.0
  %996 = vmatpush2.msra.mxu0 0.0
  %997 = vmatprep.subr.mxu0 0.0
  %998 = vmatpush2.msra.mxu0 0.0
  %999 = vmatprep.subr.mxu0 0.0
  %1000 = vmatpush2.msra.mxu0 0.0
  %1001 = vmatprep.subr.mxu0 0.0
  %1002 = vmatpush2.msra.mxu0 0.0
  %1003 = vmatprep.subr.mxu0 0.0
  %1004 = vmatpush2.msra.mxu0 0.0
  %1005 = vmatprep.subr.mxu0 0.0
  %1006 = vmatpush2.msra.mxu0 0.0
  %1007 = vmatprep.subr.mxu0 0.0
  %1008 = vmatpush2.msra.mxu0 0.0
  %1009 = vmatprep.mubr.f32.mxu0 0.0
  %1010 = vmatmul.mubr.f32.gmra.mxu0 %v843
  %v1011 = vpop.f32.mrf.mxu0
  %v1012 = vadd.f32 0.0, %v1011
  %v1013 = vpop.f32.mrf.mxu0
  %1014 = vmatprep.mubr.f32.mxu0 0.0
  %1015 = vmatmul.mubr.f32.gmra.mxu0 %v846
  %v1016 = vpop.f32.mrf.mxu0
  %v1017 = vadd.f32 0.0, %v1016
  %v1018 = vpop.f32.mrf.mxu0
  %1019 = vmatprep.mubr.f32.mxu0 0.0
  %1020 = vmatmul.mubr.f32.gmra.mxu0 %v849
  %v1021 = vpop.f32.mrf.mxu0
  %v1022 = vadd.f32 0.0, %v1021
  %v1023 = vpop.f32.mrf.mxu0
  %1024 = vmatprep.mubr.f32.mxu0 0.0
  %1025 = vmatmul.mubr.f32.gmra.mxu0 %v852
  %v1026 = vpop.f32.mrf.mxu0
  %v1027 = vadd.f32 0.0, %v1026
  %v1028 = vpop.f32.mrf.mxu0
  %1029 = vdwg.mxu0
  %v1030 = vadd.f32 %v832, %v923
  %v1031 = vadd.f32 %v833, %v928
  %v1032 = vadd.f32 %v834, %v933
  %v1033 = vadd.f32 %v835, %v938
  %v1034 = vadd.f32 %v836, %v1012
  %v1035 = vadd.f32 %v837, %v1017
  %v1036 = vadd.f32 %v838, %v1022
  %v1037 = vadd.f32 %v839, %v1027
  %1038 = vmatprep.subr.mxu0 0.0
  %1039 = vmatpush1.msra.mxu0 0.0
  %1040 = vmatprep.subr.mxu0 0.0
  %1041 = vmatpush1.msra.mxu0 0.0
  %1042 = vmatprep.subr.mxu0 0.0
  %1043 = vmatpush1.msra.mxu0 0.0
  %1044 = vmatprep.subr.mxu0 0.0
  %1045 = vmatpush1.msra.mxu0 0.0
  %1046 = vmatprep.subr.mxu0 0.0
  %1047 = vmatpush1.msra.mxu0 0.0
  %1048 = vmatprep.subr.mxu0 0.0
  %1049 = vmatpush1.msra.mxu0 0.0
  %1050 = vmatprep.subr.mxu0 0.0
  %1051 = vmatpush1.msra.mxu0 0.0
  %1052 = vmatprep.subr.mxu0 0.0
  %1053 = vmatpush1.msra.mxu0 0.0
  %1054 = vmatprep.subr.mxu0 0.0
  %1055 = vmatpush1.msra.mxu0 0.0
  %1056 = vmatprep.subr.mxu0 0.0
  %1057 = vmatpush1.msra.mxu0 0.0
  %1058 = vmatprep.subr.mxu0 0.0
  %1059 = vmatpush1.msra.mxu0 0.0
  %1060 = vmatprep.subr.mxu0 0.0
  %1061 = vmatpush1.msra.mxu0 0.0
  %1062 = vmatprep.subr.mxu0 0.0
  %1063 = vmatpush1.msra.mxu0 0.0
  %1064 = vmatprep.subr.mxu0 0.0
  %1065 = vmatpush1.msra.mxu0 0.0
  %1066 = vmatprep.subr.mxu0 0.0
  %1067 = vmatpush1.msra.mxu0 0.0
  %1068 = vmatprep.subr.mxu0 0.0
  %1069 = vmatpush1.msra.mxu0 %v657
  %1070 = vmatprep.subr.mxu0 0.0
  %1071 = vmatpush2.msra.mxu0 0.0
  %1072 = vmatprep.subr.mxu0 0.0
  %1073 = vmatpush2.msra.mxu0 0.0
  %1074 = vmatprep.subr.mxu0 0.0
  %1075 = vmatpush2.msra.mxu0 0.0
  %1076 = vmatprep.subr.mxu0 0.0
  %1077 = vmatpush2.msra.mxu0 0.0
  %1078 = vmatprep.subr.mxu0 0.0
  %1079 = vmatpush2.msra.mxu0 0.0
  %1080 = vmatprep.subr.mxu0 0.0
  %1081 = vmatpush2.msra.mxu0 0.0
  %1082 = vmatprep.subr.mxu0 0.0
  %1083 = vmatpush2.msra.mxu0 0.0
  %1084 = vmatprep.subr.mxu0 0.0
  %1085 = vmatpush2.msra.mxu0 0.0
  %1086 = vmatprep.subr.mxu0 0.0
  %1087 = vmatpush2.msra.mxu0 0.0
  %1088 = vmatprep.subr.mxu0 0.0
  %1089 = vmatpush2.msra.mxu0 0.0
  %1090 = vmatprep.subr.mxu0 0.0
  %1091 = vmatpush2.msra.mxu0 0.0
  %1092 = vmatprep.subr.mxu0 0.0
  %1093 = vmatpush2.msra.mxu0 0.0
  %1094 = vmatprep.subr.mxu0 0.0
  %1095 = vmatpush2.msra.mxu0 0.0
  %1096 = vmatprep.subr.mxu0 0.0
  %1097 = vmatpush2.msra.mxu0 0.0
  %1098 = vmatprep.subr.mxu0 0.0
  %1099 = vmatpush2.msra.mxu0 0.0
  %1100 = vmatprep.subr.mxu0 0.0
  %1101 = vmatpush2.msra.mxu0 0.0
  %1102 = vmatprep.mubr.f32.mxu0 0.0
  %1103 = vmatmul.mubr.f32.gmra.mxu0 %v72
  %v1104 = vpop.f32.mrf.mxu0
  %v1105 = vadd.f32 0.0, %v1104
  %v1106 = vpop.f32.mrf.mxu0
  %1107 = vmatprep.mubr.f32.mxu0 0.0
  %1108 = vmatmul.mubr.f32.gmra.mxu0 %v75
  %v1109 = vpop.f32.mrf.mxu0
  %v1110 = vadd.f32 0.0, %v1109
  %v1111 = vpop.f32.mrf.mxu0
  %1112 = vmatprep.mubr.f32.mxu0 0.0
  %1113 = vmatmul.mubr.f32.gmra.mxu0 %v78
  %v1114 = vpop.f32.mrf.mxu0
  %v1115 = vadd.f32 0.0, %v1114
  %v1116 = vpop.f32.mrf.mxu0
  %1117 = vmatprep.mubr.f32.mxu0 0.0
  %1118 = vmatmul.mubr.f32.gmra.mxu0 %v81
  %v1119 = vpop.f32.mrf.mxu0
  %v1120 = vadd.f32 0.0, %v1119
  %v1121 = vpop.f32.mrf.mxu0
  %1122 = vdwg.mxu0
  %1123 = vmatprep.subr.mxu0 0.0
  %1124 = vmatpush1.msra.mxu0 0.0
  %1125 = vmatprep.subr.mxu0 0.0
  %1126 = vmatpush1.msra.mxu0 0.0
  %1127 = vmatprep.subr.mxu0 0.0
  %1128 = vmatpush1.msra.mxu0 0.0
  %1129 = vmatprep.subr.mxu0 0.0
  %1130 = vmatpush1.msra.mxu0 0.0
  %1131 = vmatprep.subr.mxu0 0.0
  %1132 = vmatpush1.msra.mxu0 0.0
  %1133 = vmatprep.subr.mxu0 0.0
  %1134 = vmatpush1.msra.mxu0 0.0
  %1135 = vmatprep.subr.mxu0 0.0
  %1136 = vmatpush1.msra.mxu0 0.0
  %1137 = vmatprep.subr.mxu0 0.0
  %1138 = vmatpush1.msra.mxu0 0.0
  %1139 = vmatprep.subr.mxu0 0.0
  %1140 = vmatpush1.msra.mxu0 0.0
  %1141 = vmatprep.subr.mxu0 0.0
  %1142 = vmatpush1.msra.mxu0 0.0
  %1143 = vmatprep.subr.mxu0 0.0
  %1144 = vmatpush1.msra.mxu0 0.0
  %1145 = vmatprep.subr.mxu0 0.0
  %1146 = vmatpush1.msra.mxu0 0.0
  %1147 = vmatprep.subr.mxu0 0.0
  %1148 = vmatpush1.msra.mxu0 0.0
  %1149 = vmatprep.subr.mxu0 0.0
  %1150 = vmatpush1.msra.mxu0 0.0
  %1151 = vmatprep.subr.mxu0 0.0
  %1152 = vmatpush1.msra.mxu0 0.0
  %1153 = vmatprep.subr.mxu0 0.0
  %1154 = vmatpush1.msra.mxu0 %v745
  %1155 = vmatprep.subr.mxu0 0.0
  %1156 = vmatpush2.msra.mxu0 0.0
  %1157 = vmatprep.subr.mxu0 0.0
  %1158 = vmatpush2.msra.mxu0 0.0
  %1159 = vmatprep.subr.mxu0 0.0
  %1160 = vmatpush2.msra.mxu0 0.0
  %1161 = vmatprep.subr.mxu0 0.0
  %1162 = vmatpush2.msra.mxu0 0.0
  %1163 = vmatprep.subr.mxu0 0.0
  %1164 = vmatpush2.msra.mxu0 0.0
  %1165 = vmatprep.subr.mxu0 0.0
  %1166 = vmatpush2.msra.mxu0 0.0
  %1167 = vmatprep.subr.mxu0 0.0
  %1168 = vmatpush2.msra.mxu0 0.0
  %1169 = vmatprep.subr.mxu0 0.0
  %1170 = vmatpush2.msra.mxu0 0.0
  %1171 = vmatprep.subr.mxu0 0.0
  %1172 = vmatpush2.msra.mxu0 0.0
  %1173 = vmatprep.subr.mxu0 0.0
  %1174 = vmatpush2.msra.mxu0 0.0
  %1175 = vmatprep.subr.mxu0 0.0
  %1176 = vmatpush2.msra.mxu0 0.0
  %1177 = vmatprep.subr.mxu0 0.0
  %1178 = vmatpush2.msra.mxu0 0.0
  %1179 = vmatprep.subr.mxu0 0.0
  %1180 = vmatpush2.msra.mxu0 0.0
  %1181 = vmatprep.subr.mxu0 0.0
  %1182 = vmatpush2.msra.mxu0 0.0
  %1183 = vmatprep.subr.mxu0 0.0
  %1184 = vmatpush2.msra.mxu0 0.0
  %1185 = vmatprep.subr.mxu0 0.0
  %1186 = vmatpush2.msra.mxu0 0.0
  %1187 = vmatprep.mubr.f32.mxu0 0.0
  %1188 = vmatmul.mubr.f32.gmra.mxu0 %v72
  %v1189 = vpop.f32.mrf.mxu0
  %v1190 = vadd.f32 0.0, %v1189
  %v1191 = vpop.f32.mrf.mxu0
  %1192 = vmatprep.mubr.f32.mxu0 0.0
  %1193 = vmatmul.mubr.f32.gmra.mxu0 %v75
  %v1194 = vpop.f32.mrf.mxu0
  %v1195 = vadd.f32 0.0, %v1194
  %v1196 = vpop.f32.mrf.mxu0
  %1197 = vmatprep.mubr.f32.mxu0 0.0
  %1198 = vmatmul.mubr.f32.gmra.mxu0 %v78
  %v1199 = vpop.f32.mrf.mxu0
  %v1200 = vadd.f32 0.0, %v1199
  %v1201 = vpop.f32.mrf.mxu0
  %1202 = vmatprep.mubr.f32.mxu0 0.0
  %1203 = vmatmul.mubr.f32.gmra.mxu0 %v81
  %v1204 = vpop.f32.mrf.mxu0
  %v1205 = vadd.f32 0.0, %v1204
  %v1206 = vpop.f32.mrf.mxu0
  %1207 = vdwg.mxu0
  %1208 = vmatprep.subr.mxu0 0.0
  %1209 = vmatpush1.msra.mxu0 0.0
  %1210 = vmatprep.subr.mxu0 0.0
  %1211 = vmatpush1.msra.mxu0 0.0
  %1212 = vmatprep.subr.mxu0 0.0
  %1213 = vmatpush1.msra.mxu0 0.0
  %1214 = vmatprep.subr.mxu0 0.0
  %1215 = vmatpush1.msra.mxu0 0.0
  %1216 = vmatprep.subr.mxu0 0.0
  %1217 = vmatpush1.msra.mxu0 0.0
  %1218 = vmatprep.subr.mxu0 0.0
  %1219 = vmatpush1.msra.mxu0 0.0
  %1220 = vmatprep.subr.mxu0 0.0
  %1221 = vmatpush1.msra.mxu0 0.0
  %1222 = vmatprep.subr.mxu0 0.0
  %1223 = vmatpush1.msra.mxu0 0.0
  %1224 = vmatprep.subr.mxu0 0.0
  %1225 = vmatpush1.msra.mxu0 0.0
  %1226 = vmatprep.subr.mxu0 0.0
  %1227 = vmatpush1.msra.mxu0 0.0
  %1228 = vmatprep.subr.mxu0 0.0
  %1229 = vmatpush1.msra.mxu0 0.0
  %1230 = vmatprep.subr.mxu0 0.0
  %1231 = vmatpush1.msra.mxu0 0.0
  %1232 = vmatprep.subr.mxu0 0.0
  %1233 = vmatpush1.msra.mxu0 0.0
  %1234 = vmatprep.subr.mxu0 0.0
  %1235 = vmatpush1.msra.mxu0 0.0
  %1236 = vmatprep.subr.mxu0 0.0
  %1237 = vmatpush1.msra.mxu0 0.0
  %1238 = vmatprep.subr.mxu0 0.0
  %1239 = vmatpush1.msra.mxu0 %v461
  %1240 = vmatprep.subr.mxu0 0.0
  %1241 = vmatpush2.msra.mxu0 0.0
  %1242 = vmatprep.subr.mxu0 0.0
  %1243 = vmatpush2.msra.mxu0 0.0
  %1244 = vmatprep.subr.mxu0 0.0
  %1245 = vmatpush2.msra.mxu0 0.0
  %1246 = vmatprep.subr.mxu0 0.0
  %1247 = vmatpush2.msra.mxu0 0.0
  %1248 = vmatprep.subr.mxu0 0.0
  %1249 = vmatpush2.msra.mxu0 0.0
  %1250 = vmatprep.subr.mxu0 0.0
  %1251 = vmatpush2.msra.mxu0 0.0
  %1252 = vmatprep.subr.mxu0 0.0
  %1253 = vmatpush2.msra.mxu0 0.0
  %1254 = vmatprep.subr.mxu0 0.0
  %1255 = vmatpush2.msra.mxu0 0.0
  %1256 = vmatprep.subr.mxu0 0.0
  %1257 = vmatpush2.msra.mxu0 0.0
  %1258 = vmatprep.subr.mxu0 0.0
  %1259 = vmatpush2.msra.mxu0 0.0
  %1260 = vmatprep.subr.mxu0 0.0
  %1261 = vmatpush2.msra.mxu0 0.0
  %1262 = vmatprep.subr.mxu0 0.0
  %1263 = vmatpush2.msra.mxu0 0.0
  %1264 = vmatprep.subr.mxu0 0.0
  %1265 = vmatpush2.msra.mxu0 0.0
  %1266 = vmatprep.subr.mxu0 0.0
  %1267 = vmatpush2.msra.mxu0 0.0
  %1268 = vmatprep.subr.mxu0 0.0
  %1269 = vmatpush2.msra.mxu0 0.0
  %1270 = vmatprep.subr.mxu0 0.0
  %1271 = vmatpush2.msra.mxu0 0.0
  %1272 = vmatprep.mubr.f32.mxu0 0.0
  %1273 = vmatmul.mubr.f32.gmra.mxu0 %v261
  %v1274 = vpop.f32.mrf.mxu0
  %v1275 = vadd.f32 %v1105, %v1274
  %v1276 = vpop.f32.mrf.mxu0
  %1277 = vmatprep.mubr.f32.mxu0 0.0
  %1278 = vmatmul.mubr.f32.gmra.mxu0 %v264
  %v1279 = vpop.f32.mrf.mxu0
  %v1280 = vadd.f32 %v1110, %v1279
  %v1281 = vpop.f32.mrf.mxu0
  %1282 = vmatprep.mubr.f32.mxu0 0.0
  %1283 = vmatmul.mubr.f32.gmra.mxu0 %v267
  %v1284 = vpop.f32.mrf.mxu0
  %v1285 = vadd.f32 %v1115, %v1284
  %v1286 = vpop.f32.mrf.mxu0
  %1287 = vmatprep.mubr.f32.mxu0 0.0
  %1288 = vmatmul.mubr.f32.gmra.mxu0 %v270
  %v1289 = vpop.f32.mrf.mxu0
  %v1290 = vadd.f32 %v1120, %v1289
  %v1291 = vpop.f32.mrf.mxu0
  %1292 = vdwg.mxu0
  %1293 = vmatprep.subr.mxu0 0.0
  %1294 = vmatpush1.msra.mxu0 0.0
  %1295 = vmatprep.subr.mxu0 0.0
  %1296 = vmatpush1.msra.mxu0 0.0
  %1297 = vmatprep.subr.mxu0 0.0
  %1298 = vmatpush1.msra.mxu0 0.0
  %1299 = vmatprep.subr.mxu0 0.0
  %1300 = vmatpush1.msra.mxu0 0.0
  %1301 = vmatprep.subr.mxu0 0.0
  %1302 = vmatpush1.msra.mxu0 0.0
  %1303 = vmatprep.subr.mxu0 0.0
  %1304 = vmatpush1.msra.mxu0 0.0
  %1305 = vmatprep.subr.mxu0 0.0
  %1306 = vmatpush1.msra.mxu0 0.0
  %1307 = vmatprep.subr.mxu0 0.0
  %1308 = vmatpush1.msra.mxu0 0.0
  %1309 = vmatprep.subr.mxu0 0.0
  %1310 = vmatpush1.msra.mxu0 0.0
  %1311 = vmatprep.subr.mxu0 0.0
  %1312 = vmatpush1.msra.mxu0 0.0
  %1313 = vmatprep.subr.mxu0 0.0
  %1314 = vmatpush1.msra.mxu0 0.0
  %1315 = vmatprep.subr.mxu0 0.0
  %1316 = vmatpush1.msra.mxu0 0.0
  %1317 = vmatprep.subr.mxu0 0.0
  %1318 = vmatpush1.msra.mxu0 0.0
  %1319 = vmatprep.subr.mxu0 0.0
  %1320 = vmatpush1.msra.mxu0 0.0
  %1321 = vmatprep.subr.mxu0 0.0
  %1322 = vmatpush1.msra.mxu0 0.0
  %1323 = vmatprep.subr.mxu0 0.0
  %1324 = vmatpush1.msra.mxu0 %v549
  %1325 = vmatprep.subr.mxu0 0.0
  %1326 = vmatpush2.msra.mxu0 0.0
  %1327 = vmatprep.subr.mxu0 0.0
  %1328 = vmatpush2.msra.mxu0 0.0
  %1329 = vmatprep.subr.mxu0 0.0
  %1330 = vmatpush2.msra.mxu0 0.0
  %1331 = vmatprep.subr.mxu0 0.0
  %1332 = vmatpush2.msra.mxu0 0.0
  %1333 = vmatprep.subr.mxu0 0.0
  %1334 = vmatpush2.msra.mxu0 0.0
  %1335 = vmatprep.subr.mxu0 0.0
  %1336 = vmatpush2.msra.mxu0 0.0
  %1337 = vmatprep.subr.mxu0 0.0
  %1338 = vmatpush2.msra.mxu0 0.0
  %1339 = vmatprep.subr.mxu0 0.0
  %1340 = vmatpush2.msra.mxu0 0.0
  %1341 = vmatprep.subr.mxu0 0.0
  %1342 = vmatpush2.msra.mxu0 0.0
  %1343 = vmatprep.subr.mxu0 0.0
  %1344 = vmatpush2.msra.mxu0 0.0
  %1345 = vmatprep.subr.mxu0 0.0
  %1346 = vmatpush2.msra.mxu0 0.0
  %1347 = vmatprep.subr.mxu0 0.0
  %1348 = vmatpush2.msra.mxu0 0.0
  %1349 = vmatprep.subr.mxu0 0.0
  %1350 = vmatpush2.msra.mxu0 0.0
  %1351 = vmatprep.subr.mxu0 0.0
  %1352 = vmatpush2.msra.mxu0 0.0
  %1353 = vmatprep.subr.mxu0 0.0
  %1354 = vmatpush2.msra.mxu0 0.0
  %1355 = vmatprep.subr.mxu0 0.0
  %1356 = vmatpush2.msra.mxu0 0.0
  %1357 = vmatprep.mubr.f32.mxu0 0.0
  %1358 = vmatmul.mubr.f32.gmra.mxu0 %v261
  %v1359 = vpop.f32.mrf.mxu0
  %v1360 = vadd.f32 %v1190, %v1359
  %v1361 = vpop.f32.mrf.mxu0
  %1362 = vmatprep.mubr.f32.mxu0 0.0
  %1363 = vmatmul.mubr.f32.gmra.mxu0 %v264
  %v1364 = vpop.f32.mrf.mxu0
  %v1365 = vadd.f32 %v1195, %v1364
  %v1366 = vpop.f32.mrf.mxu0
  %1367 = vmatprep.mubr.f32.mxu0 0.0
  %1368 = vmatmul.mubr.f32.gmra.mxu0 %v267
  %v1369 = vpop.f32.mrf.mxu0
  %v1370 = vadd.f32 %v1200, %v1369
  %v1371 = vpop.f32.mrf.mxu0
  %1372 = vmatprep.mubr.f32.mxu0 0.0
  %1373 = vmatmul.mubr.f32.gmra.mxu0 %v270
  %v1374 = vpop.f32.mrf.mxu0
  %v1375 = vadd.f32 %v1205, %v1374
  %v1376 = vpop.f32.mrf.mxu0
  %1377 = vdwg.mxu0
  %1378 = vmatprep.subr.mxu0 0.0
  %1379 = vmatpush1.msra.mxu0 0.0
  %1380 = vmatprep.subr.mxu0 0.0
  %1381 = vmatpush1.msra.mxu0 0.0
  %1382 = vmatprep.subr.mxu0 0.0
  %1383 = vmatpush1.msra.mxu0 0.0
  %1384 = vmatprep.subr.mxu0 0.0
  %1385 = vmatpush1.msra.mxu0 0.0
  %1386 = vmatprep.subr.mxu0 0.0
  %1387 = vmatpush1.msra.mxu0 0.0
  %1388 = vmatprep.subr.mxu0 0.0
  %1389 = vmatpush1.msra.mxu0 0.0
  %1390 = vmatprep.subr.mxu0 0.0
  %1391 = vmatpush1.msra.mxu0 0.0
  %1392 = vmatprep.subr.mxu0 0.0
  %1393 = vmatpush1.msra.mxu0 0.0
  %1394 = vmatprep.subr.mxu0 0.0
  %1395 = vmatpush1.msra.mxu0 0.0
  %1396 = vmatprep.subr.mxu0 0.0
  %1397 = vmatpush1.msra.mxu0 0.0
  %1398 = vmatprep.subr.mxu0 0.0
  %1399 = vmatpush1.msra.mxu0 0.0
  %1400 = vmatprep.subr.mxu0 0.0
  %1401 = vmatpush1.msra.mxu0 0.0
  %1402 = vmatprep.subr.mxu0 0.0
  %1403 = vmatpush1.msra.mxu0 0.0
  %1404 = vmatprep.subr.mxu0 0.0
  %1405 = vmatpush1.msra.mxu0 0.0
  %1406 = vmatprep.subr.mxu0 0.0
  %1407 = vmatpush1.msra.mxu0 0.0
  %1408 = vmatprep.subr.mxu0 0.0
  %1409 = vmatpush1.msra.mxu0 %v854
  %1410 = vmatprep.subr.mxu0 0.0
  %1411 = vmatpush2.msra.mxu0 0.0
  %1412 = vmatprep.subr.mxu0 0.0
  %1413 = vmatpush2.msra.mxu0 0.0
  %1414 = vmatprep.subr.mxu0 0.0
  %1415 = vmatpush2.msra.mxu0 0.0
  %1416 = vmatprep.subr.mxu0 0.0
  %1417 = vmatpush2.msra.mxu0 0.0
  %1418 = vmatprep.subr.mxu0 0.0
  %1419 = vmatpush2.msra.mxu0 0.0
  %1420 = vmatprep.subr.mxu0 0.0
  %1421 = vmatpush2.msra.mxu0 0.0
  %1422 = vmatprep.subr.mxu0 0.0
  %1423 = vmatpush2.msra.mxu0 0.0
  %1424 = vmatprep.subr.mxu0 0.0
  %1425 = vmatpush2.msra.mxu0 0.0
  %1426 = vmatprep.subr.mxu0 0.0
  %1427 = vmatpush2.msra.mxu0 0.0
  %1428 = vmatprep.subr.mxu0 0.0
  %1429 = vmatpush2.msra.mxu0 0.0
  %1430 = vmatprep.subr.mxu0 0.0
  %1431 = vmatpush2.msra.mxu0 0.0
  %1432 = vmatprep.subr.mxu0 0.0
  %1433 = vmatpush2.msra.mxu0 0.0
  %1434 = vmatprep.subr.mxu0 0.0
  %1435 = vmatpush2.msra.mxu0 0.0
  %1436 = vmatprep.subr.mxu0 0.0
  %1437 = vmatpush2.msra.mxu0 0.0
  %1438 = vmatprep.subr.mxu0 0.0
  %1439 = vmatpush2.msra.mxu0 0.0
  %1440 = vmatprep.subr.mxu0 0.0
  %1441 = vmatpush2.msra.mxu0 0.0
  %1442 = vmatprep.mubr.f32.mxu0 0.0
  %1443 = vmatmul.mubr.f32.gmra.mxu0 %v449
  %v1444 = vpop.f32.mrf.mxu0
  %v1445 = vadd.f32 0.0, %v1444
  %v1446 = vpop.f32.mrf.mxu0
  %1447 = vmatprep.mubr.f32.mxu0 0.0
  %1448 = vmatmul.mubr.f32.gmra.mxu0 %v452
  %v1449 = vpop.f32.mrf.mxu0
  %v1450 = vadd.f32 0.0, %v1449
  %v1451 = vpop.f32.mrf.mxu0
  %1452 = vmatprep.mubr.f32.mxu0 0.0
  %1453 = vmatmul.mubr.f32.gmra.mxu0 %v455
  %v1454 = vpop.f32.mrf.mxu0
  %v1455 = vadd.f32 0.0, %v1454
  %v1456 = vpop.f32.mrf.mxu0
  %1457 = vmatprep.mubr.f32.mxu0 0.0
  %1458 = vmatmul.mubr.f32.gmra.mxu0 %v458
  %v1459 = vpop.f32.mrf.mxu0
  %v1460 = vadd.f32 0.0, %v1459
  %v1461 = vpop.f32.mrf.mxu0
  %1462 = vdwg.mxu0
  %1463 = vmatprep.subr.mxu0 0.0
  %1464 = vmatpush1.msra.mxu0 0.0
  %1465 = vmatprep.subr.mxu0 0.0
  %1466 = vmatpush1.msra.mxu0 0.0
  %1467 = vmatprep.subr.mxu0 0.0
  %1468 = vmatpush1.msra.mxu0 0.0
  %1469 = vmatprep.subr.mxu0 0.0
  %1470 = vmatpush1.msra.mxu0 0.0
  %1471 = vmatprep.subr.mxu0 0.0
  %1472 = vmatpush1.msra.mxu0 0.0
  %1473 = vmatprep.subr.mxu0 0.0
  %1474 = vmatpush1.msra.mxu0 0.0
  %1475 = vmatprep.subr.mxu0 0.0
  %1476 = vmatpush1.msra.mxu0 0.0
  %1477 = vmatprep.subr.mxu0 0.0
  %1478 = vmatpush1.msra.mxu0 0.0
  %1479 = vmatprep.subr.mxu0 0.0
  %1480 = vmatpush1.msra.mxu0 0.0
  %1481 = vmatprep.subr.mxu0 0.0
  %1482 = vmatpush1.msra.mxu0 0.0
  %1483 = vmatprep.subr.mxu0 0.0
  %1484 = vmatpush1.msra.mxu0 0.0
  %1485 = vmatprep.subr.mxu0 0.0
  %1486 = vmatpush1.msra.mxu0 0.0
  %1487 = vmatprep.subr.mxu0 0.0
  %1488 = vmatpush1.msra.mxu0 0.0
  %1489 = vmatprep.subr.mxu0 0.0
  %1490 = vmatpush1.msra.mxu0 0.0
  %1491 = vmatprep.subr.mxu0 0.0
  %1492 = vmatpush1.msra.mxu0 0.0
  %1493 = vmatprep.subr.mxu0 0.0
  %1494 = vmatpush1.msra.mxu0 %v943
  %1495 = vmatprep.subr.mxu0 0.0
  %1496 = vmatpush2.msra.mxu0 0.0
  %1497 = vmatprep.subr.mxu0 0.0
  %1498 = vmatpush2.msra.mxu0 0.0
  %1499 = vmatprep.subr.mxu0 0.0
  %1500 = vmatpush2.msra.mxu0 0.0
  %1501 = vmatprep.subr.mxu0 0.0
  %1502 = vmatpush2.msra.mxu0 0.0
  %1503 = vmatprep.subr.mxu0 0.0
  %1504 = vmatpush2.msra.mxu0 0.0
  %1505 = vmatprep.subr.mxu0 0.0
  %1506 = vmatpush2.msra.mxu0 0.0
  %1507 = vmatprep.subr.mxu0 0.0
  %1508 = vmatpush2.msra.mxu0 0.0
  %1509 = vmatprep.subr.mxu0 0.0
  %1510 = vmatpush2.msra.mxu0 0.0
  %1511 = vmatprep.subr.mxu0 0.0
  %1512 = vmatpush2.msra.mxu0 0.0
  %1513 = vmatprep.subr.mxu0 0.0
  %1514 = vmatpush2.msra.mxu0 0.0
  %1515 = vmatprep.subr.mxu0 0.0
  %1516 = vmatpush2.msra.mxu0 0.0
  %1517 = vmatprep.subr.mxu0 0.0
  %1518 = vmatpush2.msra.mxu0 0.0
  %1519 = vmatprep.subr.mxu0 0.0
  %1520 = vmatpush2.msra.mxu0 0.0
  %1521 = vmatprep.subr.mxu0 0.0
  %1522 = vmatpush2.msra.mxu0 0.0
  %1523 = vmatprep.subr.mxu0 0.0
  %1524 = vmatpush2.msra.mxu0 0.0
  %1525 = vmatprep.subr.mxu0 0.0
  %1526 = vmatpush2.msra.mxu0 0.0
  %1527 = vmatprep.mubr.f32.mxu0 0.0
  %1528 = vmatmul.mubr.f32.gmra.mxu0 %v449
  %v1529 = vpop.f32.mrf.mxu0
  %v1530 = vadd.f32 0.0, %v1529
  %v1531 = vpop.f32.mrf.mxu0
  %1532 = vmatprep.mubr.f32.mxu0 0.0
  %1533 = vmatmul.mubr.f32.gmra.mxu0 %v452
  %v1534 = vpop.f32.mrf.mxu0
  %v1535 = vadd.f32 0.0, %v1534
  %v1536 = vpop.f32.mrf.mxu0
  %1537 = vmatprep.mubr.f32.mxu0 0.0
  %1538 = vmatmul.mubr.f32.gmra.mxu0 %v455
  %v1539 = vpop.f32.mrf.mxu0
  %v1540 = vadd.f32 0.0, %v1539
  %v1541 = vpop.f32.mrf.mxu0
  %1542 = vmatprep.mubr.f32.mxu0 0.0
  %1543 = vmatmul.mubr.f32.gmra.mxu0 %v458
  %v1544 = vpop.f32.mrf.mxu0
  %v1545 = vadd.f32 0.0, %v1544
  %v1546 = vpop.f32.mrf.mxu0
  %1547 = vdwg.mxu0
  %v1548 = vadd.f32 %v1275, %v1445
  %v1549 = vadd.f32 %v1280, %v1450
  %v1550 = vadd.f32 %v1285, %v1455
  %v1551 = vadd.f32 %v1290, %v1460
  %v1552 = vadd.f32 %v1360, %v1530
  %v1553 = vadd.f32 %v1365, %v1535
  %v1554 = vadd.f32 %v1370, %v1540
  %v1555 = vadd.f32 %v1375, %v1545
  %1556 = vrot.lane.b32.xlu0 %v22, 127
  %v1557 = vpop.permute.xlu0 %1556
  %v1558 = vsel %vm83, %v1557, 0
  %1560 = vmatprep.subr.mxu0 0.0
  %1561 = vmatpush1.msra.mxu0 0.0
  %1562 = vmatprep.subr.mxu0 0.0
  %1563 = vmatpush1.msra.mxu0 0.0
  %1564 = vmatprep.subr.mxu0 0.0
  %1565 = vmatpush1.msra.mxu0 0.0
  %1566 = vmatprep.subr.mxu0 0.0
  %1567 = vmatpush1.msra.mxu0 0.0
  %1568 = vmatprep.subr.mxu0 0.0
  %1569 = vmatpush1.msra.mxu0 0.0
  %1570 = vmatprep.subr.mxu0 0.0
  %1571 = vmatpush1.msra.mxu0 0.0
  %1572 = vmatprep.subr.mxu0 0.0
  %1573 = vmatpush1.msra.mxu0 0.0
  %1574 = vmatprep.subr.mxu0 0.0
  %1575 = vmatpush1.msra.mxu0 0.0
  %1576 = vmatprep.subr.mxu0 0.0
  %1577 = vmatpush1.msra.mxu0 0.0
  %1578 = vmatprep.subr.mxu0 0.0
  %1579 = vmatpush1.msra.mxu0 0.0
  %1580 = vmatprep.subr.mxu0 0.0
  %1581 = vmatpush1.msra.mxu0 0.0
  %1582 = vmatprep.subr.mxu0 0.0
  %1583 = vmatpush1.msra.mxu0 0.0
  %1584 = vmatprep.subr.mxu0 0.0
  %1585 = vmatpush1.msra.mxu0 0.0
  %1586 = vmatprep.subr.mxu0 0.0
  %1587 = vmatpush1.msra.mxu0 0.0
  %1588 = vmatprep.subr.mxu0 0.0
  %1589 = vmatpush1.msra.mxu0 0.0
  %1590 = vmatprep.subr.mxu0 0.0
  %1591 = vmatpush1.msra.mxu0 %v1558
  %1592 = vmatprep.subr.mxu0 0.0
  %1593 = vmatpush2.msra.mxu0 0.0
  %1594 = vmatprep.subr.mxu0 0.0
  %1595 = vmatpush2.msra.mxu0 0.0
  %1596 = vmatprep.subr.mxu0 0.0
  %1597 = vmatpush2.msra.mxu0 0.0
  %1598 = vmatprep.subr.mxu0 0.0
  %1599 = vmatpush2.msra.mxu0 0.0
  %1600 = vmatprep.subr.mxu0 0.0
  %1601 = vmatpush2.msra.mxu0 0.0
  %1602 = vmatprep.subr.mxu0 0.0
  %1603 = vmatpush2.msra.mxu0 0.0
  %1604 = vmatprep.subr.mxu0 0.0
  %1605 = vmatpush2.msra.mxu0 0.0
  %1606 = vmatprep.subr.mxu0 0.0
  %1607 = vmatpush2.msra.mxu0 0.0
  %1608 = vmatprep.subr.mxu0 0.0
  %1609 = vmatpush2.msra.mxu0 0.0
  %1610 = vmatprep.subr.mxu0 0.0
  %1611 = vmatpush2.msra.mxu0 0.0
  %1612 = vmatprep.subr.mxu0 0.0
  %1613 = vmatpush2.msra.mxu0 0.0
  %1614 = vmatprep.subr.mxu0 0.0
  %1615 = vmatpush2.msra.mxu0 0.0
  %1616 = vmatprep.subr.mxu0 0.0
  %1617 = vmatpush2.msra.mxu0 0.0
  %1618 = vmatprep.subr.mxu0 0.0
  %1619 = vmatpush2.msra.mxu0 0.0
  %1620 = vmatprep.subr.mxu0 0.0
  %1621 = vmatpush2.msra.mxu0 0.0
  %1622 = vmatprep.subr.mxu0 0.0
  %1623 = vmatpush2.msra.mxu0 0.0
  %1624 = vmatprep.mubr.f32.mxu0 0.0
  %1625 = vmatmul.mubr.f32.gmra.mxu0 %v645
  %v1626 = vpop.f32.mrf.mxu0
  %v1627 = vadd.f32 0.0, %v1626
  %v1628 = vpop.f32.mrf.mxu0
  %1629 = vmatprep.mubr.f32.mxu0 0.0
  %1630 = vmatmul.mubr.f32.gmra.mxu0 %v648
  %v1631 = vpop.f32.mrf.mxu0
  %v1632 = vadd.f32 0.0, %v1631
  %v1633 = vpop.f32.mrf.mxu0
  %1634 = vmatprep.mubr.f32.mxu0 0.0
  %1635 = vmatmul.mubr.f32.gmra.mxu0 %v651
  %v1636 = vpop.f32.mrf.mxu0
  %v1637 = vadd.f32 0.0, %v1636
  %v1638 = vpop.f32.mrf.mxu0
  %1639 = vmatprep.mubr.f32.mxu0 0.0
  %1640 = vmatmul.mubr.f32.gmra.mxu0 %v654
  %v1641 = vpop.f32.mrf.mxu0
  %v1642 = vadd.f32 0.0, %v1641
  %v1643 = vpop.f32.mrf.mxu0
  %1644 = vdwg.mxu0
  %1645 = vrot.lane.b32.xlu0 %v23, 127
  %v1646 = vpop.permute.xlu0 %1645
  %v1647 = vsel %vm83, %v1646, 0
  %1649 = vmatprep.subr.mxu0 0.0
  %1650 = vmatpush1.msra.mxu0 0.0
  %1651 = vmatprep.subr.mxu0 0.0
  %1652 = vmatpush1.msra.mxu0 0.0
  %1653 = vmatprep.subr.mxu0 0.0
  %1654 = vmatpush1.msra.mxu0 0.0
  %1655 = vmatprep.subr.mxu0 0.0
  %1656 = vmatpush1.msra.mxu0 0.0
  %1657 = vmatprep.subr.mxu0 0.0
  %1658 = vmatpush1.msra.mxu0 0.0
  %1659 = vmatprep.subr.mxu0 0.0
  %1660 = vmatpush1.msra.mxu0 0.0
  %1661 = vmatprep.subr.mxu0 0.0
  %1662 = vmatpush1.msra.mxu0 0.0
  %1663 = vmatprep.subr.mxu0 0.0
  %1664 = vmatpush1.msra.mxu0 0.0
  %1665 = vmatprep.subr.mxu0 0.0
  %1666 = vmatpush1.msra.mxu0 0.0
  %1667 = vmatprep.subr.mxu0 0.0
  %1668 = vmatpush1.msra.mxu0 0.0
  %1669 = vmatprep.subr.mxu0 0.0
  %1670 = vmatpush1.msra.mxu0 0.0
  %1671 = vmatprep.subr.mxu0 0.0
  %1672 = vmatpush1.msra.mxu0 0.0
  %1673 = vmatprep.subr.mxu0 0.0
  %1674 = vmatpush1.msra.mxu0 0.0
  %1675 = vmatprep.subr.mxu0 0.0
  %1676 = vmatpush1.msra.mxu0 0.0
  %1677 = vmatprep.subr.mxu0 0.0
  %1678 = vmatpush1.msra.mxu0 0.0
  %1679 = vmatprep.subr.mxu0 0.0
  %1680 = vmatpush1.msra.mxu0 %v1647
  %1681 = vmatprep.subr.mxu0 0.0
  %1682 = vmatpush2.msra.mxu0 0.0
  %1683 = vmatprep.subr.mxu0 0.0
  %1684 = vmatpush2.msra.mxu0 0.0
  %1685 = vmatprep.subr.mxu0 0.0
  %1686 = vmatpush2.msra.mxu0 0.0
  %1687 = vmatprep.subr.mxu0 0.0
  %1688 = vmatpush2.msra.mxu0 0.0
  %1689 = vmatprep.subr.mxu0 0.0
  %1690 = vmatpush2.msra.mxu0 0.0
  %1691 = vmatprep.subr.mxu0 0.0
  %1692 = vmatpush2.msra.mxu0 0.0
  %1693 = vmatprep.subr.mxu0 0.0
  %1694 = vmatpush2.msra.mxu0 0.0
  %1695 = vmatprep.subr.mxu0 0.0
  %1696 = vmatpush2.msra.mxu0 0.0
  %1697 = vmatprep.subr.mxu0 0.0
  %1698 = vmatpush2.msra.mxu0 0.0
  %1699 = vmatprep.subr.mxu0 0.0
  %1700 = vmatpush2.msra.mxu0 0.0
  %1701 = vmatprep.subr.mxu0 0.0
  %1702 = vmatpush2.msra.mxu0 0.0
  %1703 = vmatprep.subr.mxu0 0.0
  %1704 = vmatpush2.msra.mxu0 0.0
  %1705 = vmatprep.subr.mxu0 0.0
  %1706 = vmatpush2.msra.mxu0 0.0
  %1707 = vmatprep.subr.mxu0 0.0
  %1708 = vmatpush2.msra.mxu0 0.0
  %1709 = vmatprep.subr.mxu0 0.0
  %1710 = vmatpush2.msra.mxu0 0.0
  %1711 = vmatprep.subr.mxu0 0.0
  %1712 = vmatpush2.msra.mxu0 0.0
  %1713 = vmatprep.mubr.f32.mxu0 0.0
  %1714 = vmatmul.mubr.f32.gmra.mxu0 %v645
  %v1715 = vpop.f32.mrf.mxu0
  %v1716 = vadd.f32 0.0, %v1715
  %v1717 = vpop.f32.mrf.mxu0
  %1718 = vmatprep.mubr.f32.mxu0 0.0
  %1719 = vmatmul.mubr.f32.gmra.mxu0 %v648
  %v1720 = vpop.f32.mrf.mxu0
  %v1721 = vadd.f32 0.0, %v1720
  %v1722 = vpop.f32.mrf.mxu0
  %1723 = vmatprep.mubr.f32.mxu0 0.0
  %1724 = vmatmul.mubr.f32.gmra.mxu0 %v651
  %v1725 = vpop.f32.mrf.mxu0
  %v1726 = vadd.f32 0.0, %v1725
  %v1727 = vpop.f32.mrf.mxu0
  %1728 = vmatprep.mubr.f32.mxu0 0.0
  %1729 = vmatmul.mubr.f32.gmra.mxu0 %v654
  %v1730 = vpop.f32.mrf.mxu0
  %v1731 = vadd.f32 0.0, %v1730
  %v1732 = vpop.f32.mrf.mxu0
  %1733 = vdwg.mxu0
  %v1734 = vadd.f32 %v1548, %v1627
  %v1735 = vadd.f32 %v1549, %v1632
  %v1736 = vadd.f32 %v1550, %v1637
  %v1737 = vadd.f32 %v1551, %v1642
  %v1738 = vadd.f32 %v1552, %v1716
  %v1739 = vadd.f32 %v1553, %v1721
  %v1740 = vadd.f32 %v1554, %v1726
  %v1741 = vadd.f32 %v1555, %v1731
  %1742 = vrot.lane.b32.xlu0 %v24, 127
  %v1743 = vpop.permute.xlu0 %1742
  %v1744 = vsel %vm83, %v1743, 0
  %1746 = vmatprep.subr.mxu0 0.0
  %1747 = vmatpush1.msra.mxu0 0.0
  %1748 = vmatprep.subr.mxu0 0.0
  %1749 = vmatpush1.msra.mxu0 0.0
  %1750 = vmatprep.subr.mxu0 0.0
  %1751 = vmatpush1.msra.mxu0 0.0
  %1752 = vmatprep.subr.mxu0 0.0
  %1753 = vmatpush1.msra.mxu0 0.0
  %1754 = vmatprep.subr.mxu0 0.0
  %1755 = vmatpush1.msra.mxu0 0.0
  %1756 = vmatprep.subr.mxu0 0.0
  %1757 = vmatpush1.msra.mxu0 0.0
  %1758 = vmatprep.subr.mxu0 0.0
  %1759 = vmatpush1.msra.mxu0 0.0
  %1760 = vmatprep.subr.mxu0 0.0
  %1761 = vmatpush1.msra.mxu0 0.0
  %1762 = vmatprep.subr.mxu0 0.0
  %1763 = vmatpush1.msra.mxu0 0.0
  %1764 = vmatprep.subr.mxu0 0.0
  %1765 = vmatpush1.msra.mxu0 0.0
  %1766 = vmatprep.subr.mxu0 0.0
  %1767 = vmatpush1.msra.mxu0 0.0
  %1768 = vmatprep.subr.mxu0 0.0
  %1769 = vmatpush1.msra.mxu0 0.0
  %1770 = vmatprep.subr.mxu0 0.0
  %1771 = vmatpush1.msra.mxu0 0.0
  %1772 = vmatprep.subr.mxu0 0.0
  %1773 = vmatpush1.msra.mxu0 0.0
  %1774 = vmatprep.subr.mxu0 0.0
  %1775 = vmatpush1.msra.mxu0 0.0
  %1776 = vmatprep.subr.mxu0 0.0
  %1777 = vmatpush1.msra.mxu0 %v1744
  %1778 = vmatprep.subr.mxu0 0.0
  %1779 = vmatpush2.msra.mxu0 0.0
  %1780 = vmatprep.subr.mxu0 0.0
  %1781 = vmatpush2.msra.mxu0 0.0
  %1782 = vmatprep.subr.mxu0 0.0
  %1783 = vmatpush2.msra.mxu0 0.0
  %1784 = vmatprep.subr.mxu0 0.0
  %1785 = vmatpush2.msra.mxu0 0.0
  %1786 = vmatprep.subr.mxu0 0.0
  %1787 = vmatpush2.msra.mxu0 0.0
  %1788 = vmatprep.subr.mxu0 0.0
  %1789 = vmatpush2.msra.mxu0 0.0
  %1790 = vmatprep.subr.mxu0 0.0
  %1791 = vmatpush2.msra.mxu0 0.0
  %1792 = vmatprep.subr.mxu0 0.0
  %1793 = vmatpush2.msra.mxu0 0.0
  %1794 = vmatprep.subr.mxu0 0.0
  %1795 = vmatpush2.msra.mxu0 0.0
  %1796 = vmatprep.subr.mxu0 0.0
  %1797 = vmatpush2.msra.mxu0 0.0
  %1798 = vmatprep.subr.mxu0 0.0
  %1799 = vmatpush2.msra.mxu0 0.0
  %1800 = vmatprep.subr.mxu0 0.0
  %1801 = vmatpush2.msra.mxu0 0.0
  %1802 = vmatprep.subr.mxu0 0.0
  %1803 = vmatpush2.msra.mxu0 0.0
  %1804 = vmatprep.subr.mxu0 0.0
  %1805 = vmatpush2.msra.mxu0 0.0
  %1806 = vmatprep.subr.mxu0 0.0
  %1807 = vmatpush2.msra.mxu0 0.0
  %1808 = vmatprep.subr.mxu0 0.0
  %1809 = vmatpush2.msra.mxu0 0.0
  %1810 = vmatprep.mubr.f32.mxu0 0.0
  %1811 = vmatmul.mubr.f32.gmra.mxu0 %v843
  %v1812 = vpop.f32.mrf.mxu0
  %v1813 = vadd.f32 0.0, %v1812
  %v1814 = vpop.f32.mrf.mxu0
  %1815 = vmatprep.mubr.f32.mxu0 0.0
  %1816 = vmatmul.mubr.f32.gmra.mxu0 %v846
  %v1817 = vpop.f32.mrf.mxu0
  %v1818 = vadd.f32 0.0, %v1817
  %v1819 = vpop.f32.mrf.mxu0
  %1820 = vmatprep.mubr.f32.mxu0 0.0
  %1821 = vmatmul.mubr.f32.gmra.mxu0 %v849
  %v1822 = vpop.f32.mrf.mxu0
  %v1823 = vadd.f32 0.0, %v1822
  %v1824 = vpop.f32.mrf.mxu0
  %1825 = vmatprep.mubr.f32.mxu0 0.0
  %1826 = vmatmul.mubr.f32.gmra.mxu0 %v852
  %v1827 = vpop.f32.mrf.mxu0
  %v1828 = vadd.f32 0.0, %v1827
  %v1829 = vpop.f32.mrf.mxu0
  %1830 = vdwg.mxu0
  %1831 = vrot.lane.b32.xlu0 %v25, 127
  %v1832 = vpop.permute.xlu0 %1831
  %v1833 = vsel %vm83, %v1832, 0
  %1835 = vmatprep.subr.mxu0 0.0
  %1836 = vmatpush1.msra.mxu0 0.0
  %1837 = vmatprep.subr.mxu0 0.0
  %1838 = vmatpush1.msra.mxu0 0.0
  %1839 = vmatprep.subr.mxu0 0.0
  %1840 = vmatpush1.msra.mxu0 0.0
  %1841 = vmatprep.subr.mxu0 0.0
  %1842 = vmatpush1.msra.mxu0 0.0
  %1843 = vmatprep.subr.mxu0 0.0
  %1844 = vmatpush1.msra.mxu0 0.0
  %1845 = vmatprep.subr.mxu0 0.0
  %1846 = vmatpush1.msra.mxu0 0.0
  %1847 = vmatprep.subr.mxu0 0.0
  %1848 = vmatpush1.msra.mxu0 0.0
  %1849 = vmatprep.subr.mxu0 0.0
  %1850 = vmatpush1.msra.mxu0 0.0
  %1851 = vmatprep.subr.mxu0 0.0
  %1852 = vmatpush1.msra.mxu0 0.0
  %1853 = vmatprep.subr.mxu0 0.0
  %1854 = vmatpush1.msra.mxu0 0.0
  %1855 = vmatprep.subr.mxu0 0.0
  %1856 = vmatpush1.msra.mxu0 0.0
  %1857 = vmatprep.subr.mxu0 0.0
  %1858 = vmatpush1.msra.mxu0 0.0
  %1859 = vmatprep.subr.mxu0 0.0
  %1860 = vmatpush1.msra.mxu0 0.0
  %1861 = vmatprep.subr.mxu0 0.0
  %1862 = vmatpush1.msra.mxu0 0.0
  %1863 = vmatprep.subr.mxu0 0.0
  %1864 = vmatpush1.msra.mxu0 0.0
  %1865 = vmatprep.subr.mxu0 0.0
  %1866 = vmatpush1.msra.mxu0 %v1833
  %1867 = vmatprep.subr.mxu0 0.0
  %1868 = vmatpush2.msra.mxu0 0.0
  %1869 = vmatprep.subr.mxu0 0.0
  %1870 = vmatpush2.msra.mxu0 0.0
  %1871 = vmatprep.subr.mxu0 0.0
  %1872 = vmatpush2.msra.mxu0 0.0
  %1873 = vmatprep.subr.mxu0 0.0
  %1874 = vmatpush2.msra.mxu0 0.0
  %1875 = vmatprep.subr.mxu0 0.0
  %1876 = vmatpush2.msra.mxu0 0.0
  %1877 = vmatprep.subr.mxu0 0.0
  %1878 = vmatpush2.msra.mxu0 0.0
  %1879 = vmatprep.subr.mxu0 0.0
  %1880 = vmatpush2.msra.mxu0 0.0
  %1881 = vmatprep.subr.mxu0 0.0
  %1882 = vmatpush2.msra.mxu0 0.0
  %1883 = vmatprep.subr.mxu0 0.0
  %1884 = vmatpush2.msra.mxu0 0.0
  %1885 = vmatprep.subr.mxu0 0.0
  %1886 = vmatpush2.msra.mxu0 0.0
  %1887 = vmatprep.subr.mxu0 0.0
  %1888 = vmatpush2.msra.mxu0 0.0
  %1889 = vmatprep.subr.mxu0 0.0
  %1890 = vmatpush2.msra.mxu0 0.0
  %1891 = vmatprep.subr.mxu0 0.0
  %1892 = vmatpush2.msra.mxu0 0.0
  %1893 = vmatprep.subr.mxu0 0.0
  %1894 = vmatpush2.msra.mxu0 0.0
  %1895 = vmatprep.subr.mxu0 0.0
  %1896 = vmatpush2.msra.mxu0 0.0
  %1897 = vmatprep.subr.mxu0 0.0
  %1898 = vmatpush2.msra.mxu0 0.0
  %1899 = vmatprep.mubr.f32.mxu0 0.0
  %1900 = vmatmul.mubr.f32.gmra.mxu0 %v843
  %v1901 = vpop.f32.mrf.mxu0
  %v1902 = vadd.f32 0.0, %v1901
  %v1903 = vpop.f32.mrf.mxu0
  %1904 = vmatprep.mubr.f32.mxu0 0.0
  %1905 = vmatmul.mubr.f32.gmra.mxu0 %v846
  %v1906 = vpop.f32.mrf.mxu0
  %v1907 = vadd.f32 0.0, %v1906
  %v1908 = vpop.f32.mrf.mxu0
  %1909 = vmatprep.mubr.f32.mxu0 0.0
  %1910 = vmatmul.mubr.f32.gmra.mxu0 %v849
  %v1911 = vpop.f32.mrf.mxu0
  %v1912 = vadd.f32 0.0, %v1911
  %v1913 = vpop.f32.mrf.mxu0
  %1914 = vmatprep.mubr.f32.mxu0 0.0
  %1915 = vmatmul.mubr.f32.gmra.mxu0 %v852
  %v1916 = vpop.f32.mrf.mxu0
  %v1917 = vadd.f32 0.0, %v1916
  %v1918 = vpop.f32.mrf.mxu0
  %1919 = vdwg.mxu0
  %v1920 = vadd.f32 %v1734, %v1813
  %v1921 = vadd.f32 %v1735, %v1818
  %v1922 = vadd.f32 %v1736, %v1823
  %v1923 = vadd.f32 %v1737, %v1828
  %v1924 = vadd.f32 %v1738, %v1902
  %v1925 = vadd.f32 %v1739, %v1907
  %v1926 = vadd.f32 %v1740, %v1912
  %v1927 = vadd.f32 %v1741, %v1917
  %vm1928 = vcmask 121856
  %v1929 = vsel %vm1928, %v1030, 0.0
  %1930 = vadd.xlane.f32.xlu0 %v1929
  %v1931 = vpop.xlane.xlu0 %1930
  %v1932 = vsel %vm1928, %v1031, 0.0
  %1933 = vadd.xlane.f32.xlu0 %v1932
  %v1934 = vpop.xlane.xlu0 %1933
  %v1935 = vsel %vm1928, %v1032, 0.0
  %1936 = vadd.xlane.f32.xlu0 %v1935
  %v1937 = vpop.xlane.xlu0 %1936
  %v1938 = vsel %vm1928, %v1033, 0.0
  %1939 = vadd.xlane.f32.xlu0 %v1938
  %v1940 = vpop.xlane.xlu0 %1939
  %v1941 = vsel %vm1928, %v1034, 0.0
  %1942 = vadd.xlane.f32.xlu0 %v1941
  %v1943 = vpop.xlane.xlu0 %1942
  %v1944 = vsel %vm1928, %v1035, 0.0
  %1945 = vadd.xlane.f32.xlu0 %v1944
  %v1946 = vpop.xlane.xlu0 %1945
  %v1947 = vsel %vm1928, %v1036, 0.0
  %1948 = vadd.xlane.f32.xlu0 %v1947
  %v1949 = vpop.xlane.xlu0 %1948
  %v1950 = vsel %vm1928, %v1037, 0.0
  %1951 = vadd.xlane.f32.xlu0 %v1950
  %v1952 = vpop.xlane.xlu0 %1951
  %v1953 = vadd.f32 %v1931, %v1943
  %v1954 = vadd.f32 %v1934, %v1946
  %v1955 = vadd.f32 %v1937, %v1949
  %v1956 = vadd.f32 %v1940, %v1952
  %v1957 = vsel %vm1928, %v1920, 0.0
  %1958 = vadd.xlane.f32.xlu0 %v1957
  %v1959 = vpop.xlane.xlu0 %1958
  %v1960 = vsel %vm1928, %v1921, 0.0
  %1961 = vadd.xlane.f32.xlu0 %v1960
  %v1962 = vpop.xlane.xlu0 %1961
  %v1963 = vsel %vm1928, %v1922, 0.0
  %1964 = vadd.xlane.f32.xlu0 %v1963
  %v1965 = vpop.xlane.xlu0 %1964
  %v1966 = vsel %vm1928, %v1923, 0.0
  %1967 = vadd.xlane.f32.xlu0 %v1966
  %v1968 = vpop.xlane.xlu0 %1967
  %v1969 = vsel %vm1928, %v1924, 0.0
  %1970 = vadd.xlane.f32.xlu0 %v1969
  %v1971 = vpop.xlane.xlu0 %1970
  %v1972 = vsel %vm1928, %v1925, 0.0
  %1973 = vadd.xlane.f32.xlu0 %v1972
  %v1974 = vpop.xlane.xlu0 %1973
  %v1975 = vsel %vm1928, %v1926, 0.0
  %1976 = vadd.xlane.f32.xlu0 %v1975
  %v1977 = vpop.xlane.xlu0 %1976
  %v1978 = vsel %vm1928, %v1927, 0.0
  %1979 = vadd.xlane.f32.xlu0 %v1978
  %v1980 = vpop.xlane.xlu0 %1979
  %v1981 = vadd.f32 %v1959, %v1971
  %v1982 = vadd.f32 %v1962, %v1974
  %v1983 = vadd.f32 %v1965, %v1977
  %v1984 = vadd.f32 %v1968, %v1980
  %v1985 = vadd.f32 %v1953, %v1981
  %v1986 = vadd.f32 %v1954, %v1982
  %v1987 = vadd.f32 %v1955, %v1983
  %v1988 = vadd.f32 %v1956, %v1984
  %v1989 = vmul.f32 %v1030, %v1030
  %v1990 = vmul.f32 %v1031, %v1031
  %v1991 = vmul.f32 %v1032, %v1032
  %v1992 = vmul.f32 %v1033, %v1033
  %v1993 = vmul.f32 %v1034, %v1034
  %v1994 = vmul.f32 %v1035, %v1035
  %v1995 = vmul.f32 %v1036, %v1036
  %v1996 = vmul.f32 %v1037, %v1037
  %v1997 = vsel %vm1928, %v1989, 0.0
  %1998 = vadd.xlane.f32.xlu0 %v1997
  %v1999 = vpop.xlane.xlu0 %1998
  %v2000 = vsel %vm1928, %v1990, 0.0
  %2001 = vadd.xlane.f32.xlu0 %v2000
  %v2002 = vpop.xlane.xlu0 %2001
  %v2003 = vsel %vm1928, %v1991, 0.0
  %2004 = vadd.xlane.f32.xlu0 %v2003
  %v2005 = vpop.xlane.xlu0 %2004
  %v2006 = vsel %vm1928, %v1992, 0.0
  %2007 = vadd.xlane.f32.xlu0 %v2006
  %v2008 = vpop.xlane.xlu0 %2007
  %v2009 = vsel %vm1928, %v1993, 0.0
  %2010 = vadd.xlane.f32.xlu0 %v2009
  %v2011 = vpop.xlane.xlu0 %2010
  %v2012 = vsel %vm1928, %v1994, 0.0
  %2013 = vadd.xlane.f32.xlu0 %v2012
  %v2014 = vpop.xlane.xlu0 %2013
  %v2015 = vsel %vm1928, %v1995, 0.0
  %2016 = vadd.xlane.f32.xlu0 %v2015
  %v2017 = vpop.xlane.xlu0 %2016
  %v2018 = vsel %vm1928, %v1996, 0.0
  %2019 = vadd.xlane.f32.xlu0 %v2018
  %v2020 = vpop.xlane.xlu0 %2019
  %v2021 = vadd.f32 %v1999, %v2011
  %v2022 = vadd.f32 %v2002, %v2014
  %v2023 = vadd.f32 %v2005, %v2017
  %v2024 = vadd.f32 %v2008, %v2020
  %v2025 = vmul.f32 %v1920, %v1920
  %v2026 = vmul.f32 %v1921, %v1921
  %v2027 = vmul.f32 %v1922, %v1922
  %v2028 = vmul.f32 %v1923, %v1923
  %v2029 = vmul.f32 %v1924, %v1924
  %v2030 = vmul.f32 %v1925, %v1925
  %v2031 = vmul.f32 %v1926, %v1926
  %v2032 = vmul.f32 %v1927, %v1927
  %v2033 = vsel %vm1928, %v2025, 0.0
  %2034 = vadd.xlane.f32.xlu0 %v2033
  %v2035 = vpop.xlane.xlu0 %2034
  %v2036 = vsel %vm1928, %v2026, 0.0
  %2037 = vadd.xlane.f32.xlu0 %v2036
  %v2038 = vpop.xlane.xlu0 %2037
  %v2039 = vsel %vm1928, %v2027, 0.0
  %2040 = vadd.xlane.f32.xlu0 %v2039
  %v2041 = vpop.xlane.xlu0 %2040
  %v2042 = vsel %vm1928, %v2028, 0.0
  %2043 = vadd.xlane.f32.xlu0 %v2042
  %v2044 = vpop.xlane.xlu0 %2043
  %v2045 = vsel %vm1928, %v2029, 0.0
  %2046 = vadd.xlane.f32.xlu0 %v2045
  %v2047 = vpop.xlane.xlu0 %2046
  %v2048 = vsel %vm1928, %v2030, 0.0
  %2049 = vadd.xlane.f32.xlu0 %v2048
  %v2050 = vpop.xlane.xlu0 %2049
  %v2051 = vsel %vm1928, %v2031, 0.0
  %2052 = vadd.xlane.f32.xlu0 %v2051
  %v2053 = vpop.xlane.xlu0 %2052
  %v2054 = vsel %vm1928, %v2032, 0.0
  %2055 = vadd.xlane.f32.xlu0 %v2054
  %v2056 = vpop.xlane.xlu0 %2055
  %v2057 = vadd.f32 %v2035, %v2047
  %v2058 = vadd.f32 %v2038, %v2050
  %v2059 = vadd.f32 %v2041, %v2053
  %v2060 = vadd.f32 %v2044, %v2056
  %v2061 = vadd.f32 %v2021, %v2057
  %v2062 = vadd.f32 %v2022, %v2058
  %v2063 = vadd.f32 %v2023, %v2059
  %v2064 = vadd.f32 %v2024, %v2060
  %v2065 = vrcp.pop 60.0
  %v2066 = vmul.f32 %v1985, %v2065
  %v2067 = vmul.f32 %v1986, %v2065
  %v2068 = vmul.f32 %v1987, %v2065
  %v2069 = vmul.f32 %v1988, %v2065
  %v2070 = vmul.f32 %v2061, %v2065
  %v2071 = vmul.f32 %v2062, %v2065
  %v2072 = vmul.f32 %v2063, %v2065
  %v2073 = vmul.f32 %v2064, %v2065
  %v2074 = vmul.f32 %v2066, %v2066
  %v2075 = vmul.f32 %v2067, %v2067
  %v2076 = vmul.f32 %v2068, %v2068
  %v2077 = vmul.f32 %v2069, %v2069
  %v2078 = vsub.f32 %v2070, %v2074
  %v2079 = vsub.f32 %v2071, %v2075
  %v2080 = vsub.f32 %v2072, %v2076
  %v2081 = vsub.f32 %v2073, %v2077
  %v2082 = vadd.f32 %v2078, 1e-05
  %v2083 = vadd.f32 %v2079, 1e-05
  %v2084 = vadd.f32 %v2080, 1e-05
  %v2085 = vadd.f32 %v2081, 1e-05
  %v2086 = vrsqrt.pop %v2082
  %v2087 = vrsqrt.pop %v2083
  %v2088 = vrsqrt.pop %v2084
  %v2089 = vrsqrt.pop %v2085
  %v2090 = vmul.f32 %v58, %v2086
  %v2091 = vmul.f32 %v59, %v2087
  %v2092 = vmul.f32 %v60, %v2088
  %v2093 = vmul.f32 %v61, %v2089
  %v2094 = vmul.f32 %v2066, %v2090
  %v2095 = vmul.f32 %v2067, %v2091
  %v2096 = vmul.f32 %v2068, %v2092
  %v2097 = vmul.f32 %v2069, %v2093
  %v2098 = vsub.f32 %v62, %v2094
  %v2099 = vsub.f32 %v63, %v2095
  %v2100 = vsub.f32 %v64, %v2096
  %v2101 = vsub.f32 %v65, %v2097
  %2103 = vset.pattern.permute.xlu0 0
  %2104 = vperm.xlu0 %2103, %v2090
  %v2105 = vpop.permute.xlu0 %2104
  %2108 = vset.pattern.permute.xlu0 0
  %2109 = vperm.xlu0 %2108, %v2091
  %v2110 = vpop.permute.xlu0 %2109
  %2113 = vset.pattern.permute.xlu0 0
  %2114 = vperm.xlu0 %2113, %v2092
  %v2115 = vpop.permute.xlu0 %2114
  %2118 = vset.pattern.permute.xlu0 0
  %2119 = vperm.xlu0 %2118, %v2093
  %v2120 = vpop.permute.xlu0 %2119
  %v2122 = vmul.f32 %v1030, %v2105
  %v2123 = vmul.f32 %v1031, %v2110
  %v2124 = vmul.f32 %v1032, %v2115
  %v2125 = vmul.f32 %v1033, %v2120
  %v2126 = vmul.f32 %v1034, %v2105
  %v2127 = vmul.f32 %v1035, %v2110
  %v2128 = vmul.f32 %v1036, %v2115
  %v2129 = vmul.f32 %v1037, %v2120
  %2131 = vset.pattern.permute.xlu0 0
  %2132 = vperm.xlu0 %2131, %v2098
  %v2133 = vpop.permute.xlu0 %2132
  %2136 = vset.pattern.permute.xlu0 0
  %2137 = vperm.xlu0 %2136, %v2099
  %v2138 = vpop.permute.xlu0 %2137
  %2141 = vset.pattern.permute.xlu0 0
  %2142 = vperm.xlu0 %2141, %v2100
  %v2143 = vpop.permute.xlu0 %2142
  %2146 = vset.pattern.permute.xlu0 0
  %2147 = vperm.xlu0 %2146, %v2101
  %v2148 = vpop.permute.xlu0 %2147
  %v2150 = vadd.f32 %v2122, %v2133
  %v2151 = vadd.f32 %v2123, %v2138
  %v2152 = vadd.f32 %v2124, %v2143
  %v2153 = vadd.f32 %v2125, %v2148
  %v2154 = vadd.f32 %v2126, %v2133
  %v2155 = vadd.f32 %v2127, %v2138
  %v2156 = vadd.f32 %v2128, %v2143
  %v2157 = vadd.f32 %v2129, %v2148
  %vm2158 = vcmp.gt.f32.partialorder %v2150, 0.0
  %vm2159 = vcmp.gt.f32.partialorder %v2151, 0.0
  %vm2160 = vcmp.gt.f32.partialorder %v2152, 0.0
  %vm2161 = vcmp.gt.f32.partialorder %v2153, 0.0
  %vm2162 = vcmp.gt.f32.partialorder %v2154, 0.0
  %vm2163 = vcmp.gt.f32.partialorder %v2155, 0.0
  %vm2164 = vcmp.gt.f32.partialorder %v2156, 0.0
  %vm2165 = vcmp.gt.f32.partialorder %v2157, 0.0
  %v2166 = vmul.f32 %v2150, 0.05
  %v2167 = vmul.f32 %v2151, 0.05
  %v2168 = vmul.f32 %v2152, 0.05
  %v2169 = vmul.f32 %v2153, 0.05
  %v2170 = vmul.f32 %v2154, 0.05
  %v2171 = vmul.f32 %v2155, 0.05
  %v2172 = vmul.f32 %v2156, 0.05
  %v2173 = vmul.f32 %v2157, 0.05
  %v2174 = vsel %vm2158, %v2150, %v2166
  %v2175 = vsel %vm2159, %v2151, %v2167
  %v2176 = vsel %vm2160, %v2152, %v2168
  %v2177 = vsel %vm2161, %v2153, %v2169
  %v2178 = vsel %vm2162, %v2154, %v2170
  %v2179 = vsel %vm2163, %v2155, %v2171
  %v2180 = vsel %vm2164, %v2156, %v2172
  %v2181 = vsel %vm2165, %v2157, %v2173
  %v2182 = vmul.f32 %v1920, %v2105
  %v2183 = vmul.f32 %v1921, %v2110
  %v2184 = vmul.f32 %v1922, %v2115
  %v2185 = vmul.f32 %v1923, %v2120
  %v2186 = vmul.f32 %v1924, %v2105
  %v2187 = vmul.f32 %v1925, %v2110
  %v2188 = vmul.f32 %v1926, %v2115
  %v2189 = vmul.f32 %v1927, %v2120
  %v2190 = vadd.f32 %v2182, %v2133
  %v2191 = vadd.f32 %v2183, %v2138
  %v2192 = vadd.f32 %v2184, %v2143
  %v2193 = vadd.f32 %v2185, %v2148
  %v2194 = vadd.f32 %v2186, %v2133
  %v2195 = vadd.f32 %v2187, %v2138
  %v2196 = vadd.f32 %v2188, %v2143
  %v2197 = vadd.f32 %v2189, %v2148
  %vm2198 = vcmp.gt.f32.partialorder %v2190, 0.0
  %vm2199 = vcmp.gt.f32.partialorder %v2191, 0.0
  %vm2200 = vcmp.gt.f32.partialorder %v2192, 0.0
  %vm2201 = vcmp.gt.f32.partialorder %v2193, 0.0
  %vm2202 = vcmp.gt.f32.partialorder %v2194, 0.0
  %vm2203 = vcmp.gt.f32.partialorder %v2195, 0.0
  %vm2204 = vcmp.gt.f32.partialorder %v2196, 0.0
  %vm2205 = vcmp.gt.f32.partialorder %v2197, 0.0
  %v2206 = vmul.f32 %v2190, 0.05
  %v2207 = vmul.f32 %v2191, 0.05
  %v2208 = vmul.f32 %v2192, 0.05
  %v2209 = vmul.f32 %v2193, 0.05
  %v2210 = vmul.f32 %v2194, 0.05
  %v2211 = vmul.f32 %v2195, 0.05
  %v2212 = vmul.f32 %v2196, 0.05
  %v2213 = vmul.f32 %v2197, 0.05
  %v2214 = vsel %vm2198, %v2190, %v2206
  %v2215 = vsel %vm2199, %v2191, %v2207
  %v2216 = vsel %vm2200, %v2192, %v2208
  %v2217 = vsel %vm2201, %v2193, %v2209
  %v2218 = vsel %vm2202, %v2194, %v2210
  %v2219 = vsel %vm2203, %v2195, %v2211
  %v2220 = vsel %vm2204, %v2196, %v2212
  %v2221 = vsel %vm2205, %v2197, %v2213
  %vm2222 = vcmask 261120
  %v2224 = vsel %vm2222, %v50, 0
  %v2227 = vsel %vm2222, %v51, 0
  %2229 = vmatprep.subr.mxu0 0.0
  %2230 = vmatpush1.msra.mxu0 0.0
  %2231 = vmatprep.subr.mxu0 0.0
  %2232 = vmatpush1.msra.mxu0 0.0
  %2233 = vmatprep.subr.mxu0 0.0
  %2234 = vmatpush1.msra.mxu0 0.0
  %2235 = vmatprep.subr.mxu0 0.0
  %2236 = vmatpush1.msra.mxu0 0.0
  %2237 = vmatprep.subr.mxu0 0.0
  %2238 = vmatpush1.msra.mxu0 0.0
  %2239 = vmatprep.subr.mxu0 0.0
  %2240 = vmatpush1.msra.mxu0 0.0
  %2241 = vmatprep.subr.mxu0 0.0
  %2242 = vmatpush1.msra.mxu0 0.0
  %2243 = vmatprep.subr.mxu0 0.0
  %2244 = vmatpush1.msra.mxu0 0.0
  %2245 = vmatprep.subr.mxu0 0.0
  %2246 = vmatpush1.msra.mxu0 0.0
  %2247 = vmatprep.subr.mxu0 0.0
  %2248 = vmatpush1.msra.mxu0 0.0
  %2249 = vmatprep.subr.mxu0 0.0
  %2250 = vmatpush1.msra.mxu0 0.0
  %2251 = vmatprep.subr.mxu0 0.0
  %2252 = vmatpush1.msra.mxu0 0.0
  %2253 = vmatprep.subr.mxu0 0.0
  %2254 = vmatpush1.msra.mxu0 %v2217
  %2255 = vmatprep.subr.mxu0 0.0
  %2256 = vmatpush1.msra.mxu0 %v2216
  %2257 = vmatprep.subr.mxu0 0.0
  %2258 = vmatpush1.msra.mxu0 %v2215
  %2259 = vmatprep.subr.mxu0 0.0
  %2260 = vmatpush1.msra.mxu0 %v2214
  %2261 = vmatprep.subr.mxu0 0.0
  %2262 = vmatpush2.msra.mxu0 0.0
  %2263 = vmatprep.subr.mxu0 0.0
  %2264 = vmatpush2.msra.mxu0 0.0
  %2265 = vmatprep.subr.mxu0 0.0
  %2266 = vmatpush2.msra.mxu0 0.0
  %2267 = vmatprep.subr.mxu0 0.0
  %2268 = vmatpush2.msra.mxu0 0.0
  %2269 = vmatprep.subr.mxu0 0.0
  %2270 = vmatpush2.msra.mxu0 0.0
  %2271 = vmatprep.subr.mxu0 0.0
  %2272 = vmatpush2.msra.mxu0 0.0
  %2273 = vmatprep.subr.mxu0 0.0
  %2274 = vmatpush2.msra.mxu0 0.0
  %2275 = vmatprep.subr.mxu0 0.0
  %2276 = vmatpush2.msra.mxu0 0.0
  %2277 = vmatprep.subr.mxu0 0.0
  %2278 = vmatpush2.msra.mxu0 0.0
  %2279 = vmatprep.subr.mxu0 0.0
  %2280 = vmatpush2.msra.mxu0 0.0
  %2281 = vmatprep.subr.mxu0 0.0
  %2282 = vmatpush2.msra.mxu0 0.0
  %2283 = vmatprep.subr.mxu0 0.0
  %2284 = vmatpush2.msra.mxu0 0.0
  %2285 = vmatprep.subr.mxu0 0.0
  %2286 = vmatpush2.msra.mxu0 0.0
  %2287 = vmatprep.subr.mxu0 0.0
  %2288 = vmatpush2.msra.mxu0 0.0
  %2289 = vmatprep.subr.mxu0 0.0
  %2290 = vmatpush2.msra.mxu0 0.0
  %2291 = vmatprep.subr.mxu0 0.0
  %2292 = vmatpush2.msra.mxu0 0.0
  %2293 = vmatprep.mubr.f32.mxu0 0.0
  %2294 = vmatmul.mubr.f32.gmra.mxu0 %v2224
  %v2295 = vpop.f32.mrf.mxu0
  %v2296 = vadd.f32 0.0, %v2295
  %v2297 = vpop.f32.mrf.mxu0
  %2298 = vmatprep.mubr.f32.mxu0 0.0
  %2299 = vmatmul.mubr.f32.gmra.mxu0 %v2227
  %v2300 = vpop.f32.mrf.mxu0
  %v2301 = vadd.f32 0.0, %v2300
  %v2302 = vpop.f32.mrf.mxu0
  %2303 = vdwg.mxu0
  %2304 = vmatprep.subr.mxu0 0.0
  %2305 = vmatpush1.msra.mxu0 0.0
  %2306 = vmatprep.subr.mxu0 0.0
  %2307 = vmatpush1.msra.mxu0 0.0
  %2308 = vmatprep.subr.mxu0 0.0
  %2309 = vmatpush1.msra.mxu0 0.0
  %2310 = vmatprep.subr.mxu0 0.0
  %2311 = vmatpush1.msra.mxu0 0.0
  %2312 = vmatprep.subr.mxu0 0.0
  %2313 = vmatpush1.msra.mxu0 0.0
  %2314 = vmatprep.subr.mxu0 0.0
  %2315 = vmatpush1.msra.mxu0 0.0
  %2316 = vmatprep.subr.mxu0 0.0
  %2317 = vmatpush1.msra.mxu0 0.0
  %2318 = vmatprep.subr.mxu0 0.0
  %2319 = vmatpush1.msra.mxu0 0.0
  %2320 = vmatprep.subr.mxu0 0.0
  %2321 = vmatpush1.msra.mxu0 0.0
  %2322 = vmatprep.subr.mxu0 0.0
  %2323 = vmatpush1.msra.mxu0 0.0
  %2324 = vmatprep.subr.mxu0 0.0
  %2325 = vmatpush1.msra.mxu0 0.0
  %2326 = vmatprep.subr.mxu0 0.0
  %2327 = vmatpush1.msra.mxu0 0.0
  %2328 = vmatprep.subr.mxu0 0.0
  %2329 = vmatpush1.msra.mxu0 %v2221
  %2330 = vmatprep.subr.mxu0 0.0
  %2331 = vmatpush1.msra.mxu0 %v2220
  %2332 = vmatprep.subr.mxu0 0.0
  %2333 = vmatpush1.msra.mxu0 %v2219
  %2334 = vmatprep.subr.mxu0 0.0
  %2335 = vmatpush1.msra.mxu0 %v2218
  %2336 = vmatprep.subr.mxu0 0.0
  %2337 = vmatpush2.msra.mxu0 0.0
  %2338 = vmatprep.subr.mxu0 0.0
  %2339 = vmatpush2.msra.mxu0 0.0
  %2340 = vmatprep.subr.mxu0 0.0
  %2341 = vmatpush2.msra.mxu0 0.0
  %2342 = vmatprep.subr.mxu0 0.0
  %2343 = vmatpush2.msra.mxu0 0.0
  %2344 = vmatprep.subr.mxu0 0.0
  %2345 = vmatpush2.msra.mxu0 0.0
  %2346 = vmatprep.subr.mxu0 0.0
  %2347 = vmatpush2.msra.mxu0 0.0
  %2348 = vmatprep.subr.mxu0 0.0
  %2349 = vmatpush2.msra.mxu0 0.0
  %2350 = vmatprep.subr.mxu0 0.0
  %2351 = vmatpush2.msra.mxu0 0.0
  %2352 = vmatprep.subr.mxu0 0.0
  %2353 = vmatpush2.msra.mxu0 0.0
  %2354 = vmatprep.subr.mxu0 0.0
  %2355 = vmatpush2.msra.mxu0 0.0
  %2356 = vmatprep.subr.mxu0 0.0
  %2357 = vmatpush2.msra.mxu0 0.0
  %2358 = vmatprep.subr.mxu0 0.0
  %2359 = vmatpush2.msra.mxu0 0.0
  %2360 = vmatprep.subr.mxu0 0.0
  %2361 = vmatpush2.msra.mxu0 0.0
  %2362 = vmatprep.subr.mxu0 0.0
  %2363 = vmatpush2.msra.mxu0 0.0
  %2364 = vmatprep.subr.mxu0 0.0
  %2365 = vmatpush2.msra.mxu0 0.0
  %2366 = vmatprep.subr.mxu0 0.0
  %2367 = vmatpush2.msra.mxu0 0.0
  %2368 = vmatprep.mubr.f32.mxu0 0.0
  %2369 = vmatmul.mubr.f32.gmra.mxu0 %v2224
  %v2370 = vpop.f32.mrf.mxu0
  %v2371 = vadd.f32 0.0, %v2370
  %v2372 = vpop.f32.mrf.mxu0
  %2373 = vmatprep.mubr.f32.mxu0 0.0
  %2374 = vmatmul.mubr.f32.gmra.mxu0 %v2227
  %v2375 = vpop.f32.mrf.mxu0
  %v2376 = vadd.f32 0.0, %v2375
  %v2377 = vpop.f32.mrf.mxu0
  %2378 = vdwg.mxu0
  %v2380 = vsel %vm2222, %v48, 0
  %v2383 = vsel %vm2222, %v49, 0
  %2385 = vmatprep.subr.mxu0 0.0
  %2386 = vmatpush1.msra.mxu0 0.0
  %2387 = vmatprep.subr.mxu0 0.0
  %2388 = vmatpush1.msra.mxu0 0.0
  %2389 = vmatprep.subr.mxu0 0.0
  %2390 = vmatpush1.msra.mxu0 0.0
  %2391 = vmatprep.subr.mxu0 0.0
  %2392 = vmatpush1.msra.mxu0 0.0
  %2393 = vmatprep.subr.mxu0 0.0
  %2394 = vmatpush1.msra.mxu0 0.0
  %2395 = vmatprep.subr.mxu0 0.0
  %2396 = vmatpush1.msra.mxu0 0.0
  %2397 = vmatprep.subr.mxu0 0.0
  %2398 = vmatpush1.msra.mxu0 0.0
  %2399 = vmatprep.subr.mxu0 0.0
  %2400 = vmatpush1.msra.mxu0 0.0
  %2401 = vmatprep.subr.mxu0 0.0
  %2402 = vmatpush1.msra.mxu0 0.0
  %2403 = vmatprep.subr.mxu0 0.0
  %2404 = vmatpush1.msra.mxu0 0.0
  %2405 = vmatprep.subr.mxu0 0.0
  %2406 = vmatpush1.msra.mxu0 0.0
  %2407 = vmatprep.subr.mxu0 0.0
  %2408 = vmatpush1.msra.mxu0 0.0
  %2409 = vmatprep.subr.mxu0 0.0
  %2410 = vmatpush1.msra.mxu0 %v2177
  %2411 = vmatprep.subr.mxu0 0.0
  %2412 = vmatpush1.msra.mxu0 %v2176
  %2413 = vmatprep.subr.mxu0 0.0
  %2414 = vmatpush1.msra.mxu0 %v2175
  %2415 = vmatprep.subr.mxu0 0.0
  %2416 = vmatpush1.msra.mxu0 %v2174
  %2417 = vmatprep.subr.mxu0 0.0
  %2418 = vmatpush2.msra.mxu0 0.0
  %2419 = vmatprep.subr.mxu0 0.0
  %2420 = vmatpush2.msra.mxu0 0.0
  %2421 = vmatprep.subr.mxu0 0.0
  %2422 = vmatpush2.msra.mxu0 0.0
  %2423 = vmatprep.subr.mxu0 0.0
  %2424 = vmatpush2.msra.mxu0 0.0
  %2425 = vmatprep.subr.mxu0 0.0
  %2426 = vmatpush2.msra.mxu0 0.0
  %2427 = vmatprep.subr.mxu0 0.0
  %2428 = vmatpush2.msra.mxu0 0.0
  %2429 = vmatprep.subr.mxu0 0.0
  %2430 = vmatpush2.msra.mxu0 0.0
  %2431 = vmatprep.subr.mxu0 0.0
  %2432 = vmatpush2.msra.mxu0 0.0
  %2433 = vmatprep.subr.mxu0 0.0
  %2434 = vmatpush2.msra.mxu0 0.0
  %2435 = vmatprep.subr.mxu0 0.0
  %2436 = vmatpush2.msra.mxu0 0.0
  %2437 = vmatprep.subr.mxu0 0.0
  %2438 = vmatpush2.msra.mxu0 0.0
  %2439 = vmatprep.subr.mxu0 0.0
  %2440 = vmatpush2.msra.mxu0 0.0
  %2441 = vmatprep.subr.mxu0 0.0
  %2442 = vmatpush2.msra.mxu0 0.0
  %2443 = vmatprep.subr.mxu0 0.0
  %2444 = vmatpush2.msra.mxu0 0.0
  %2445 = vmatprep.subr.mxu0 0.0
  %2446 = vmatpush2.msra.mxu0 0.0
  %2447 = vmatprep.subr.mxu0 0.0
  %2448 = vmatpush2.msra.mxu0 0.0
  %2449 = vmatprep.mubr.f32.mxu0 0.0
  %2450 = vmatmul.mubr.f32.gmra.mxu0 %v2380
  %v2451 = vpop.f32.mrf.mxu0
  %v2452 = vadd.f32 %v2296, %v2451
  %v2453 = vpop.f32.mrf.mxu0
  %2454 = vmatprep.mubr.f32.mxu0 0.0
  %2455 = vmatmul.mubr.f32.gmra.mxu0 %v2383
  %v2456 = vpop.f32.mrf.mxu0
  %v2457 = vadd.f32 %v2301, %v2456
  %v2458 = vpop.f32.mrf.mxu0
  %2459 = vdwg.mxu0
  %2460 = vmatprep.subr.mxu0 0.0
  %2461 = vmatpush1.msra.mxu0 0.0
  %2462 = vmatprep.subr.mxu0 0.0
  %2463 = vmatpush1.msra.mxu0 0.0
  %2464 = vmatprep.subr.mxu0 0.0
  %2465 = vmatpush1.msra.mxu0 0.0
  %2466 = vmatprep.subr.mxu0 0.0
  %2467 = vmatpush1.msra.mxu0 0.0
  %2468 = vmatprep.subr.mxu0 0.0
  %2469 = vmatpush1.msra.mxu0 0.0
  %2470 = vmatprep.subr.mxu0 0.0
  %2471 = vmatpush1.msra.mxu0 0.0
  %2472 = vmatprep.subr.mxu0 0.0
  %2473 = vmatpush1.msra.mxu0 0.0
  %2474 = vmatprep.subr.mxu0 0.0
  %2475 = vmatpush1.msra.mxu0 0.0
  %2476 = vmatprep.subr.mxu0 0.0
  %2477 = vmatpush1.msra.mxu0 0.0
  %2478 = vmatprep.subr.mxu0 0.0
  %2479 = vmatpush1.msra.mxu0 0.0
  %2480 = vmatprep.subr.mxu0 0.0
  %2481 = vmatpush1.msra.mxu0 0.0
  %2482 = vmatprep.subr.mxu0 0.0
  %2483 = vmatpush1.msra.mxu0 0.0
  %2484 = vmatprep.subr.mxu0 0.0
  %2485 = vmatpush1.msra.mxu0 %v2181
  %2486 = vmatprep.subr.mxu0 0.0
  %2487 = vmatpush1.msra.mxu0 %v2180
  %2488 = vmatprep.subr.mxu0 0.0
  %2489 = vmatpush1.msra.mxu0 %v2179
  %2490 = vmatprep.subr.mxu0 0.0
  %2491 = vmatpush1.msra.mxu0 %v2178
  %2492 = vmatprep.subr.mxu0 0.0
  %2493 = vmatpush2.msra.mxu0 0.0
  %2494 = vmatprep.subr.mxu0 0.0
  %2495 = vmatpush2.msra.mxu0 0.0
  %2496 = vmatprep.subr.mxu0 0.0
  %2497 = vmatpush2.msra.mxu0 0.0
  %2498 = vmatprep.subr.mxu0 0.0
  %2499 = vmatpush2.msra.mxu0 0.0
  %2500 = vmatprep.subr.mxu0 0.0
  %2501 = vmatpush2.msra.mxu0 0.0
  %2502 = vmatprep.subr.mxu0 0.0
  %2503 = vmatpush2.msra.mxu0 0.0
  %2504 = vmatprep.subr.mxu0 0.0
  %2505 = vmatpush2.msra.mxu0 0.0
  %2506 = vmatprep.subr.mxu0 0.0
  %2507 = vmatpush2.msra.mxu0 0.0
  %2508 = vmatprep.subr.mxu0 0.0
  %2509 = vmatpush2.msra.mxu0 0.0
  %2510 = vmatprep.subr.mxu0 0.0
  %2511 = vmatpush2.msra.mxu0 0.0
  %2512 = vmatprep.subr.mxu0 0.0
  %2513 = vmatpush2.msra.mxu0 0.0
  %2514 = vmatprep.subr.mxu0 0.0
  %2515 = vmatpush2.msra.mxu0 0.0
  %2516 = vmatprep.subr.mxu0 0.0
  %2517 = vmatpush2.msra.mxu0 0.0
  %2518 = vmatprep.subr.mxu0 0.0
  %2519 = vmatpush2.msra.mxu0 0.0
  %2520 = vmatprep.subr.mxu0 0.0
  %2521 = vmatpush2.msra.mxu0 0.0
  %2522 = vmatprep.subr.mxu0 0.0
  %2523 = vmatpush2.msra.mxu0 0.0
  %2524 = vmatprep.mubr.f32.mxu0 0.0
  %2525 = vmatmul.mubr.f32.gmra.mxu0 %v2380
  %v2526 = vpop.f32.mrf.mxu0
  %v2527 = vadd.f32 %v2371, %v2526
  %v2528 = vpop.f32.mrf.mxu0
  %2529 = vmatprep.mubr.f32.mxu0 0.0
  %2530 = vmatmul.mubr.f32.gmra.mxu0 %v2383
  %v2531 = vpop.f32.mrf.mxu0
  %v2532 = vadd.f32 %v2376, %v2531
  %v2533 = vpop.f32.mrf.mxu0
  %2534 = vdwg.mxu0
  %2539 = vrot.lane.b32.xlu0 %v2174, 127
  %v2540 = vpop.permute.xlu0 %2539
  %2541 = vrot.lane.b32.xlu0 %v2175, 127
  %v2542 = vpop.permute.xlu0 %2541
  %2543 = vrot.lane.b32.xlu0 %v2176, 127
  %v2544 = vpop.permute.xlu0 %2543
  %2545 = vrot.lane.b32.xlu0 %v2177, 127
  %v2546 = vpop.permute.xlu0 %2545
  %v2552 = vsel %vm2222, %v52, 0
  %v2555 = vsel %vm2222, %v53, 0
  %2557 = vmatprep.subr.mxu0 0.0
  %2558 = vmatpush1.msra.mxu0 0.0
  %2559 = vmatprep.subr.mxu0 0.0
  %2560 = vmatpush1.msra.mxu0 0.0
  %2561 = vmatprep.subr.mxu0 0.0
  %2562 = vmatpush1.msra.mxu0 0.0
  %2563 = vmatprep.subr.mxu0 0.0
  %2564 = vmatpush1.msra.mxu0 0.0
  %2565 = vmatprep.subr.mxu0 0.0
  %2566 = vmatpush1.msra.mxu0 0.0
  %2567 = vmatprep.subr.mxu0 0.0
  %2568 = vmatpush1.msra.mxu0 0.0
  %2569 = vmatprep.subr.mxu0 0.0
  %2570 = vmatpush1.msra.mxu0 0.0
  %2571 = vmatprep.subr.mxu0 0.0
  %2572 = vmatpush1.msra.mxu0 0.0
  %2573 = vmatprep.subr.mxu0 0.0
  %2574 = vmatpush1.msra.mxu0 0.0
  %2575 = vmatprep.subr.mxu0 0.0
  %2576 = vmatpush1.msra.mxu0 0.0
  %2577 = vmatprep.subr.mxu0 0.0
  %2578 = vmatpush1.msra.mxu0 0.0
  %2579 = vmatprep.subr.mxu0 0.0
  %2580 = vmatpush1.msra.mxu0 0.0
  %2581 = vmatprep.subr.mxu0 0.0
  %2582 = vmatpush1.msra.mxu0 %v2546
  %2583 = vmatprep.subr.mxu0 0.0
  %2584 = vmatpush1.msra.mxu0 %v2544
  %2585 = vmatprep.subr.mxu0 0.0
  %2586 = vmatpush1.msra.mxu0 %v2542
  %2587 = vmatprep.subr.mxu0 0.0
  %2588 = vmatpush1.msra.mxu0 %v2540
  %2589 = vmatprep.subr.mxu0 0.0
  %2590 = vmatpush2.msra.mxu0 0.0
  %2591 = vmatprep.subr.mxu0 0.0
  %2592 = vmatpush2.msra.mxu0 0.0
  %2593 = vmatprep.subr.mxu0 0.0
  %2594 = vmatpush2.msra.mxu0 0.0
  %2595 = vmatprep.subr.mxu0 0.0
  %2596 = vmatpush2.msra.mxu0 0.0
  %2597 = vmatprep.subr.mxu0 0.0
  %2598 = vmatpush2.msra.mxu0 0.0
  %2599 = vmatprep.subr.mxu0 0.0
  %2600 = vmatpush2.msra.mxu0 0.0
  %2601 = vmatprep.subr.mxu0 0.0
  %2602 = vmatpush2.msra.mxu0 0.0
  %2603 = vmatprep.subr.mxu0 0.0
  %2604 = vmatpush2.msra.mxu0 0.0
  %2605 = vmatprep.subr.mxu0 0.0
  %2606 = vmatpush2.msra.mxu0 0.0
  %2607 = vmatprep.subr.mxu0 0.0
  %2608 = vmatpush2.msra.mxu0 0.0
  %2609 = vmatprep.subr.mxu0 0.0
  %2610 = vmatpush2.msra.mxu0 0.0
  %2611 = vmatprep.subr.mxu0 0.0
  %2612 = vmatpush2.msra.mxu0 0.0
  %2613 = vmatprep.subr.mxu0 0.0
  %2614 = vmatpush2.msra.mxu0 0.0
  %2615 = vmatprep.subr.mxu0 0.0
  %2616 = vmatpush2.msra.mxu0 0.0
  %2617 = vmatprep.subr.mxu0 0.0
  %2618 = vmatpush2.msra.mxu0 0.0
  %2619 = vmatprep.subr.mxu0 0.0
  %2620 = vmatpush2.msra.mxu0 0.0
  %2621 = vmatprep.mubr.f32.mxu0 0.0
  %2622 = vmatmul.mubr.f32.gmra.mxu0 %v2552
  %v2623 = vpop.f32.mrf.mxu0
  %v2624 = vadd.f32 0.0, %v2623
  %v2625 = vpop.f32.mrf.mxu0
  %2626 = vmatprep.mubr.f32.mxu0 0.0
  %2627 = vmatmul.mubr.f32.gmra.mxu0 %v2555
  %v2628 = vpop.f32.mrf.mxu0
  %v2629 = vadd.f32 0.0, %v2628
  %v2630 = vpop.f32.mrf.mxu0
  %2631 = vdwg.mxu0
  %2636 = vrot.lane.b32.xlu0 %v2178, 127
  %v2637 = vpop.permute.xlu0 %2636
  %2638 = vrot.lane.b32.xlu0 %v2179, 127
  %v2639 = vpop.permute.xlu0 %2638
  %2640 = vrot.lane.b32.xlu0 %v2180, 127
  %v2641 = vpop.permute.xlu0 %2640
  %2642 = vrot.lane.b32.xlu0 %v2181, 127
  %v2643 = vpop.permute.xlu0 %2642
  %2648 = vmatprep.subr.mxu0 0.0
  %2649 = vmatpush1.msra.mxu0 0.0
  %2650 = vmatprep.subr.mxu0 0.0
  %2651 = vmatpush1.msra.mxu0 0.0
  %2652 = vmatprep.subr.mxu0 0.0
  %2653 = vmatpush1.msra.mxu0 0.0
  %2654 = vmatprep.subr.mxu0 0.0
  %2655 = vmatpush1.msra.mxu0 0.0
  %2656 = vmatprep.subr.mxu0 0.0
  %2657 = vmatpush1.msra.mxu0 0.0
  %2658 = vmatprep.subr.mxu0 0.0
  %2659 = vmatpush1.msra.mxu0 0.0
  %2660 = vmatprep.subr.mxu0 0.0
  %2661 = vmatpush1.msra.mxu0 0.0
  %2662 = vmatprep.subr.mxu0 0.0
  %2663 = vmatpush1.msra.mxu0 0.0
  %2664 = vmatprep.subr.mxu0 0.0
  %2665 = vmatpush1.msra.mxu0 0.0
  %2666 = vmatprep.subr.mxu0 0.0
  %2667 = vmatpush1.msra.mxu0 0.0
  %2668 = vmatprep.subr.mxu0 0.0
  %2669 = vmatpush1.msra.mxu0 0.0
  %2670 = vmatprep.subr.mxu0 0.0
  %2671 = vmatpush1.msra.mxu0 0.0
  %2672 = vmatprep.subr.mxu0 0.0
  %2673 = vmatpush1.msra.mxu0 %v2643
  %2674 = vmatprep.subr.mxu0 0.0
  %2675 = vmatpush1.msra.mxu0 %v2641
  %2676 = vmatprep.subr.mxu0 0.0
  %2677 = vmatpush1.msra.mxu0 %v2639
  %2678 = vmatprep.subr.mxu0 0.0
  %2679 = vmatpush1.msra.mxu0 %v2637
  %2680 = vmatprep.subr.mxu0 0.0
  %2681 = vmatpush2.msra.mxu0 0.0
  %2682 = vmatprep.subr.mxu0 0.0
  %2683 = vmatpush2.msra.mxu0 0.0
  %2684 = vmatprep.subr.mxu0 0.0
  %2685 = vmatpush2.msra.mxu0 0.0
  %2686 = vmatprep.subr.mxu0 0.0
  %2687 = vmatpush2.msra.mxu0 0.0
  %2688 = vmatprep.subr.mxu0 0.0
  %2689 = vmatpush2.msra.mxu0 0.0
  %2690 = vmatprep.subr.mxu0 0.0
  %2691 = vmatpush2.msra.mxu0 0.0
  %2692 = vmatprep.subr.mxu0 0.0
  %2693 = vmatpush2.msra.mxu0 0.0
  %2694 = vmatprep.subr.mxu0 0.0
  %2695 = vmatpush2.msra.mxu0 0.0
  %2696 = vmatprep.subr.mxu0 0.0
  %2697 = vmatpush2.msra.mxu0 0.0
  %2698 = vmatprep.subr.mxu0 0.0
  %2699 = vmatpush2.msra.mxu0 0.0
  %2700 = vmatprep.subr.mxu0 0.0
  %2701 = vmatpush2.msra.mxu0 0.0
  %2702 = vmatprep.subr.mxu0 0.0
  %2703 = vmatpush2.msra.mxu0 0.0
  %2704 = vmatprep.subr.mxu0 0.0
  %2705 = vmatpush2.msra.mxu0 0.0
  %2706 = vmatprep.subr.mxu0 0.0
  %2707 = vmatpush2.msra.mxu0 0.0
  %2708 = vmatprep.subr.mxu0 0.0
  %2709 = vmatpush2.msra.mxu0 0.0
  %2710 = vmatprep.subr.mxu0 0.0
  %2711 = vmatpush2.msra.mxu0 0.0
  %2712 = vmatprep.mubr.f32.mxu0 0.0
  %2713 = vmatmul.mubr.f32.gmra.mxu0 %v2552
  %v2714 = vpop.f32.mrf.mxu0
  %v2715 = vadd.f32 0.0, %v2714
  %v2716 = vpop.f32.mrf.mxu0
  %2717 = vmatprep.mubr.f32.mxu0 0.0
  %2718 = vmatmul.mubr.f32.gmra.mxu0 %v2555
  %v2719 = vpop.f32.mrf.mxu0
  %v2720 = vadd.f32 0.0, %v2719
  %v2721 = vpop.f32.mrf.mxu0
  %2722 = vdwg.mxu0
  %v2723 = vadd.f32 %v2452, %v2624
  %v2724 = vadd.f32 %v2457, %v2629
  %v2725 = vadd.f32 %v2527, %v2715
  %v2726 = vadd.f32 %v2532, %v2720
  %2731 = vrot.lane.b32.xlu0 %v2214, 127
  %v2732 = vpop.permute.xlu0 %2731
  %2733 = vrot.lane.b32.xlu0 %v2215, 127
  %v2734 = vpop.permute.xlu0 %2733
  %2735 = vrot.lane.b32.xlu0 %v2216, 127
  %v2736 = vpop.permute.xlu0 %2735
  %2737 = vrot.lane.b32.xlu0 %v2217, 127
  %v2738 = vpop.permute.xlu0 %2737
  %v2744 = vsel %vm2222, %v54, 0
  %v2747 = vsel %vm2222, %v55, 0
  %2749 = vmatprep.subr.mxu0 0.0
  %2750 = vmatpush1.msra.mxu0 0.0
  %2751 = vmatprep.subr.mxu0 0.0
  %2752 = vmatpush1.msra.mxu0 0.0
  %2753 = vmatprep.subr.mxu0 0.0
  %2754 = vmatpush1.msra.mxu0 0.0
  %2755 = vmatprep.subr.mxu0 0.0
  %2756 = vmatpush1.msra.mxu0 0.0
  %2757 = vmatprep.subr.mxu0 0.0
  %2758 = vmatpush1.msra.mxu0 0.0
  %2759 = vmatprep.subr.mxu0 0.0
  %2760 = vmatpush1.msra.mxu0 0.0
  %2761 = vmatprep.subr.mxu0 0.0
  %2762 = vmatpush1.msra.mxu0 0.0
  %2763 = vmatprep.subr.mxu0 0.0
  %2764 = vmatpush1.msra.mxu0 0.0
  %2765 = vmatprep.subr.mxu0 0.0
  %2766 = vmatpush1.msra.mxu0 0.0
  %2767 = vmatprep.subr.mxu0 0.0
  %2768 = vmatpush1.msra.mxu0 0.0
  %2769 = vmatprep.subr.mxu0 0.0
  %2770 = vmatpush1.msra.mxu0 0.0
  %2771 = vmatprep.subr.mxu0 0.0
  %2772 = vmatpush1.msra.mxu0 0.0
  %2773 = vmatprep.subr.mxu0 0.0
  %2774 = vmatpush1.msra.mxu0 %v2738
  %2775 = vmatprep.subr.mxu0 0.0
  %2776 = vmatpush1.msra.mxu0 %v2736
  %2777 = vmatprep.subr.mxu0 0.0
  %2778 = vmatpush1.msra.mxu0 %v2734
  %2779 = vmatprep.subr.mxu0 0.0
  %2780 = vmatpush1.msra.mxu0 %v2732
  %2781 = vmatprep.subr.mxu0 0.0
  %2782 = vmatpush2.msra.mxu0 0.0
  %2783 = vmatprep.subr.mxu0 0.0
  %2784 = vmatpush2.msra.mxu0 0.0
  %2785 = vmatprep.subr.mxu0 0.0
  %2786 = vmatpush2.msra.mxu0 0.0
  %2787 = vmatprep.subr.mxu0 0.0
  %2788 = vmatpush2.msra.mxu0 0.0
  %2789 = vmatprep.subr.mxu0 0.0
  %2790 = vmatpush2.msra.mxu0 0.0
  %2791 = vmatprep.subr.mxu0 0.0
  %2792 = vmatpush2.msra.mxu0 0.0
  %2793 = vmatprep.subr.mxu0 0.0
  %2794 = vmatpush2.msra.mxu0 0.0
  %2795 = vmatprep.subr.mxu0 0.0
  %2796 = vmatpush2.msra.mxu0 0.0
  %2797 = vmatprep.subr.mxu0 0.0
  %2798 = vmatpush2.msra.mxu0 0.0
  %2799 = vmatprep.subr.mxu0 0.0
  %2800 = vmatpush2.msra.mxu0 0.0
  %2801 = vmatprep.subr.mxu0 0.0
  %2802 = vmatpush2.msra.mxu0 0.0
  %2803 = vmatprep.subr.mxu0 0.0
  %2804 = vmatpush2.msra.mxu0 0.0
  %2805 = vmatprep.subr.mxu0 0.0
  %2806 = vmatpush2.msra.mxu0 0.0
  %2807 = vmatprep.subr.mxu0 0.0
  %2808 = vmatpush2.msra.mxu0 0.0
  %2809 = vmatprep.subr.mxu0 0.0
  %2810 = vmatpush2.msra.mxu0 0.0
  %2811 = vmatprep.subr.mxu0 0.0
  %2812 = vmatpush2.msra.mxu0 0.0
  %2813 = vmatprep.mubr.f32.mxu0 0.0
  %2814 = vmatmul.mubr.f32.gmra.mxu0 %v2744
  %v2815 = vpop.f32.mrf.mxu0
  %v2816 = vadd.f32 0.0, %v2815
  %v2817 = vpop.f32.mrf.mxu0
  %2818 = vmatprep.mubr.f32.mxu0 0.0
  %2819 = vmatmul.mubr.f32.gmra.mxu0 %v2747
  %v2820 = vpop.f32.mrf.mxu0
  %v2821 = vadd.f32 0.0, %v2820
  %v2822 = vpop.f32.mrf.mxu0
  %2823 = vdwg.mxu0
  %2828 = vrot.lane.b32.xlu0 %v2218, 127
  %v2829 = vpop.permute.xlu0 %2828
  %2830 = vrot.lane.b32.xlu0 %v2219, 127
  %v2831 = vpop.permute.xlu0 %2830
  %2832 = vrot.lane.b32.xlu0 %v2220, 127
  %v2833 = vpop.permute.xlu0 %2832
  %2834 = vrot.lane.b32.xlu0 %v2221, 127
  %v2835 = vpop.permute.xlu0 %2834
  %2840 = vmatprep.subr.mxu0 0.0
  %2841 = vmatpush1.msra.mxu0 0.0
  %2842 = vmatprep.subr.mxu0 0.0
  %2843 = vmatpush1.msra.mxu0 0.0
  %2844 = vmatprep.subr.mxu0 0.0
  %2845 = vmatpush1.msra.mxu0 0.0
  %2846 = vmatprep.subr.mxu0 0.0
  %2847 = vmatpush1.msra.mxu0 0.0
  %2848 = vmatprep.subr.mxu0 0.0
  %2849 = vmatpush1.msra.mxu0 0.0
  %2850 = vmatprep.subr.mxu0 0.0
  %2851 = vmatpush1.msra.mxu0 0.0
  %2852 = vmatprep.subr.mxu0 0.0
  %2853 = vmatpush1.msra.mxu0 0.0
  %2854 = vmatprep.subr.mxu0 0.0
  %2855 = vmatpush1.msra.mxu0 0.0
  %2856 = vmatprep.subr.mxu0 0.0
  %2857 = vmatpush1.msra.mxu0 0.0
  %2858 = vmatprep.subr.mxu0 0.0
  %2859 = vmatpush1.msra.mxu0 0.0
  %2860 = vmatprep.subr.mxu0 0.0
  %2861 = vmatpush1.msra.mxu0 0.0
  %2862 = vmatprep.subr.mxu0 0.0
  %2863 = vmatpush1.msra.mxu0 0.0
  %2864 = vmatprep.subr.mxu0 0.0
  %2865 = vmatpush1.msra.mxu0 %v2835
  %2866 = vmatprep.subr.mxu0 0.0
  %2867 = vmatpush1.msra.mxu0 %v2833
  %2868 = vmatprep.subr.mxu0 0.0
  %2869 = vmatpush1.msra.mxu0 %v2831
  %2870 = vmatprep.subr.mxu0 0.0
  %2871 = vmatpush1.msra.mxu0 %v2829
  %2872 = vmatprep.subr.mxu0 0.0
  %2873 = vmatpush2.msra.mxu0 0.0
  %2874 = vmatprep.subr.mxu0 0.0
  %2875 = vmatpush2.msra.mxu0 0.0
  %2876 = vmatprep.subr.mxu0 0.0
  %2877 = vmatpush2.msra.mxu0 0.0
  %2878 = vmatprep.subr.mxu0 0.0
  %2879 = vmatpush2.msra.mxu0 0.0
  %2880 = vmatprep.subr.mxu0 0.0
  %2881 = vmatpush2.msra.mxu0 0.0
  %2882 = vmatprep.subr.mxu0 0.0
  %2883 = vmatpush2.msra.mxu0 0.0
  %2884 = vmatprep.subr.mxu0 0.0
  %2885 = vmatpush2.msra.mxu0 0.0
  %2886 = vmatprep.subr.mxu0 0.0
  %2887 = vmatpush2.msra.mxu0 0.0
  %2888 = vmatprep.subr.mxu0 0.0
  %2889 = vmatpush2.msra.mxu0 0.0
  %2890 = vmatprep.subr.mxu0 0.0
  %2891 = vmatpush2.msra.mxu0 0.0
  %2892 = vmatprep.subr.mxu0 0.0
  %2893 = vmatpush2.msra.mxu0 0.0
  %2894 = vmatprep.subr.mxu0 0.0
  %2895 = vmatpush2.msra.mxu0 0.0
  %2896 = vmatprep.subr.mxu0 0.0
  %2897 = vmatpush2.msra.mxu0 0.0
  %2898 = vmatprep.subr.mxu0 0.0
  %2899 = vmatpush2.msra.mxu0 0.0
  %2900 = vmatprep.subr.mxu0 0.0
  %2901 = vmatpush2.msra.mxu0 0.0
  %2902 = vmatprep.subr.mxu0 0.0
  %2903 = vmatpush2.msra.mxu0 0.0
  %2904 = vmatprep.mubr.f32.mxu0 0.0
  %2905 = vmatmul.mubr.f32.gmra.mxu0 %v2744
  %v2906 = vpop.f32.mrf.mxu0
  %v2907 = vadd.f32 0.0, %v2906
  %v2908 = vpop.f32.mrf.mxu0
  %2909 = vmatprep.mubr.f32.mxu0 0.0
  %2910 = vmatmul.mubr.f32.gmra.mxu0 %v2747
  %v2911 = vpop.f32.mrf.mxu0
  %v2912 = vadd.f32 0.0, %v2911
  %v2913 = vpop.f32.mrf.mxu0
  %2914 = vdwg.mxu0
  %v2915 = vadd.f32 %v2723, %v2816
  %v2916 = vadd.f32 %v2724, %v2821
  %v2917 = vadd.f32 %v2725, %v2907
  %v2918 = vadd.f32 %v2726, %v2912
  %2919 = vrot.lane.b32.xlu0 %v2174, 126
  %v2920 = vpop.permute.xlu0 %2919
  %2921 = vrot.lane.b32.xlu0 %v2175, 126
  %v2922 = vpop.permute.xlu0 %2921
  %2923 = vrot.lane.b32.xlu0 %v2176, 126
  %v2924 = vpop.permute.xlu0 %2923
  %2925 = vrot.lane.b32.xlu0 %v2177, 126
  %v2926 = vpop.permute.xlu0 %2925
  %v2932 = vsel %vm2222, %v56, 0
  %v2935 = vsel %vm2222, %v57, 0
  %2937 = vmatprep.subr.mxu0 0.0
  %2938 = vmatpush1.msra.mxu0 0.0
  %2939 = vmatprep.subr.mxu0 0.0
  %2940 = vmatpush1.msra.mxu0 0.0
  %2941 = vmatprep.subr.mxu0 0.0
  %2942 = vmatpush1.msra.mxu0 0.0
  %2943 = vmatprep.subr.mxu0 0.0
  %2944 = vmatpush1.msra.mxu0 0.0
  %2945 = vmatprep.subr.mxu0 0.0
  %2946 = vmatpush1.msra.mxu0 0.0
  %2947 = vmatprep.subr.mxu0 0.0
  %2948 = vmatpush1.msra.mxu0 0.0
  %2949 = vmatprep.subr.mxu0 0.0
  %2950 = vmatpush1.msra.mxu0 0.0
  %2951 = vmatprep.subr.mxu0 0.0
  %2952 = vmatpush1.msra.mxu0 0.0
  %2953 = vmatprep.subr.mxu0 0.0
  %2954 = vmatpush1.msra.mxu0 0.0
  %2955 = vmatprep.subr.mxu0 0.0
  %2956 = vmatpush1.msra.mxu0 0.0
  %2957 = vmatprep.subr.mxu0 0.0
  %2958 = vmatpush1.msra.mxu0 0.0
  %2959 = vmatprep.subr.mxu0 0.0
  %2960 = vmatpush1.msra.mxu0 0.0
  %2961 = vmatprep.subr.mxu0 0.0
  %2962 = vmatpush1.msra.mxu0 %v2926
  %2963 = vmatprep.subr.mxu0 0.0
  %2964 = vmatpush1.msra.mxu0 %v2924
  %2965 = vmatprep.subr.mxu0 0.0
  %2966 = vmatpush1.msra.mxu0 %v2922
  %2967 = vmatprep.subr.mxu0 0.0
  %2968 = vmatpush1.msra.mxu0 %v2920
  %2969 = vmatprep.subr.mxu0 0.0
  %2970 = vmatpush2.msra.mxu0 0.0
  %2971 = vmatprep.subr.mxu0 0.0
  %2972 = vmatpush2.msra.mxu0 0.0
  %2973 = vmatprep.subr.mxu0 0.0
  %2974 = vmatpush2.msra.mxu0 0.0
  %2975 = vmatprep.subr.mxu0 0.0
  %2976 = vmatpush2.msra.mxu0 0.0
  %2977 = vmatprep.subr.mxu0 0.0
  %2978 = vmatpush2.msra.mxu0 0.0
  %2979 = vmatprep.subr.mxu0 0.0
  %2980 = vmatpush2.msra.mxu0 0.0
  %2981 = vmatprep.subr.mxu0 0.0
  %2982 = vmatpush2.msra.mxu0 0.0
  %2983 = vmatprep.subr.mxu0 0.0
  %2984 = vmatpush2.msra.mxu0 0.0
  %2985 = vmatprep.subr.mxu0 0.0
  %2986 = vmatpush2.msra.mxu0 0.0
  %2987 = vmatprep.subr.mxu0 0.0
  %2988 = vmatpush2.msra.mxu0 0.0
  %2989 = vmatprep.subr.mxu0 0.0
  %2990 = vmatpush2.msra.mxu0 0.0
  %2991 = vmatprep.subr.mxu0 0.0
  %2992 = vmatpush2.msra.mxu0 0.0
  %2993 = vmatprep.subr.mxu0 0.0
  %2994 = vmatpush2.msra.mxu0 0.0
  %2995 = vmatprep.subr.mxu0 0.0
  %2996 = vmatpush2.msra.mxu0 0.0
  %2997 = vmatprep.subr.mxu0 0.0
  %2998 = vmatpush2.msra.mxu0 0.0
  %2999 = vmatprep.subr.mxu0 0.0
  %3000 = vmatpush2.msra.mxu0 0.0
  %3001 = vmatprep.mubr.f32.mxu0 0.0
  %3002 = vmatmul.mubr.f32.gmra.mxu0 %v2932
  %v3003 = vpop.f32.mrf.mxu0
  %v3004 = vadd.f32 0.0, %v3003
  %v3005 = vpop.f32.mrf.mxu0
  %3006 = vmatprep.mubr.f32.mxu0 0.0
  %3007 = vmatmul.mubr.f32.gmra.mxu0 %v2935
  %v3008 = vpop.f32.mrf.mxu0
  %v3009 = vadd.f32 0.0, %v3008
  %v3010 = vpop.f32.mrf.mxu0
  %3011 = vdwg.mxu0
  %3012 = vrot.lane.b32.xlu0 %v2178, 126
  %v3013 = vpop.permute.xlu0 %3012
  %3014 = vrot.lane.b32.xlu0 %v2179, 126
  %v3015 = vpop.permute.xlu0 %3014
  %3016 = vrot.lane.b32.xlu0 %v2180, 126
  %v3017 = vpop.permute.xlu0 %3016
  %3018 = vrot.lane.b32.xlu0 %v2181, 126
  %v3019 = vpop.permute.xlu0 %3018
  %3024 = vmatprep.subr.mxu0 0.0
  %3025 = vmatpush1.msra.mxu0 0.0
  %3026 = vmatprep.subr.mxu0 0.0
  %3027 = vmatpush1.msra.mxu0 0.0
  %3028 = vmatprep.subr.mxu0 0.0
  %3029 = vmatpush1.msra.mxu0 0.0
  %3030 = vmatprep.subr.mxu0 0.0
  %3031 = vmatpush1.msra.mxu0 0.0
  %3032 = vmatprep.subr.mxu0 0.0
  %3033 = vmatpush1.msra.mxu0 0.0
  %3034 = vmatprep.subr.mxu0 0.0
  %3035 = vmatpush1.msra.mxu0 0.0
  %3036 = vmatprep.subr.mxu0 0.0
  %3037 = vmatpush1.msra.mxu0 0.0
  %3038 = vmatprep.subr.mxu0 0.0
  %3039 = vmatpush1.msra.mxu0 0.0
  %3040 = vmatprep.subr.mxu0 0.0
  %3041 = vmatpush1.msra.mxu0 0.0
  %3042 = vmatprep.subr.mxu0 0.0
  %3043 = vmatpush1.msra.mxu0 0.0
  %3044 = vmatprep.subr.mxu0 0.0
  %3045 = vmatpush1.msra.mxu0 0.0
  %3046 = vmatprep.subr.mxu0 0.0
  %3047 = vmatpush1.msra.mxu0 0.0
  %3048 = vmatprep.subr.mxu0 0.0
  %3049 = vmatpush1.msra.mxu0 %v3019
  %3050 = vmatprep.subr.mxu0 0.0
  %3051 = vmatpush1.msra.mxu0 %v3017
  %3052 = vmatprep.subr.mxu0 0.0
  %3053 = vmatpush1.msra.mxu0 %v3015
  %3054 = vmatprep.subr.mxu0 0.0
  %3055 = vmatpush1.msra.mxu0 %v3013
  %3056 = vmatprep.subr.mxu0 0.0
  %3057 = vmatpush2.msra.mxu0 0.0
  %3058 = vmatprep.subr.mxu0 0.0
  %3059 = vmatpush2.msra.mxu0 0.0
  %3060 = vmatprep.subr.mxu0 0.0
  %3061 = vmatpush2.msra.mxu0 0.0
  %3062 = vmatprep.subr.mxu0 0.0
  %3063 = vmatpush2.msra.mxu0 0.0
  %3064 = vmatprep.subr.mxu0 0.0
  %3065 = vmatpush2.msra.mxu0 0.0
  %3066 = vmatprep.subr.mxu0 0.0
  %3067 = vmatpush2.msra.mxu0 0.0
  %3068 = vmatprep.subr.mxu0 0.0
  %3069 = vmatpush2.msra.mxu0 0.0
  %3070 = vmatprep.subr.mxu0 0.0
  %3071 = vmatpush2.msra.mxu0 0.0
  %3072 = vmatprep.subr.mxu0 0.0
  %3073 = vmatpush2.msra.mxu0 0.0
  %3074 = vmatprep.subr.mxu0 0.0
  %3075 = vmatpush2.msra.mxu0 0.0
  %3076 = vmatprep.subr.mxu0 0.0
  %3077 = vmatpush2.msra.mxu0 0.0
  %3078 = vmatprep.subr.mxu0 0.0
  %3079 = vmatpush2.msra.mxu0 0.0
  %3080 = vmatprep.subr.mxu0 0.0
  %3081 = vmatpush2.msra.mxu0 0.0
  %3082 = vmatprep.subr.mxu0 0.0
  %3083 = vmatpush2.msra.mxu0 0.0
  %3084 = vmatprep.subr.mxu0 0.0
  %3085 = vmatpush2.msra.mxu0 0.0
  %3086 = vmatprep.subr.mxu0 0.0
  %3087 = vmatpush2.msra.mxu0 0.0
  %3088 = vmatprep.mubr.f32.mxu0 0.0
  %3089 = vmatmul.mubr.f32.gmra.mxu0 %v2932
  %v3090 = vpop.f32.mrf.mxu0
  %v3091 = vadd.f32 0.0, %v3090
  %v3092 = vpop.f32.mrf.mxu0
  %3093 = vmatprep.mubr.f32.mxu0 0.0
  %3094 = vmatmul.mubr.f32.gmra.mxu0 %v2935
  %v3095 = vpop.f32.mrf.mxu0
  %v3096 = vadd.f32 0.0, %v3095
  %v3097 = vpop.f32.mrf.mxu0
  %3098 = vdwg.mxu0
  %v3099 = vadd.f32 %v2915, %v3004
  %v3100 = vadd.f32 %v2916, %v3009
  %v3101 = vadd.f32 %v2917, %v3091
  %v3102 = vadd.f32 %v2918, %v3096
  %vm3103 = vcmask 105472
  %v3104 = vsel %vm3103, %v3099, 0.0
  %3105 = vadd.xlane.f32.xlu0 %v3104
  %v3106 = vpop.xlane.xlu0 %3105
  %v3107 = vsel %vm3103, %v3100, 0.0
  %3108 = vadd.xlane.f32.xlu0 %v3107
  %v3109 = vpop.xlane.xlu0 %3108
  %v3110 = vsel %vm3103, %v3101, 0.0
  %3111 = vadd.xlane.f32.xlu0 %v3110
  %v3112 = vpop.xlane.xlu0 %3111
  %v3113 = vsel %vm3103, %v3102, 0.0
  %3114 = vadd.xlane.f32.xlu0 %v3113
  %v3115 = vpop.xlane.xlu0 %3114
  %v3116 = vadd.f32 %v3106, %v3112
  %v3117 = vadd.f32 %v3109, %v3115
  %v3118 = vmul.f32 %v3099, %v3099
  %v3119 = vmul.f32 %v3100, %v3100
  %v3120 = vmul.f32 %v3101, %v3101
  %v3121 = vmul.f32 %v3102, %v3102
  %v3122 = vsel %vm3103, %v3118, 0.0
  %3123 = vadd.xlane.f32.xlu0 %v3122
  %v3124 = vpop.xlane.xlu0 %3123
  %v3125 = vsel %vm3103, %v3119, 0.0
  %3126 = vadd.xlane.f32.xlu0 %v3125
  %v3127 = vpop.xlane.xlu0 %3126
  %v3128 = vsel %vm3103, %v3120, 0.0
  %3129 = vadd.xlane.f32.xlu0 %v3128
  %v3130 = vpop.xlane.xlu0 %3129
  %v3131 = vsel %vm3103, %v3121, 0.0
  %3132 = vadd.xlane.f32.xlu0 %v3131
  %v3133 = vpop.xlane.xlu0 %3132
  %v3134 = vadd.f32 %v3124, %v3130
  %v3135 = vadd.f32 %v3127, %v3133
  %v3136 = vrcp.pop 26.0
  %v3137 = vmul.f32 %v3116, %v3136
  %v3138 = vmul.f32 %v3117, %v3136
  %v3139 = vmul.f32 %v3134, %v3136
  %v3140 = vmul.f32 %v3135, %v3136
  %v3141 = vmul.f32 %v3137, %v3137
  %v3142 = vmul.f32 %v3138, %v3138
  %v3143 = vsub.f32 %v3139, %v3141
  %v3144 = vsub.f32 %v3140, %v3142
  %v3145 = vadd.f32 %v3143, 1e-05
  %v3146 = vadd.f32 %v3144, 1e-05
  %v3147 = vrsqrt.pop %v3145
  %v3148 = vrsqrt.pop %v3146
  %v3149 = vmul.f32 %v66, %v3147
  %v3150 = vmul.f32 %v67, %v3148
  %v3151 = vmul.f32 %v3137, %v3149
  %v3152 = vmul.f32 %v3138, %v3150
  %v3153 = vsub.f32 %v68, %v3151
  %v3154 = vsub.f32 %v69, %v3152
  %3156 = vset.pattern.permute.xlu0 0
  %3157 = vperm.xlu0 %3156, %v3149
  %v3158 = vpop.permute.xlu0 %3157
  %3161 = vset.pattern.permute.xlu0 0
  %3162 = vperm.xlu0 %3161, %v3150
  %v3163 = vpop.permute.xlu0 %3162
  %v3165 = vmul.f32 %v3099, %v3158
  %v3166 = vmul.f32 %v3100, %v3163
  %v3167 = vmul.f32 %v3101, %v3158
  %v3168 = vmul.f32 %v3102, %v3163
  %3170 = vset.pattern.permute.xlu0 0
  %3171 = vperm.xlu0 %3170, %v3153
  %v3172 = vpop.permute.xlu0 %3171
  %3175 = vset.pattern.permute.xlu0 0
  %3176 = vperm.xlu0 %3175, %v3154
  %v3177 = vpop.permute.xlu0 %3176
  %v3179 = vadd.f32 %v3165, %v3172
  %v3180 = vadd.f32 %v3166, %v3177
  %v3181 = vadd.f32 %v3167, %v3172
  %v3182 = vadd.f32 %v3168, %v3177
  %vm3183 = vcmp.gt.f32.partialorder %v3179, 0.0
  %vm3184 = vcmp.gt.f32.partialorder %v3180, 0.0
  %vm3185 = vcmp.gt.f32.partialorder %v3181, 0.0
  %vm3186 = vcmp.gt.f32.partialorder %v3182, 0.0
  %v3187 = vmul.f32 %v3179, 0.05
  %v3188 = vmul.f32 %v3180, 0.05
  %v3189 = vmul.f32 %v3181, 0.05
  %v3190 = vmul.f32 %v3182, 0.05
  %v3191 = vsel %vm3183, %v3179, %v3187
  %v3192 = vsel %vm3184, %v3180, %v3188
  %v3193 = vsel %vm3185, %v3181, %v3189
  %v3194 = vsel %vm3186, %v3182, %v3190
  %3195 = vst.msk [vmem:[%s5] sm:$0xff] %vm3103, %v3191
  %3196 = vst.msk [vmem:[%s5 + $0x8] sm:$0xff] %vm3103, %v3192
  %3197 = vst.msk [vmem:[%s5 + $0x10] sm:$0xff] %vm3103, %v3193
  %3198 = vst.msk [vmem:[%s5 + $0x18] sm:$0xff] %vm3103, %v3194
  // Predicated region
  $region22: #{drgn_encoder.1} parent=0 // pred_check
    _
  $region23: #{drgn_encoder.1} parent=0 // pred_check_branch
    %3200 = sbr.rel (0) target = $region25
  $region24: #{drgn_encoder.1} parent=0 // pred_region
    _
  $region25: #{drgn_encoder.1} parent=0 // pred_fallthru
    _
  // Predicated region
  $region26: #{drgn_encoder.1} parent=0 // pred_check
    _
  $region27: #{drgn_encoder.1} parent=0 // pred_check_branch
    %3202 = sbr.rel (0) target = $region29
  $region28: #{drgn_encoder.1} parent=0 // pred_region
    _
  $region29: #{drgn_encoder.1} parent=0 // pred_fallthru
    _

</llo_original>
